<compile_context>
chip_gen: v7x
topology: tpu7x:2x2x1
jax: 0.10.0
libtpu: 0.0.40
codegen_flags: <defaults>
</compile_context>

<pallas_src>
import jax
import jax.numpy as jnp
from jax.experimental import pallas as pl
from jax.experimental.pallas import tpu as pltpu

F32 = jnp.float32
BF16 = jnp.bfloat16
VMEM = pltpu.MemorySpace.VMEM

KPAD = 128   # padded im2col K (lanes) for conv1
NP = 8       # padded GRU / EC agent-row count (B*A = 6 -> 8)

CFG = dict(
    batch_size=2,
    image_shape=(4, 16, 16),   # (C, H, W) of data_batch['image']
    conv1_ch=8,
    conv2_ch=16,
    map_feature_dim=32,        # algo_config.map_feature_dim
    goal_feature_dim=8,        # algo_config.goal_feature_dim (GC=True)
    future_num_frames=8,       # algo_config.future_num_frames
    num_other_agents=3,
    ec_rnn_dim=16,             # algo_config.EC.RNN_hidden_size
    ec_feature_dim=16,         # algo_config.EC.feature_dim
    hidden_dim=32,             # decoder MLP hidden width
)


# ------------------------ packed weight-slab layout -------------------------

def _build_layout():
    entries = [
        ("w1", 128), ("b1", 8), ("w2", 192), ("b2", 8),
        ("map_fc_w", 16), ("map_fc_b", 8),
        ("goal_w1", 8), ("goal_b1", 8), ("goal_w2", 16), ("goal_b2", 8),
        ("mg_map", 32), ("mg_goal", 8), ("dec_b1", 8),
        ("dec_w2", 32), ("dec_b2", 8), ("dec_w3", 32), ("dec_b3", 8),
        ("gru_wih", 8), ("gru_bi", 8), ("gru_whh", 16), ("gru_bhn", 8),
        ("ecp_w", 16), ("ecp_b", 8),
        ("ec_e1e", 16), ("ec_b1", 8), ("ec_w2", 32), ("ec_b2", 8),
        ("rep", 8),
    ]
    layout, off = {}, 0
    for name, rows in entries:
        layout[name] = (off, rows)
        off += rows
    return layout, off


_LAYOUT, _SLAB_ROWS = _build_layout()


# ------------------------------ Pallas kernel -------------------------------

def _fused_kernel(col1_ref, w_ref, aux_ref, out_ref, y1_ref):
    cfg = CFG
    B = cfg["batch_size"]
    T = cfg["future_num_frames"]
    R = cfg["ec_rnn_dim"]
    C2 = cfg["conv2_ch"]
    MF = cfg["map_feature_dim"]
    GF = cfg["goal_feature_dim"]
    HD = cfg["hidden_dim"]
    ECF = cfg["ec_feature_dim"]

    def cut(name, rows, cols):
        off, rpad = _LAYOUT[name]
        return w_ref[pl.ds(off, rpad), :][:rows, :cols]

    def mm(a, b):
        return jnp.dot(a, b, preferred_element_type=F32)

    # ---- conv1: [B*256, 128] x [128, 128], bf16 operands, f32 accumulate ----
    w1 = cut("w1", 128, 128).astype(BF16)
    b1 = cut("b1", 1, 128)
    y1 = jnp.maximum(mm(col1_ref[...], w1) + b1, 0.0)       # lanes >= C1 are 0
    y1_ref[...] = y1.reshape(B, 256, 128)

    # ---- conv2 (3x3, stride 2, pad 1) as 9 accumulating taps over the
    #      parity-ordered conv1 slab kept in the VMEM scratch ----
    row = jax.lax.broadcasted_iota(jnp.int32, (64, 1), 0)
    mask_h = (row >= 8).astype(F32)          # zero the ho == 0 rows
    mask_w = ((row % 8) > 0).astype(F32)     # zero the wo == 0 rows
    w2_off, _ = _LAYOUT["w2"]
    acc = jnp.zeros((B * 64, 128), F32)
    for ki in range(3):
        ph, sh = (0, 0) if ki == 1 else (1, -1) if ki == 0 else (1, 0)
        for kj in range(3):
            pw, sw = (0, 0) if kj == 1 else (1, -1) if kj == 0 else (1, 0)
            start = (ph * 2 + pw) * 64 + sh * 8 + sw
            blk = y1_ref[:, pl.ds(start, 64), :]             # [B, 64, 128]
            if sh == -1 and sw == -1:
                blk = blk * (mask_h * mask_w)[None]
            elif sh == -1:
                blk = blk * mask_h[None]
            elif sw == -1:
                blk = blk * mask_w[None]
            # [128,128] weight window; rows >= C1 only ever hit zero lanes.
            wk = w_ref[pl.ds(w2_off + (ki * 3 + kj) * 8, 128), :]
            acc = acc + mm(blk.reshape(B * 64, 128), wk)
    y2 = jnp.maximum(acc + cut("b2", 1, 128), 0.0)           # [B*64, 128]

    # ---- global average pool (XLU reduction) + map_fc ----
    pooled = jnp.sum(y2.reshape(B, 64, 128), axis=1) * (1.0 / 64.0)
    map_feat = mm(pooled[:, :C2], cut("map_fc_w", C2, MF)) + cut("map_fc_b", 1, MF)

    # ---- goal encoder MLP (ReLU hidden, ReLU output activation) ----
    goal = aux_ref[pl.ds(T * NP, 8), :][:B, :3]
    g1 = jnp.maximum(mm(goal, cut("goal_w1", 3, 16)) + cut("goal_b1", 1, 16), 0.0)
    goal_feat = jnp.maximum(mm(g1, cut("goal_w2", 16, GF)) + cut("goal_b2", 1, GF), 0.0)

    # ---- merged first layers of the base decoder and the EC decoder ----
    mg = (mm(map_feat, cut("mg_map", MF, 2 * HD)) +
          mm(goal_feat, cut("mg_goal", GF, 2 * HD)))         # [B, 2*HD]
    dec_h1 = jnp.maximum(mg[:, :HD] + cut("dec_b1", 1, HD), 0.0)
    ec_ip = mg[:, HD:2 * HD]                                 # [B, HD]

    # ---- base trajectory decoder tail ----
    dec_h2 = jnp.maximum(mm(dec_h1, cut("dec_w2", HD, HD)) + cut("dec_b2", 1, HD), 0.0)
    traj = mm(dec_h2, cut("dec_w3", HD, 128)) + cut("dec_b3", 1, 128)    # [B, 128]

    # ---- GRU over the conditioning trajectories (PyTorch gate order r,z,n;
    #      b_hh(r,z) folded into gru_bi, b_hh(n) stays inside the r*(.) term) ----
    cond = aux_ref[pl.ds(0, T * NP), :][:, :3]               # [T*NP, 3]
    gi_all = mm(cond, cut("gru_wih", 3, 3 * R)) + cut("gru_bi", 1, 3 * R)
    whh = cut("gru_whh", R, 3 * R)
    bhn = cut("gru_bhn", 1, R)
    h = jnp.zeros((NP, R), F32)
    for t in range(T):
        gi = gi_all[t * NP:(t + 1) * NP, :]
        gh = mm(h, whh)
        r = jax.nn.sigmoid(gi[:, :R] + gh[:, :R])
        z = jax.nn.sigmoid(gi[:, R:2 * R] + gh[:, R:2 * R])
        n = jnp.tanh(gi[:, 2 * R:] + r * (gh[:, 2 * R:] + bhn))
        h = (1.0 - z) * n + z * h

    ec_feat = jnp.maximum(mm(h, cut("ecp_w", R, ECF)) + cut("ecp_b", 1, ECF), 0.0)

    # ---- EC decoder (per-batch features replicated via the 0/1 rep matmul) ----
    ip_rep = mm(cut("rep", NP, B), ec_ip)                    # [NP, HD]
    eh = jnp.maximum(ip_rep + mm(ec_feat, cut("ec_e1e", ECF, HD)) +
                     cut("ec_b1", 1, HD), 0.0)
    ec_out = mm(eh, cut("ec_w2", HD, 128)) + cut("ec_b2", 1, 128)        # [NP, 128]

    # ---- single lane-dense [16, 128] output slab ----
    out_ref[...] = jnp.zeros(out_ref.shape, F32)
    out_ref[pl.ds(0, B), :] = traj
    out_ref[pl.ds(8, NP), :] = ec_out


# ----------------------------- glue / packing -------------------------------

def _pt_conv_weight_to_matmul(w):
    """PyTorch [C_out, C_in, kh, kw] -> [kh*kw*C_in, C_out] (NHWC im2col order)."""
    C_out, C_in, kh, kw = w.shape
    return jnp.transpose(w, (2, 3, 1, 0)).reshape(kh * kw * C_in, C_out)


def get_last_available_index(avails):
    """tbsim batch_utils().get_last_available_index for [B, T] availabilities."""
    T = avails.shape[-1]
    return T - 1 - jnp.argmax(jnp.flip(avails, axis=-1).astype(jnp.int32), axis=-1)


def init_params(key):
    c, cfg = {}, CFG
    ks = iter(jax.random.split(key, 32))

    def w(shape, scale=0.1):
        return scale * jax.random.normal(next(ks), shape, dtype=F32)

    C_in = cfg["image_shape"][0]
    T = cfg["future_num_frames"]
    F = cfg["map_feature_dim"] + cfg["goal_feature_dim"]
    R = cfg["ec_rnn_dim"]
    H = cfg["hidden_dim"]

    # simplified RasterizedMapEncoder: 2 convs + GAP + linear
    c["conv1_w"] = w((cfg["conv1_ch"], C_in, 3, 3))
    c["conv1_b"] = jnp.zeros((cfg["conv1_ch"],), F32)
    c["conv2_w"] = w((cfg["conv2_ch"], cfg["conv1_ch"], 3, 3))
    c["conv2_b"] = jnp.zeros((cfg["conv2_ch"],), F32)
    c["map_fc_w"] = w((cfg["conv2_ch"], cfg["map_feature_dim"]))
    c["map_fc_b"] = jnp.zeros((cfg["map_feature_dim"],), F32)
    # goal encoder MLP(3 -> goal_feature_dim), ReLU output
    c["goal_w1"] = w((3, 16)); c["goal_b1"] = jnp.zeros((16,), F32)
    c["goal_w2"] = w((16, cfg["goal_feature_dim"]))
    c["goal_b2"] = jnp.zeros((cfg["goal_feature_dim"],), F32)
    # base trajectory decoder MLP: F -> H -> H -> T*3
    c["dec_w1"] = w((F, H)); c["dec_b1"] = jnp.zeros((H,), F32)
    c["dec_w2"] = w((H, H)); c["dec_b2"] = jnp.zeros((H,), F32)
    c["dec_w3"] = w((H, T * 3)); c["dec_b3"] = jnp.zeros((T * 3,), F32)
    # EC branch: GRU(3 -> R), projection, EC decoder MLP
    c["gru_wih"] = w((3, 3 * R)); c["gru_bih"] = jnp.zeros((3 * R,), F32)
    c["gru_whh"] = w((R, 3 * R)); c["gru_bhh"] = jnp.zeros((3 * R,), F32)
    c["ec_proj_w"] = w((R, cfg["ec_feature_dim"]))
    c["ec_proj_b"] = jnp.zeros((cfg["ec_feature_dim"],), F32)
    Fec = F + cfg["ec_feature_dim"]
    c["ec_w1"] = w((Fec, H)); c["ec_b1"] = jnp.zeros((H,), F32)
    c["ec_w2"] = w((H, T * 3)); c["ec_b2"] = jnp.zeros((T * 3,), F32)
    # weights_scaling buffer (unused in forward, kept for parity)
    c["weights_scaling"] = jnp.array([1.0, 1.0, 1.0], F32)
    return c


def pack_weights(p):
    """One-time packing of all weights / constants into a [664,128] f32 slab."""
    cfg = CFG
    B, A = cfg["batch_size"], cfg["num_other_agents"]
    MF, GF = cfg["map_feature_dim"], cfg["goal_feature_dim"]
    R = cfg["ec_rnn_dim"]
    slab = jnp.zeros((_SLAB_ROWS, 128), F32)

    def put(slab, name, mat):
        off, rows = _LAYOUT[name]
        mat = jnp.asarray(mat, F32)
        if mat.ndim == 1:
            mat = mat[None, :]
        r, c = mat.shape
        assert r <= rows and c <= 128, name
        return slab.at[off:off + r, :c].set(mat)

    slab = put(slab, "w1", _pt_conv_weight_to_matmul(p["conv1_w"]))
    slab = put(slab, "b1", p["conv1_b"])
    slab = put(slab, "w2", _pt_conv_weight_to_matmul(p["conv2_w"]))
    slab = put(slab, "b2", p["conv2_b"])
    slab = put(slab, "map_fc_w", p["map_fc_w"])
    slab = put(slab, "map_fc_b", p["map_fc_b"])
    slab = put(slab, "goal_w1", p["goal_w1"])
    slab = put(slab, "goal_b1", p["goal_b1"])
    slab = put(slab, "goal_w2", p["goal_w2"])
    slab = put(slab, "goal_b2", p["goal_b2"])
    # merged (concat-free) first layers of the dec / EC decoders
    slab = put(slab, "mg_map",
               jnp.concatenate([p["dec_w1"][:MF], p["ec_w1"][:MF]], axis=1))
    slab = put(slab, "mg_goal",
               jnp.concatenate([p["dec_w1"][MF:], p["ec_w1"][MF:MF + GF]], axis=1))
    slab = put(slab, "dec_b1", p["dec_b1"])
    slab = put(slab, "dec_w2", p["dec_w2"])
    slab = put(slab, "dec_b2", p["dec_b2"])
    slab = put(slab, "dec_w3", p["dec_w3"])
    slab = put(slab, "dec_b3", p["dec_b3"])
    slab = put(slab, "gru_wih", p["gru_wih"])
    # fold b_hh(r,z) into the precomputed input-gate bias (b_hh(n) stays out)
    bi_fold = p["gru_bih"] + jnp.concatenate(
        [p["gru_bhh"][:2 * R], jnp.zeros((R,), F32)])
    slab = put(slab, "gru_bi", bi_fold)
    slab = put(slab, "gru_whh", p["gru_whh"])
    slab = put(slab, "gru_bhn", p["gru_bhh"][2 * R:])
    slab = put(slab, "ecp_w", p["ec_proj_w"])
    slab = put(slab, "ecp_b", p["ec_proj_b"])
    slab = put(slab, "ec_e1e", p["ec_w1"][MF + GF:])
    slab = put(slab, "ec_b1", p["ec_b1"])
    slab = put(slab, "ec_w2", p["ec_w2"])
    slab = put(slab, "ec_b2", p["ec_b2"])
    # 0/1 replication matrix: EC row n <- batch n // A (zero rows for padding)
    rep = ((jnp.arange(NP)[:, None] // A) == jnp.arange(B)[None, :])
    rep = jnp.where(jnp.arange(NP)[:, None] < B * A, rep, False).astype(F32)
    slab = put(slab, "rep", rep)
    return slab


# ------------------------------- forward pass -------------------------------

def rasterized_ec_forward(w_slab, data_batch):
    cfg = CFG
    B = cfg["batch_size"]
    assert data_batch["image"].shape[0] == B
    Cin = cfg["image_shape"][0]
    T = cfg["future_num_frames"]
    A = cfg["num_other_agents"]

    # conv1 im2col (3x3, stride 1, pad 1); rows reordered (b, h%2, w%2, h//2,
    # w//2) so the in-kernel stride-2 conv2 taps are contiguous 64-row windows.
    x = jnp.transpose(data_batch["image"].astype(F32), (0, 2, 3, 1))     # NHWC
    xp = jnp.pad(x, ((0, 0), (1, 1), (1, 1), (0, 0)))
    taps = [xp[:, i:i + 16, j:j + 16, :] for i in range(3) for j in range(3)]
    col = jnp.stack(taps, axis=3).reshape(B, 16, 16, 9 * Cin)
    col = col.reshape(B, 8, 2, 8, 2, 9 * Cin)
    col = col.transpose(0, 2, 4, 1, 3, 5).reshape(B * 256, 9 * Cin)
    col1 = jnp.pad(col, ((0, 0), (0, KPAD - 9 * Cin))).astype(BF16)

    # goal state: last available frame of the target trajectory
    target_traj = jnp.concatenate(
        (data_batch["target_positions"], data_batch["target_yaws"]), axis=-1)
    goal_inds = get_last_available_index(data_batch["target_availabilities"])
    idx = jnp.broadcast_to(goal_inds[:, None, None], (B, 1, 3))
    goal_state = jnp.take_along_axis(target_traj, idx, axis=1)[:, 0, :]

    # TODO(synk): dynamics are disabled (dynamics.type = None) -> curr_states
    # is None and no 'controls' output, matching that configuration path.

    # ego-conditioning trajectories, time-major, padded to NP agent rows
    cond_traj = jnp.concatenate(
        (data_batch["all_other_agents_future_positions"],
         data_batch["all_other_agents_future_yaws"]), axis=-1)           # [B,A,T,3]
    cond_flat = cond_traj.reshape(B * A, T, 3)
    cond_pad = jnp.zeros((NP, T, 3), F32).at[:B * A].set(cond_flat)
    cond_tm = jnp.transpose(cond_pad, (1, 0, 2)).reshape(T * NP, 3)

    # single small lane-dense aux slab: GRU inputs + goal state
    aux = jnp.zeros((T * NP + 8, 128), F32)
    aux = aux.at[:T * NP, :3].set(cond_tm)
    aux = aux.at[T * NP:T * NP + B, :3].set(goal_state)

    out = pl.pallas_call(
        _fused_kernel,
        out_shape=jax.ShapeDtypeStruct((16, 128), F32),
        in_specs=[pl.BlockSpec(memory_space=VMEM)] * 3,
        out_specs=pl.BlockSpec(memory_space=VMEM),
        scratch_shapes=[pltpu.VMEM((B, 256, 128), F32)],
    )(col1, w_slab, aux)

    traj = out[:B, :T * 3].reshape(B, T, 3)
    ec_traj = out[8:8 + B * A, :T * 3].reshape(B, A, T, 3)
    return {
        "trajectories": traj,
        "predictions": {"positions": traj[:, :, :2], "yaws": traj[:, :, 2:3]},
        "cond_traj": cond_traj,
        "cond_availability": data_batch["all_other_agents_future_availability"],
        "EC_trajectories": ec_traj,
    }


# ----------------------------------- main ------------------------------------

if __name__ == "__main__":
    key = jax.random.PRNGKey(0)
    k_params, k_img, k_tp, k_ty, k_op, k_oy = jax.random.split(key, 6)

    params = init_params(k_params)
    w_slab = pack_weights(params)          # one-time packing, outside jit

    B = CFG["batch_size"]
    C, H, W = CFG["image_shape"]
    T = CFG["future_num_frames"]
    A = CFG["num_other_agents"]

    target_avail = jnp.ones((B, T), F32).at[1, -2:].set(0.0)
    other_avail = jnp.ones((B, A, T), F32).at[0, 1, -3:].set(0.0)

    data_batch = {
        "image": jax.random.uniform(k_img, (B, C, H, W), F32),
        "target_positions": jax.random.normal(k_tp, (B, T, 2), F32),
        "target_yaws": 0.1 * jax.random.normal(k_ty, (B, T, 1), F32),
        "target_availabilities": target_avail,
        "all_other_agents_future_positions":
            jax.random.normal(k_op, (B, A, T, 2), F32),
        "all_other_agents_future_yaws":
            0.1 * jax.random.normal(k_oy, (B, A, T, 1), F32),
        "all_other_agents_future_availability": other_avail,
    }

    fwd = jax.jit(rasterized_ec_forward)
    out = fwd(w_slab, data_batch)
    jax.block_until_ready(out)

    assert out["trajectories"].shape == (B, T, 3)
    assert out["predictions"]["positions"].shape == (B, T, 2)
    assert out["predictions"]["yaws"].shape == (B, T, 1)
    assert out["EC_trajectories"].shape == (B, A, T, 3)
    assert out["cond_traj"].shape == (B, A, T, 3)
    assert bool(jnp.all(jnp.isfinite(out["trajectories"])))
    assert bool(jnp.all(jnp.isfinite(out["EC_trajectories"])))
    print("KERNEL_OK")
</pallas_src>

<mosaic_0001>
module attributes {stable_mosaic.version = 11 : i64} {
  func.func @_fused_kernel(%arg0: memref<512x128xbf16, #tpu.memory_space<vmem>>, %arg1: memref<664x128xf32, #tpu.memory_space<vmem>>, %arg2: memref<72x128xf32, #tpu.memory_space<vmem>>, %arg3: memref<16x128xf32, #tpu.memory_space<vmem>>, %arg4: memref<2x256x128xf32, #tpu.memory_space<vmem>>) attributes {dimension_semantics = [], scalar_prefetch = 0 : i64, scratch_operands = 1 : i64, tpu.core_type = #tpu.core_type<tc>} {
    %c0 = arith.constant 0 : index
    %c0_0 = arith.constant 0 : index
    %0 = vector.load %arg1[%c0, %c0_0] : memref<664x128xf32, #tpu.memory_space<vmem>>, vector<128x128xf32>
    %1 = arith.truncf %0 : vector<128x128xf32> to vector<128x128xbf16>
    %c128 = arith.constant 128 : index
    %c0_1 = arith.constant 0 : index
    %2 = vector.load %arg1[%c128, %c0_1] : memref<664x128xf32, #tpu.memory_space<vmem>>, vector<8x128xf32>
    %3 = vector.extract_strided_slice %2 {offsets = [0, 0], sizes = [1, 128], strides = [1, 1]} : vector<8x128xf32> to vector<1x128xf32>
    %c0_2 = arith.constant 0 : index
    %c0_3 = arith.constant 0 : index
    %4 = vector.load %arg0[%c0_2, %c0_3] : memref<512x128xbf16, #tpu.memory_space<vmem>>, vector<512x128xbf16>
    %cst = arith.constant dense<0.000000e+00> : vector<512x128xf32>
    %5 = tpu.matmul %4, %1, %cst {dimension_numbers = #tpu.dot_dimension_numbers<[1], [0], [0], [1], [0, 0, 1, 1], [], []>} : vector<512x128xbf16>, vector<128x128xbf16>, vector<512x128xf32> -> vector<512x128xf32>
    %6 = vector.broadcast %3 : vector<1x128xf32> to vector<512x128xf32>
    %7 = arith.addf %5, %6 : vector<512x128xf32>
    %cst_4 = arith.constant 0.000000e+00 : f32
    %8 = vector.broadcast %cst_4 : f32 to vector<512x128xf32>
    %9 = arith.maximumf %7, %8 : vector<512x128xf32>
    %10 = vector.shape_cast %9 : vector<512x128xf32> to vector<2x256x128xf32>
    %c0_5 = arith.constant 0 : index
    %c0_6 = arith.constant 0 : index
    %c0_7 = arith.constant 0 : index
    %11 = vector.load %arg4[%c0_5, %c0_6, %c0_7] : memref<2x256x128xf32, #tpu.memory_space<vmem>>, vector<2x256x128xf32>
    tpu.vector_store %arg4[%c0_5, %c0_6, %c0_7], %10 {strides = array<i32>} : memref<2x256x128xf32, #tpu.memory_space<vmem>>, vector<2x256x128xf32>,
    %12 = tpu.iota {dimensions = array<i32: 0>} : vector<64x1xi32>
    %c8_i32 = arith.constant 8 : i32
    %13 = vector.broadcast %c8_i32 : i32 to vector<64x1xi32>
    %14 = arith.cmpi sge, %12, %13 : vector<64x1xi32>
    %15 = arith.extui %14 : vector<64x1xi1> to vector<64x1xi32>
    %16 = arith.sitofp %15 : vector<64x1xi32> to vector<64x1xf32>
    %c8_i32_8 = arith.constant 8 : i32
    %c0_i32 = arith.constant 0 : i32
    %17 = arith.cmpi eq, %c8_i32_8, %c0_i32 : i32
    %c1_i32 = arith.constant 1 : i32
    %18 = arith.select %17, %c1_i32, %c8_i32_8 : i32
    %19 = vector.broadcast %18 : i32 to vector<64x1xi32>
    %20 = arith.remsi %12, %19 : vector<64x1xi32>
    %c0_i32_9 = arith.constant 0 : i32
    %21 = vector.broadcast %c0_i32_9 : i32 to vector<64x1xi32>
    %22 = arith.cmpi ne, %20, %21 : vector<64x1xi32>
    %c0_i32_10 = arith.constant 0 : i32
    %23 = vector.broadcast %c0_i32_10 : i32 to vector<64x1xi32>
    %24 = arith.cmpi slt, %20, %23 : vector<64x1xi32>
    %c0_i32_11 = arith.constant 0 : i32
    %25 = arith.cmpi slt, %18, %c0_i32_11 : i32
    %26 = vector.broadcast %25 : i1 to vector<64x1xi1>
    %27 = vector.broadcast %26 : vector<64x1xi1> to vector<64x1xi1>
    %28 = arith.xori %24, %27 : vector<64x1xi1>
    %29 = arith.andi %28, %22 : vector<64x1xi1>
    %30 = vector.broadcast %18 : i32 to vector<64x1xi32>
    %31 = arith.addi %20, %30 : vector<64x1xi32>
    %32 = arith.select %29, %31, %20 : vector<64x1xi1>, vector<64x1xi32>
    %c0_i32_12 = arith.constant 0 : i32
    %33 = vector.broadcast %c0_i32_12 : i32 to vector<64x1xi32>
    %34 = arith.cmpi sgt, %32, %33 : vector<64x1xi32>
    %35 = arith.extui %34 : vector<64x1xi1> to vector<64x1xi32>
    %36 = arith.sitofp %35 : vector<64x1xi32> to vector<64x1xf32>
    %cst_13 = arith.constant 0.000000e+00 : f32
    %37 = vector.broadcast %cst_13 : f32 to vector<128x128xf32>
    %c0_14 = arith.constant 0 : index
    %c183 = arith.constant 183 : index
    %c0_15 = arith.constant 0 : index
    %38 = vector.load %arg4[%c0_14, %c183, %c0_15] : memref<2x256x128xf32, #tpu.memory_space<vmem>>, vector<2x64x128xf32>
    %39 = arith.mulf %16, %36 : vector<64x1xf32>
    %40 = vector.shape_cast %39 : vector<64x1xf32> to vector<1x64x1xf32>
    %41 = vector.broadcast %40 : vector<1x64x1xf32> to vector<2x64x128xf32>
    %42 = arith.mulf %38, %41 : vector<2x64x128xf32>
    %c136 = arith.constant 136 : index
    %c0_16 = arith.constant 0 : index
    %43 = vector.load %arg1[%c136, %c0_16] : memref<664x128xf32, #tpu.memory_space<vmem>>, vector<128x128xf32>
    %44 = vector.shape_cast %42 : vector<2x64x128xf32> to vector<128x128xf32>
    %cst_17 = arith.constant dense<0.000000e+00> : vector<128x128xf32>
    %45 = tpu.matmul %44, %43, %cst_17 {dimension_numbers = #tpu.dot_dimension_numbers<[1], [0], [0], [1], [0, 0, 1, 1], [], []>} : vector<128x128xf32>, vector<128x128xf32>, vector<128x128xf32> -> vector<128x128xf32>
    %46 = arith.addf %37, %45 : vector<128x128xf32>
    %c0_18 = arith.constant 0 : index
    %c120 = arith.constant 120 : index
    %c0_19 = arith.constant 0 : index
    %47 = vector.load %arg4[%c0_18, %c120, %c0_19] : memref<2x256x128xf32, #tpu.memory_space<vmem>>, vector<2x64x128xf32>
    %48 = vector.shape_cast %16 : vector<64x1xf32> to vector<1x64x1xf32>
    %49 = vector.broadcast %48 : vector<1x64x1xf32> to vector<2x64x128xf32>
    %50 = arith.mulf %47, %49 : vector<2x64x128xf32>
    %c144 = arith.constant 144 : index
    %c0_20 = arith.constant 0 : index
    %51 = vector.load %arg1[%c144, %c0_20] : memref<664x128xf32, #tpu.memory_space<vmem>>, vector<128x128xf32>
    %52 = vector.shape_cast %50 : vector<2x64x128xf32> to vector<128x128xf32>
    %cst_21 = arith.constant dense<0.000000e+00> : vector<128x128xf32>
    %53 = tpu.matmul %52, %51, %cst_21 {dimension_numbers = #tpu.dot_dimension_numbers<[1], [0], [0], [1], [0, 0, 1, 1], [], []>} : vector<128x128xf32>, vector<128x128xf32>, vector<128x128xf32> -> vector<128x128xf32>
    %54 = arith.addf %46, %53 : vector<128x128xf32>
    %c0_22 = arith.constant 0 : index
    %c184 = arith.constant 184 : index
    %c0_23 = arith.constant 0 : index
    %55 = vector.load %arg4[%c0_22, %c184, %c0_23] : memref<2x256x128xf32, #tpu.memory_space<vmem>>, vector<2x64x128xf32>
    %56 = vector.shape_cast %16 : vector<64x1xf32> to vector<1x64x1xf32>
    %57 = vector.broadcast %56 : vector<1x64x1xf32> to vector<2x64x128xf32>
    %58 = arith.mulf %55, %57 : vector<2x64x128xf32>
    %c152 = arith.constant 152 : index
    %c0_24 = arith.constant 0 : index
    %59 = vector.load %arg1[%c152, %c0_24] : memref<664x128xf32, #tpu.memory_space<vmem>>, vector<128x128xf32>
    %60 = vector.shape_cast %58 : vector<2x64x128xf32> to vector<128x128xf32>
    %cst_25 = arith.constant dense<0.000000e+00> : vector<128x128xf32>
    %61 = tpu.matmul %60, %59, %cst_25 {dimension_numbers = #tpu.dot_dimension_numbers<[1], [0], [0], [1], [0, 0, 1, 1], [], []>} : vector<128x128xf32>, vector<128x128xf32>, vector<128x128xf32> -> vector<128x128xf32>
    %62 = arith.addf %54, %61 : vector<128x128xf32>
    %c0_26 = arith.constant 0 : index
    %c63 = arith.constant 63 : index
    %c0_27 = arith.constant 0 : index
    %63 = vector.load %arg4[%c0_26, %c63, %c0_27] : memref<2x256x128xf32, #tpu.memory_space<vmem>>, vector<2x64x128xf32>
    %64 = vector.shape_cast %36 : vector<64x1xf32> to vector<1x64x1xf32>
    %65 = vector.broadcast %64 : vector<1x64x1xf32> to vector<2x64x128xf32>
    %66 = arith.mulf %63, %65 : vector<2x64x128xf32>
    %c160 = arith.constant 160 : index
    %c0_28 = arith.constant 0 : index
    %67 = vector.load %arg1[%c160, %c0_28] : memref<664x128xf32, #tpu.memory_space<vmem>>, vector<128x128xf32>
    %68 = vector.shape_cast %66 : vector<2x64x128xf32> to vector<128x128xf32>
    %cst_29 = arith.constant dense<0.000000e+00> : vector<128x128xf32>
    %69 = tpu.matmul %68, %67, %cst_29 {dimension_numbers = #tpu.dot_dimension_numbers<[1], [0], [0], [1], [0, 0, 1, 1], [], []>} : vector<128x128xf32>, vector<128x128xf32>, vector<128x128xf32> -> vector<128x128xf32>
    %70 = arith.addf %62, %69 : vector<128x128xf32>
    %c0_30 = arith.constant 0 : index
    %c0_31 = arith.constant 0 : index
    %c0_32 = arith.constant 0 : index
    %71 = vector.load %arg4[%c0_30, %c0_31, %c0_32] : memref<2x256x128xf32, #tpu.memory_space<vmem>>, vector<2x64x128xf32>
    %c168 = arith.constant 168 : index
    %c0_33 = arith.constant 0 : index
    %72 = vector.load %arg1[%c168, %c0_33] : memref<664x128xf32, #tpu.memory_space<vmem>>, vector<128x128xf32>
    %73 = vector.shape_cast %71 : vector<2x64x128xf32> to vector<128x128xf32>
    %cst_34 = arith.constant dense<0.000000e+00> : vector<128x128xf32>
    %74 = tpu.matmul %73, %72, %cst_34 {dimension_numbers = #tpu.dot_dimension_numbers<[1], [0], [0], [1], [0, 0, 1, 1], [], []>} : vector<128x128xf32>, vector<128x128xf32>, vector<128x128xf32> -> vector<128x128xf32>
    %75 = arith.addf %70, %74 : vector<128x128xf32>
    %c0_35 = arith.constant 0 : index
    %c64 = arith.constant 64 : index
    %c0_36 = arith.constant 0 : index
    %76 = vector.load %arg4[%c0_35, %c64, %c0_36] : memref<2x256x128xf32, #tpu.memory_space<vmem>>, vector<2x64x128xf32>
    %c176 = arith.constant 176 : index
    %c0_37 = arith.constant 0 : index
    %77 = vector.load %arg1[%c176, %c0_37] : memref<664x128xf32, #tpu.memory_space<vmem>>, vector<128x128xf32>
    %78 = vector.shape_cast %76 : vector<2x64x128xf32> to vector<128x128xf32>
    %cst_38 = arith.constant dense<0.000000e+00> : vector<128x128xf32>
    %79 = tpu.matmul %78, %77, %cst_38 {dimension_numbers = #tpu.dot_dimension_numbers<[1], [0], [0], [1], [0, 0, 1, 1], [], []>} : vector<128x128xf32>, vector<128x128xf32>, vector<128x128xf32> -> vector<128x128xf32>
    %80 = arith.addf %75, %79 : vector<128x128xf32>
    %c0_39 = arith.constant 0 : index
    %c191 = arith.constant 191 : index
    %c0_40 = arith.constant 0 : index
    %81 = vector.load %arg4[%c0_39, %c191, %c0_40] : memref<2x256x128xf32, #tpu.memory_space<vmem>>, vector<2x64x128xf32>
    %82 = vector.shape_cast %36 : vector<64x1xf32> to vector<1x64x1xf32>
    %83 = vector.broadcast %82 : vector<1x64x1xf32> to vector<2x64x128xf32>
    %84 = arith.mulf %81, %83 : vector<2x64x128xf32>
    %c184_41 = arith.constant 184 : index
    %c0_42 = arith.constant 0 : index
    %85 = vector.load %arg1[%c184_41, %c0_42] : memref<664x128xf32, #tpu.memory_space<vmem>>, vector<128x128xf32>
    %86 = vector.shape_cast %84 : vector<2x64x128xf32> to vector<128x128xf32>
    %cst_43 = arith.constant dense<0.000000e+00> : vector<128x128xf32>
    %87 = tpu.matmul %86, %85, %cst_43 {dimension_numbers = #tpu.dot_dimension_numbers<[1], [0], [0], [1], [0, 0, 1, 1], [], []>} : vector<128x128xf32>, vector<128x128xf32>, vector<128x128xf32> -> vector<128x128xf32>
    %88 = arith.addf %80, %87 : vector<128x128xf32>
    %c0_44 = arith.constant 0 : index
    %c128_45 = arith.constant 128 : index
    %c0_46 = arith.constant 0 : index
    %89 = vector.load %arg4[%c0_44, %c128_45, %c0_46] : memref<2x256x128xf32, #tpu.memory_space<vmem>>, vector<2x64x128xf32>
    %c192 = arith.constant 192 : index
    %c0_47 = arith.constant 0 : index
    %90 = vector.load %arg1[%c192, %c0_47] : memref<664x128xf32, #tpu.memory_space<vmem>>, vector<128x128xf32>
    %91 = vector.shape_cast %89 : vector<2x64x128xf32> to vector<128x128xf32>
    %cst_48 = arith.constant dense<0.000000e+00> : vector<128x128xf32>
    %92 = tpu.matmul %91, %90, %cst_48 {dimension_numbers = #tpu.dot_dimension_numbers<[1], [0], [0], [1], [0, 0, 1, 1], [], []>} : vector<128x128xf32>, vector<128x128xf32>, vector<128x128xf32> -> vector<128x128xf32>
    %93 = arith.addf %88, %92 : vector<128x128xf32>
    %c0_49 = arith.constant 0 : index
    %c192_50 = arith.constant 192 : index
    %c0_51 = arith.constant 0 : index
    %94 = vector.load %arg4[%c0_49, %c192_50, %c0_51] : memref<2x256x128xf32, #tpu.memory_space<vmem>>, vector<2x64x128xf32>
    %c200 = arith.constant 200 : index
    %c0_52 = arith.constant 0 : index
    %95 = vector.load %arg1[%c200, %c0_52] : memref<664x128xf32, #tpu.memory_space<vmem>>, vector<128x128xf32>
    %96 = vector.shape_cast %94 : vector<2x64x128xf32> to vector<128x128xf32>
    %cst_53 = arith.constant dense<0.000000e+00> : vector<128x128xf32>
    %97 = tpu.matmul %96, %95, %cst_53 {dimension_numbers = #tpu.dot_dimension_numbers<[1], [0], [0], [1], [0, 0, 1, 1], [], []>} : vector<128x128xf32>, vector<128x128xf32>, vector<128x128xf32> -> vector<128x128xf32>
    %98 = arith.addf %93, %97 : vector<128x128xf32>
    %c328 = arith.constant 328 : index
    %c0_54 = arith.constant 0 : index
    %99 = vector.load %arg1[%c328, %c0_54] : memref<664x128xf32, #tpu.memory_space<vmem>>, vector<8x128xf32>
    %100 = vector.extract_strided_slice %99 {offsets = [0, 0], sizes = [1, 128], strides = [1, 1]} : vector<8x128xf32> to vector<1x128xf32>
    %101 = vector.broadcast %100 : vector<1x128xf32> to vector<128x128xf32>
    %102 = arith.addf %98, %101 : vector<128x128xf32>
    %cst_55 = arith.constant 0.000000e+00 : f32
    %103 = vector.broadcast %cst_55 : f32 to vector<128x128xf32>
    %104 = arith.maximumf %102, %103 : vector<128x128xf32>
    %105 = vector.shape_cast %104 : vector<128x128xf32> to vector<2x64x128xf32>
    %cst_56 = arith.constant dense<0.000000e+00> : vector<2x128xf32>
    %106 = vector.multi_reduction <add>, %105, %cst_56 [1] : vector<2x64x128xf32> to vector<2x128xf32>
    %cst_57 = arith.constant 1.562500e-02 : f32
    %107 = vector.broadcast %cst_57 : f32 to vector<2x128xf32>
    %108 = arith.mulf %106, %107 : vector<2x128xf32>
    %109 = vector.extract_strided_slice %108 {offsets = [0, 0], sizes = [2, 16], strides = [1, 1]} : vector<2x128xf32> to vector<2x16xf32>
    %c336 = arith.constant 336 : index
    %c0_58 = arith.constant 0 : index
    %110 = vector.load %arg1[%c336, %c0_58] : memref<664x128xf32, #tpu.memory_space<vmem>>, vector<16x128xf32>
    %111 = vector.extract_strided_slice %110 {offsets = [0, 0], sizes = [16, 32], strides = [1, 1]} : vector<16x128xf32> to vector<16x32xf32>
    %cst_59 = arith.constant dense<0.000000e+00> : vector<2x32xf32>
    %112 = tpu.matmul %109, %111, %cst_59 {dimension_numbers = #tpu.dot_dimension_numbers<[1], [0], [0], [1], [0, 0, 1, 1], [], []>} : vector<2x16xf32>, vector<16x32xf32>, vector<2x32xf32> -> vector<2x32xf32>
    %c352 = arith.constant 352 : index
    %c0_60 = arith.constant 0 : index
    %113 = vector.load %arg1[%c352, %c0_60] : memref<664x128xf32, #tpu.memory_space<vmem>>, vector<8x128xf32>
    %114 = vector.extract_strided_slice %113 {offsets = [0, 0], sizes = [1, 32], strides = [1, 1]} : vector<8x128xf32> to vector<1x32xf32>
    %115 = vector.broadcast %114 : vector<1x32xf32> to vector<2x32xf32>
    %116 = arith.addf %112, %115 : vector<2x32xf32>
    %c64_61 = arith.constant 64 : index
    %c0_62 = arith.constant 0 : index
    %117 = vector.load %arg2[%c64_61, %c0_62] : memref<72x128xf32, #tpu.memory_space<vmem>>, vector<8x128xf32>
    %118 = vector.extract_strided_slice %117 {offsets = [0, 0], sizes = [2, 3], strides = [1, 1]} : vector<8x128xf32> to vector<2x3xf32>
    %c360 = arith.constant 360 : index
    %c0_63 = arith.constant 0 : index
    %119 = vector.load %arg1[%c360, %c0_63] : memref<664x128xf32, #tpu.memory_space<vmem>>, vector<8x128xf32>
    %120 = vector.extract_strided_slice %119 {offsets = [0, 0], sizes = [3, 16], strides = [1, 1]} : vector<8x128xf32> to vector<3x16xf32>
    %cst_64 = arith.constant dense<0.000000e+00> : vector<2x16xf32>
    %121 = tpu.matmul %118, %120, %cst_64 {dimension_numbers = #tpu.dot_dimension_numbers<[1], [0], [0], [1], [0, 0, 1, 1], [], []>} : vector<2x3xf32>, vector<3x16xf32>, vector<2x16xf32> -> vector<2x16xf32>
    %c368 = arith.constant 368 : index
    %c0_65 = arith.constant 0 : index
    %122 = vector.load %arg1[%c368, %c0_65] : memref<664x128xf32, #tpu.memory_space<vmem>>, vector<8x128xf32>
    %123 = vector.extract_strided_slice %122 {offsets = [0, 0], sizes = [1, 16], strides = [1, 1]} : vector<8x128xf32> to vector<1x16xf32>
    %124 = vector.broadcast %123 : vector<1x16xf32> to vector<2x16xf32>
    %125 = arith.addf %121, %124 : vector<2x16xf32>
    %cst_66 = arith.constant 0.000000e+00 : f32
    %126 = vector.broadcast %cst_66 : f32 to vector<2x16xf32>
    %127 = arith.maximumf %125, %126 : vector<2x16xf32>
    %c376 = arith.constant 376 : index
    %c0_67 = arith.constant 0 : index
    %128 = vector.load %arg1[%c376, %c0_67] : memref<664x128xf32, #tpu.memory_space<vmem>>, vector<16x128xf32>
    %129 = vector.extract_strided_slice %128 {offsets = [0, 0], sizes = [16, 8], strides = [1, 1]} : vector<16x128xf32> to vector<16x8xf32>
    %cst_68 = arith.constant dense<0.000000e+00> : vector<2x8xf32>
    %130 = tpu.matmul %127, %129, %cst_68 {dimension_numbers = #tpu.dot_dimension_numbers<[1], [0], [0], [1], [0, 0, 1, 1], [], []>} : vector<2x16xf32>, vector<16x8xf32>, vector<2x8xf32> -> vector<2x8xf32>
    %c392 = arith.constant 392 : index
    %c0_69 = arith.constant 0 : index
    %131 = vector.load %arg1[%c392, %c0_69] : memref<664x128xf32, #tpu.memory_space<vmem>>, vector<8x128xf32>
    %132 = vector.extract_strided_slice %131 {offsets = [0, 0], sizes = [1, 8], strides = [1, 1]} : vector<8x128xf32> to vector<1x8xf32>
    %133 = vector.broadcast %132 : vector<1x8xf32> to vector<2x8xf32>
    %134 = arith.addf %130, %133 : vector<2x8xf32>
    %cst_70 = arith.constant 0.000000e+00 : f32
    %135 = vector.broadcast %cst_70 : f32 to vector<2x8xf32>
    %136 = arith.maximumf %134, %135 : vector<2x8xf32>
    %c400 = arith.constant 400 : index
    %c0_71 = arith.constant 0 : index
    %137 = vector.load %arg1[%c400, %c0_71] : memref<664x128xf32, #tpu.memory_space<vmem>>, vector<32x128xf32>
    %138 = vector.extract_strided_slice %137 {offsets = [0, 0], sizes = [32, 64], strides = [1, 1]} : vector<32x128xf32> to vector<32x64xf32>
    %cst_72 = arith.constant dense<0.000000e+00> : vector<2x64xf32>
    %139 = tpu.matmul %116, %138, %cst_72 {dimension_numbers = #tpu.dot_dimension_numbers<[1], [0], [0], [1], [0, 0, 1, 1], [], []>} : vector<2x32xf32>, vector<32x64xf32>, vector<2x64xf32> -> vector<2x64xf32>
    %c432 = arith.constant 432 : index
    %c0_73 = arith.constant 0 : index
    %140 = vector.load %arg1[%c432, %c0_73] : memref<664x128xf32, #tpu.memory_space<vmem>>, vector<8x128xf32>
    %141 = vector.extract_strided_slice %140 {offsets = [0, 0], sizes = [8, 64], strides = [1, 1]} : vector<8x128xf32> to vector<8x64xf32>
    %cst_74 = arith.constant dense<0.000000e+00> : vector<2x64xf32>
    %142 = tpu.matmul %136, %141, %cst_74 {dimension_numbers = #tpu.dot_dimension_numbers<[1], [0], [0], [1], [0, 0, 1, 1], [], []>} : vector<2x8xf32>, vector<8x64xf32>, vector<2x64xf32> -> vector<2x64xf32>
    %143 = arith.addf %139, %142 : vector<2x64xf32>
    %144 = vector.extract_strided_slice %143 {offsets = [0, 0], sizes = [2, 32], strides = [1, 1]} : vector<2x64xf32> to vector<2x32xf32>
    %c440 = arith.constant 440 : index
    %c0_75 = arith.constant 0 : index
    %145 = vector.load %arg1[%c440, %c0_75] : memref<664x128xf32, #tpu.memory_space<vmem>>, vector<8x128xf32>
    %146 = vector.extract_strided_slice %145 {offsets = [0, 0], sizes = [1, 32], strides = [1, 1]} : vector<8x128xf32> to vector<1x32xf32>
    %147 = vector.broadcast %146 : vector<1x32xf32> to vector<2x32xf32>
    %148 = arith.addf %144, %147 : vector<2x32xf32>
    %cst_76 = arith.constant 0.000000e+00 : f32
    %149 = vector.broadcast %cst_76 : f32 to vector<2x32xf32>
    %150 = arith.maximumf %148, %149 : vector<2x32xf32>
    %151 = vector.extract_strided_slice %143 {offsets = [0, 32], sizes = [2, 32], strides = [1, 1]} : vector<2x64xf32> to vector<2x32xf32>
    %c448 = arith.constant 448 : index
    %c0_77 = arith.constant 0 : index
    %152 = vector.load %arg1[%c448, %c0_77] : memref<664x128xf32, #tpu.memory_space<vmem>>, vector<32x128xf32>
    %153 = vector.extract_strided_slice %152 {offsets = [0, 0], sizes = [32, 32], strides = [1, 1]} : vector<32x128xf32> to vector<32x32xf32>
    %cst_78 = arith.constant dense<0.000000e+00> : vector<2x32xf32>
    %154 = tpu.matmul %150, %153, %cst_78 {dimension_numbers = #tpu.dot_dimension_numbers<[1], [0], [0], [1], [0, 0, 1, 1], [], []>} : vector<2x32xf32>, vector<32x32xf32>, vector<2x32xf32> -> vector<2x32xf32>
    %c480 = arith.constant 480 : index
    %c0_79 = arith.constant 0 : index
    %155 = vector.load %arg1[%c480, %c0_79] : memref<664x128xf32, #tpu.memory_space<vmem>>, vector<8x128xf32>
    %156 = vector.extract_strided_slice %155 {offsets = [0, 0], sizes = [1, 32], strides = [1, 1]} : vector<8x128xf32> to vector<1x32xf32>
    %157 = vector.broadcast %156 : vector<1x32xf32> to vector<2x32xf32>
    %158 = arith.addf %154, %157 : vector<2x32xf32>
    %cst_80 = arith.constant 0.000000e+00 : f32
    %159 = vector.broadcast %cst_80 : f32 to vector<2x32xf32>
    %160 = arith.maximumf %158, %159 : vector<2x32xf32>
    %c488 = arith.constant 488 : index
    %c0_81 = arith.constant 0 : index
    %161 = vector.load %arg1[%c488, %c0_81] : memref<664x128xf32, #tpu.memory_space<vmem>>, vector<32x128xf32>
    %cst_82 = arith.constant dense<0.000000e+00> : vector<2x128xf32>
    %162 = tpu.matmul %160, %161, %cst_82 {dimension_numbers = #tpu.dot_dimension_numbers<[1], [0], [0], [1], [0, 0, 1, 1], [], []>} : vector<2x32xf32>, vector<32x128xf32>, vector<2x128xf32> -> vector<2x128xf32>
    %c520 = arith.constant 520 : index
    %c0_83 = arith.constant 0 : index
    %163 = vector.load %arg1[%c520, %c0_83] : memref<664x128xf32, #tpu.memory_space<vmem>>, vector<8x128xf32>
    %164 = vector.extract_strided_slice %163 {offsets = [0, 0], sizes = [1, 128], strides = [1, 1]} : vector<8x128xf32> to vector<1x128xf32>
    %165 = vector.broadcast %164 : vector<1x128xf32> to vector<2x128xf32>
    %166 = arith.addf %162, %165 : vector<2x128xf32>
    %c0_84 = arith.constant 0 : index
    %c0_85 = arith.constant 0 : index
    %167 = vector.load %arg2[%c0_84, %c0_85] : memref<72x128xf32, #tpu.memory_space<vmem>>, vector<64x128xf32>
    %168 = vector.extract_strided_slice %167 {offsets = [0, 0], sizes = [64, 3], strides = [1, 1]} : vector<64x128xf32> to vector<64x3xf32>
    %c528 = arith.constant 528 : index
    %c0_86 = arith.constant 0 : index
    %169 = vector.load %arg1[%c528, %c0_86] : memref<664x128xf32, #tpu.memory_space<vmem>>, vector<8x128xf32>
    %170 = vector.extract_strided_slice %169 {offsets = [0, 0], sizes = [3, 48], strides = [1, 1]} : vector<8x128xf32> to vector<3x48xf32>
    %cst_87 = arith.constant dense<0.000000e+00> : vector<64x48xf32>
    %171 = tpu.matmul %168, %170, %cst_87 {dimension_numbers = #tpu.dot_dimension_numbers<[1], [0], [0], [1], [0, 0, 1, 1], [], []>} : vector<64x3xf32>, vector<3x48xf32>, vector<64x48xf32> -> vector<64x48xf32>
    %c536 = arith.constant 536 : index
    %c0_88 = arith.constant 0 : index
    %172 = vector.load %arg1[%c536, %c0_88] : memref<664x128xf32, #tpu.memory_space<vmem>>, vector<8x128xf32>
    %173 = vector.extract_strided_slice %172 {offsets = [0, 0], sizes = [1, 48], strides = [1, 1]} : vector<8x128xf32> to vector<1x48xf32>
    %174 = vector.broadcast %173 : vector<1x48xf32> to vector<64x48xf32>
    %175 = arith.addf %171, %174 : vector<64x48xf32>
    %c544 = arith.constant 544 : index
    %c0_89 = arith.constant 0 : index
    %176 = vector.load %arg1[%c544, %c0_89] : memref<664x128xf32, #tpu.memory_space<vmem>>, vector<16x128xf32>
    %177 = vector.extract_strided_slice %176 {offsets = [0, 0], sizes = [16, 48], strides = [1, 1]} : vector<16x128xf32> to vector<16x48xf32>
    %c560 = arith.constant 560 : index
    %c0_90 = arith.constant 0 : index
    %178 = vector.load %arg1[%c560, %c0_90] : memref<664x128xf32, #tpu.memory_space<vmem>>, vector<8x128xf32>
    %179 = vector.extract_strided_slice %178 {offsets = [0, 0], sizes = [1, 16], strides = [1, 1]} : vector<8x128xf32> to vector<1x16xf32>
    %cst_91 = arith.constant 0.000000e+00 : f32
    %180 = vector.broadcast %cst_91 : f32 to vector<8x16xf32>
    %181 = vector.extract_strided_slice %175 {offsets = [0, 0], sizes = [8, 48], strides = [1, 1]} : vector<64x48xf32> to vector<8x48xf32>
    %cst_92 = arith.constant dense<0.000000e+00> : vector<8x48xf32>
    %182 = tpu.matmul %180, %177, %cst_92 {dimension_numbers = #tpu.dot_dimension_numbers<[1], [0], [0], [1], [0, 0, 1, 1], [], []>} : vector<8x16xf32>, vector<16x48xf32>, vector<8x48xf32> -> vector<8x48xf32>
    %183 = vector.extract_strided_slice %181 {offsets = [0, 0], sizes = [8, 16], strides = [1, 1]} : vector<8x48xf32> to vector<8x16xf32>
    %184 = vector.extract_strided_slice %182 {offsets = [0, 0], sizes = [8, 16], strides = [1, 1]} : vector<8x48xf32> to vector<8x16xf32>
    %185 = arith.addf %183, %184 : vector<8x16xf32>
    %186 = arith.negf %185 : vector<8x16xf32>
    %187 = math.exp %186 : vector<8x16xf32>
    %cst_93 = arith.constant 1.000000e+00 : f32
    %188 = vector.broadcast %cst_93 : f32 to vector<8x16xf32>
    %189 = arith.addf %188, %187 : vector<8x16xf32>
    %190 = arith.divf %188, %189 : vector<8x16xf32>
    %191 = vector.extract_strided_slice %181 {offsets = [0, 16], sizes = [8, 16], strides = [1, 1]} : vector<8x48xf32> to vector<8x16xf32>
    %192 = vector.extract_strided_slice %182 {offsets = [0, 16], sizes = [8, 16], strides = [1, 1]} : vector<8x48xf32> to vector<8x16xf32>
    %193 = arith.addf %191, %192 : vector<8x16xf32>
    %194 = arith.negf %193 : vector<8x16xf32>
    %195 = math.exp %194 : vector<8x16xf32>
    %cst_94 = arith.constant 1.000000e+00 : f32
    %196 = vector.broadcast %cst_94 : f32 to vector<8x16xf32>
    %197 = arith.addf %196, %195 : vector<8x16xf32>
    %198 = arith.divf %196, %197 : vector<8x16xf32>
    %199 = vector.extract_strided_slice %181 {offsets = [0, 32], sizes = [8, 16], strides = [1, 1]} : vector<8x48xf32> to vector<8x16xf32>
    %200 = vector.extract_strided_slice %182 {offsets = [0, 32], sizes = [8, 16], strides = [1, 1]} : vector<8x48xf32> to vector<8x16xf32>
    %201 = vector.broadcast %179 : vector<1x16xf32> to vector<8x16xf32>
    %202 = arith.addf %200, %201 : vector<8x16xf32>
    %203 = arith.mulf %190, %202 : vector<8x16xf32>
    %204 = arith.addf %199, %203 : vector<8x16xf32>
    %205 = math.tanh %204 : vector<8x16xf32>
    %cst_95 = arith.constant 1.000000e+00 : f32
    %206 = vector.broadcast %cst_95 : f32 to vector<8x16xf32>
    %207 = arith.subf %206, %198 : vector<8x16xf32>
    %208 = arith.mulf %207, %205 : vector<8x16xf32>
    %209 = arith.mulf %198, %180 : vector<8x16xf32>
    %210 = arith.addf %208, %209 : vector<8x16xf32>
    %211 = vector.extract_strided_slice %175 {offsets = [8, 0], sizes = [8, 48], strides = [1, 1]} : vector<64x48xf32> to vector<8x48xf32>
    %cst_96 = arith.constant dense<0.000000e+00> : vector<8x48xf32>
    %212 = tpu.matmul %210, %177, %cst_96 {dimension_numbers = #tpu.dot_dimension_numbers<[1], [0], [0], [1], [0, 0, 1, 1], [], []>} : vector<8x16xf32>, vector<16x48xf32>, vector<8x48xf32> -> vector<8x48xf32>
    %213 = vector.extract_strided_slice %211 {offsets = [0, 0], sizes = [8, 16], strides = [1, 1]} : vector<8x48xf32> to vector<8x16xf32>
    %214 = vector.extract_strided_slice %212 {offsets = [0, 0], sizes = [8, 16], strides = [1, 1]} : vector<8x48xf32> to vector<8x16xf32>
    %215 = arith.addf %213, %214 : vector<8x16xf32>
    %216 = arith.negf %215 : vector<8x16xf32>
    %217 = math.exp %216 : vector<8x16xf32>
    %cst_97 = arith.constant 1.000000e+00 : f32
    %218 = vector.broadcast %cst_97 : f32 to vector<8x16xf32>
    %219 = arith.addf %218, %217 : vector<8x16xf32>
    %220 = arith.divf %218, %219 : vector<8x16xf32>
    %221 = vector.extract_strided_slice %211 {offsets = [0, 16], sizes = [8, 16], strides = [1, 1]} : vector<8x48xf32> to vector<8x16xf32>
    %222 = vector.extract_strided_slice %212 {offsets = [0, 16], sizes = [8, 16], strides = [1, 1]} : vector<8x48xf32> to vector<8x16xf32>
    %223 = arith.addf %221, %222 : vector<8x16xf32>
    %224 = arith.negf %223 : vector<8x16xf32>
    %225 = math.exp %224 : vector<8x16xf32>
    %cst_98 = arith.constant 1.000000e+00 : f32
    %226 = vector.broadcast %cst_98 : f32 to vector<8x16xf32>
    %227 = arith.addf %226, %225 : vector<8x16xf32>
    %228 = arith.divf %226, %227 : vector<8x16xf32>
    %229 = vector.extract_strided_slice %211 {offsets = [0, 32], sizes = [8, 16], strides = [1, 1]} : vector<8x48xf32> to vector<8x16xf32>
    %230 = vector.extract_strided_slice %212 {offsets = [0, 32], sizes = [8, 16], strides = [1, 1]} : vector<8x48xf32> to vector<8x16xf32>
    %231 = vector.broadcast %179 : vector<1x16xf32> to vector<8x16xf32>
    %232 = arith.addf %230, %231 : vector<8x16xf32>
    %233 = arith.mulf %220, %232 : vector<8x16xf32>
    %234 = arith.addf %229, %233 : vector<8x16xf32>
    %235 = math.tanh %234 : vector<8x16xf32>
    %cst_99 = arith.constant 1.000000e+00 : f32
    %236 = vector.broadcast %cst_99 : f32 to vector<8x16xf32>
    %237 = arith.subf %236, %228 : vector<8x16xf32>
    %238 = arith.mulf %237, %235 : vector<8x16xf32>
    %239 = arith.mulf %228, %210 : vector<8x16xf32>
    %240 = arith.addf %238, %239 : vector<8x16xf32>
    %241 = vector.extract_strided_slice %175 {offsets = [16, 0], sizes = [8, 48], strides = [1, 1]} : vector<64x48xf32> to vector<8x48xf32>
    %cst_100 = arith.constant dense<0.000000e+00> : vector<8x48xf32>
    %242 = tpu.matmul %240, %177, %cst_100 {dimension_numbers = #tpu.dot_dimension_numbers<[1], [0], [0], [1], [0, 0, 1, 1], [], []>} : vector<8x16xf32>, vector<16x48xf32>, vector<8x48xf32> -> vector<8x48xf32>
    %243 = vector.extract_strided_slice %241 {offsets = [0, 0], sizes = [8, 16], strides = [1, 1]} : vector<8x48xf32> to vector<8x16xf32>
    %244 = vector.extract_strided_slice %242 {offsets = [0, 0], sizes = [8, 16], strides = [1, 1]} : vector<8x48xf32> to vector<8x16xf32>
    %245 = arith.addf %243, %244 : vector<8x16xf32>
    %246 = arith.negf %245 : vector<8x16xf32>
    %247 = math.exp %246 : vector<8x16xf32>
    %cst_101 = arith.constant 1.000000e+00 : f32
    %248 = vector.broadcast %cst_101 : f32 to vector<8x16xf32>
    %249 = arith.addf %248, %247 : vector<8x16xf32>
    %250 = arith.divf %248, %249 : vector<8x16xf32>
    %251 = vector.extract_strided_slice %241 {offsets = [0, 16], sizes = [8, 16], strides = [1, 1]} : vector<8x48xf32> to vector<8x16xf32>
    %252 = vector.extract_strided_slice %242 {offsets = [0, 16], sizes = [8, 16], strides = [1, 1]} : vector<8x48xf32> to vector<8x16xf32>
    %253 = arith.addf %251, %252 : vector<8x16xf32>
    %254 = arith.negf %253 : vector<8x16xf32>
    %255 = math.exp %254 : vector<8x16xf32>
    %cst_102 = arith.constant 1.000000e+00 : f32
    %256 = vector.broadcast %cst_102 : f32 to vector<8x16xf32>
    %257 = arith.addf %256, %255 : vector<8x16xf32>
    %258 = arith.divf %256, %257 : vector<8x16xf32>
    %259 = vector.extract_strided_slice %241 {offsets = [0, 32], sizes = [8, 16], strides = [1, 1]} : vector<8x48xf32> to vector<8x16xf32>
    %260 = vector.extract_strided_slice %242 {offsets = [0, 32], sizes = [8, 16], strides = [1, 1]} : vector<8x48xf32> to vector<8x16xf32>
    %261 = vector.broadcast %179 : vector<1x16xf32> to vector<8x16xf32>
    %262 = arith.addf %260, %261 : vector<8x16xf32>
    %263 = arith.mulf %250, %262 : vector<8x16xf32>
    %264 = arith.addf %259, %263 : vector<8x16xf32>
    %265 = math.tanh %264 : vector<8x16xf32>
    %cst_103 = arith.constant 1.000000e+00 : f32
    %266 = vector.broadcast %cst_103 : f32 to vector<8x16xf32>
    %267 = arith.subf %266, %258 : vector<8x16xf32>
    %268 = arith.mulf %267, %265 : vector<8x16xf32>
    %269 = arith.mulf %258, %240 : vector<8x16xf32>
    %270 = arith.addf %268, %269 : vector<8x16xf32>
    %271 = vector.extract_strided_slice %175 {offsets = [24, 0], sizes = [8, 48], strides = [1, 1]} : vector<64x48xf32> to vector<8x48xf32>
    %cst_104 = arith.constant dense<0.000000e+00> : vector<8x48xf32>
    %272 = tpu.matmul %270, %177, %cst_104 {dimension_numbers = #tpu.dot_dimension_numbers<[1], [0], [0], [1], [0, 0, 1, 1], [], []>} : vector<8x16xf32>, vector<16x48xf32>, vector<8x48xf32> -> vector<8x48xf32>
    %273 = vector.extract_strided_slice %271 {offsets = [0, 0], sizes = [8, 16], strides = [1, 1]} : vector<8x48xf32> to vector<8x16xf32>
    %274 = vector.extract_strided_slice %272 {offsets = [0, 0], sizes = [8, 16], strides = [1, 1]} : vector<8x48xf32> to vector<8x16xf32>
    %275 = arith.addf %273, %274 : vector<8x16xf32>
    %276 = arith.negf %275 : vector<8x16xf32>
    %277 = math.exp %276 : vector<8x16xf32>
    %cst_105 = arith.constant 1.000000e+00 : f32
    %278 = vector.broadcast %cst_105 : f32 to vector<8x16xf32>
    %279 = arith.addf %278, %277 : vector<8x16xf32>
    %280 = arith.divf %278, %279 : vector<8x16xf32>
    %281 = vector.extract_strided_slice %271 {offsets = [0, 16], sizes = [8, 16], strides = [1, 1]} : vector<8x48xf32> to vector<8x16xf32>
    %282 = vector.extract_strided_slice %272 {offsets = [0, 16], sizes = [8, 16], strides = [1, 1]} : vector<8x48xf32> to vector<8x16xf32>
    %283 = arith.addf %281, %282 : vector<8x16xf32>
    %284 = arith.negf %283 : vector<8x16xf32>
    %285 = math.exp %284 : vector<8x16xf32>
    %cst_106 = arith.constant 1.000000e+00 : f32
    %286 = vector.broadcast %cst_106 : f32 to vector<8x16xf32>
    %287 = arith.addf %286, %285 : vector<8x16xf32>
    %288 = arith.divf %286, %287 : vector<8x16xf32>
    %289 = vector.extract_strided_slice %271 {offsets = [0, 32], sizes = [8, 16], strides = [1, 1]} : vector<8x48xf32> to vector<8x16xf32>
    %290 = vector.extract_strided_slice %272 {offsets = [0, 32], sizes = [8, 16], strides = [1, 1]} : vector<8x48xf32> to vector<8x16xf32>
    %291 = vector.broadcast %179 : vector<1x16xf32> to vector<8x16xf32>
    %292 = arith.addf %290, %291 : vector<8x16xf32>
    %293 = arith.mulf %280, %292 : vector<8x16xf32>
    %294 = arith.addf %289, %293 : vector<8x16xf32>
    %295 = math.tanh %294 : vector<8x16xf32>
    %cst_107 = arith.constant 1.000000e+00 : f32
    %296 = vector.broadcast %cst_107 : f32 to vector<8x16xf32>
    %297 = arith.subf %296, %288 : vector<8x16xf32>
    %298 = arith.mulf %297, %295 : vector<8x16xf32>
    %299 = arith.mulf %288, %270 : vector<8x16xf32>
    %300 = arith.addf %298, %299 : vector<8x16xf32>
    %301 = vector.extract_strided_slice %175 {offsets = [32, 0], sizes = [8, 48], strides = [1, 1]} : vector<64x48xf32> to vector<8x48xf32>
    %cst_108 = arith.constant dense<0.000000e+00> : vector<8x48xf32>
    %302 = tpu.matmul %300, %177, %cst_108 {dimension_numbers = #tpu.dot_dimension_numbers<[1], [0], [0], [1], [0, 0, 1, 1], [], []>} : vector<8x16xf32>, vector<16x48xf32>, vector<8x48xf32> -> vector<8x48xf32>
    %303 = vector.extract_strided_slice %301 {offsets = [0, 0], sizes = [8, 16], strides = [1, 1]} : vector<8x48xf32> to vector<8x16xf32>
    %304 = vector.extract_strided_slice %302 {offsets = [0, 0], sizes = [8, 16], strides = [1, 1]} : vector<8x48xf32> to vector<8x16xf32>
    %305 = arith.addf %303, %304 : vector<8x16xf32>
    %306 = arith.negf %305 : vector<8x16xf32>
    %307 = math.exp %306 : vector<8x16xf32>
    %cst_109 = arith.constant 1.000000e+00 : f32
    %308 = vector.broadcast %cst_109 : f32 to vector<8x16xf32>
    %309 = arith.addf %308, %307 : vector<8x16xf32>
    %310 = arith.divf %308, %309 : vector<8x16xf32>
    %311 = vector.extract_strided_slice %301 {offsets = [0, 16], sizes = [8, 16], strides = [1, 1]} : vector<8x48xf32> to vector<8x16xf32>
    %312 = vector.extract_strided_slice %302 {offsets = [0, 16], sizes = [8, 16], strides = [1, 1]} : vector<8x48xf32> to vector<8x16xf32>
    %313 = arith.addf %311, %312 : vector<8x16xf32>
    %314 = arith.negf %313 : vector<8x16xf32>
    %315 = math.exp %314 : vector<8x16xf32>
    %cst_110 = arith.constant 1.000000e+00 : f32
    %316 = vector.broadcast %cst_110 : f32 to vector<8x16xf32>
    %317 = arith.addf %316, %315 : vector<8x16xf32>
    %318 = arith.divf %316, %317 : vector<8x16xf32>
    %319 = vector.extract_strided_slice %301 {offsets = [0, 32], sizes = [8, 16], strides = [1, 1]} : vector<8x48xf32> to vector<8x16xf32>
    %320 = vector.extract_strided_slice %302 {offsets = [0, 32], sizes = [8, 16], strides = [1, 1]} : vector<8x48xf32> to vector<8x16xf32>
    %321 = vector.broadcast %179 : vector<1x16xf32> to vector<8x16xf32>
    %322 = arith.addf %320, %321 : vector<8x16xf32>
    %323 = arith.mulf %310, %322 : vector<8x16xf32>
    %324 = arith.addf %319, %323 : vector<8x16xf32>
    %325 = math.tanh %324 : vector<8x16xf32>
    %cst_111 = arith.constant 1.000000e+00 : f32
    %326 = vector.broadcast %cst_111 : f32 to vector<8x16xf32>
    %327 = arith.subf %326, %318 : vector<8x16xf32>
    %328 = arith.mulf %327, %325 : vector<8x16xf32>
    %329 = arith.mulf %318, %300 : vector<8x16xf32>
    %330 = arith.addf %328, %329 : vector<8x16xf32>
    %331 = vector.extract_strided_slice %175 {offsets = [40, 0], sizes = [8, 48], strides = [1, 1]} : vector<64x48xf32> to vector<8x48xf32>
    %cst_112 = arith.constant dense<0.000000e+00> : vector<8x48xf32>
    %332 = tpu.matmul %330, %177, %cst_112 {dimension_numbers = #tpu.dot_dimension_numbers<[1], [0], [0], [1], [0, 0, 1, 1], [], []>} : vector<8x16xf32>, vector<16x48xf32>, vector<8x48xf32> -> vector<8x48xf32>
    %333 = vector.extract_strided_slice %331 {offsets = [0, 0], sizes = [8, 16], strides = [1, 1]} : vector<8x48xf32> to vector<8x16xf32>
    %334 = vector.extract_strided_slice %332 {offsets = [0, 0], sizes = [8, 16], strides = [1, 1]} : vector<8x48xf32> to vector<8x16xf32>
    %335 = arith.addf %333, %334 : vector<8x16xf32>
    %336 = arith.negf %335 : vector<8x16xf32>
    %337 = math.exp %336 : vector<8x16xf32>
    %cst_113 = arith.constant 1.000000e+00 : f32
    %338 = vector.broadcast %cst_113 : f32 to vector<8x16xf32>
    %339 = arith.addf %338, %337 : vector<8x16xf32>
    %340 = arith.divf %338, %339 : vector<8x16xf32>
    %341 = vector.extract_strided_slice %331 {offsets = [0, 16], sizes = [8, 16], strides = [1, 1]} : vector<8x48xf32> to vector<8x16xf32>
    %342 = vector.extract_strided_slice %332 {offsets = [0, 16], sizes = [8, 16], strides = [1, 1]} : vector<8x48xf32> to vector<8x16xf32>
    %343 = arith.addf %341, %342 : vector<8x16xf32>
    %344 = arith.negf %343 : vector<8x16xf32>
    %345 = math.exp %344 : vector<8x16xf32>
    %cst_114 = arith.constant 1.000000e+00 : f32
    %346 = vector.broadcast %cst_114 : f32 to vector<8x16xf32>
    %347 = arith.addf %346, %345 : vector<8x16xf32>
    %348 = arith.divf %346, %347 : vector<8x16xf32>
    %349 = vector.extract_strided_slice %331 {offsets = [0, 32], sizes = [8, 16], strides = [1, 1]} : vector<8x48xf32> to vector<8x16xf32>
    %350 = vector.extract_strided_slice %332 {offsets = [0, 32], sizes = [8, 16], strides = [1, 1]} : vector<8x48xf32> to vector<8x16xf32>
    %351 = vector.broadcast %179 : vector<1x16xf32> to vector<8x16xf32>
    %352 = arith.addf %350, %351 : vector<8x16xf32>
    %353 = arith.mulf %340, %352 : vector<8x16xf32>
    %354 = arith.addf %349, %353 : vector<8x16xf32>
    %355 = math.tanh %354 : vector<8x16xf32>
    %cst_115 = arith.constant 1.000000e+00 : f32
    %356 = vector.broadcast %cst_115 : f32 to vector<8x16xf32>
    %357 = arith.subf %356, %348 : vector<8x16xf32>
    %358 = arith.mulf %357, %355 : vector<8x16xf32>
    %359 = arith.mulf %348, %330 : vector<8x16xf32>
    %360 = arith.addf %358, %359 : vector<8x16xf32>
    %361 = vector.extract_strided_slice %175 {offsets = [48, 0], sizes = [8, 48], strides = [1, 1]} : vector<64x48xf32> to vector<8x48xf32>
    %cst_116 = arith.constant dense<0.000000e+00> : vector<8x48xf32>
    %362 = tpu.matmul %360, %177, %cst_116 {dimension_numbers = #tpu.dot_dimension_numbers<[1], [0], [0], [1], [0, 0, 1, 1], [], []>} : vector<8x16xf32>, vector<16x48xf32>, vector<8x48xf32> -> vector<8x48xf32>
    %363 = vector.extract_strided_slice %361 {offsets = [0, 0], sizes = [8, 16], strides = [1, 1]} : vector<8x48xf32> to vector<8x16xf32>
    %364 = vector.extract_strided_slice %362 {offsets = [0, 0], sizes = [8, 16], strides = [1, 1]} : vector<8x48xf32> to vector<8x16xf32>
    %365 = arith.addf %363, %364 : vector<8x16xf32>
    %366 = arith.negf %365 : vector<8x16xf32>
    %367 = math.exp %366 : vector<8x16xf32>
    %cst_117 = arith.constant 1.000000e+00 : f32
    %368 = vector.broadcast %cst_117 : f32 to vector<8x16xf32>
    %369 = arith.addf %368, %367 : vector<8x16xf32>
    %370 = arith.divf %368, %369 : vector<8x16xf32>
    %371 = vector.extract_strided_slice %361 {offsets = [0, 16], sizes = [8, 16], strides = [1, 1]} : vector<8x48xf32> to vector<8x16xf32>
    %372 = vector.extract_strided_slice %362 {offsets = [0, 16], sizes = [8, 16], strides = [1, 1]} : vector<8x48xf32> to vector<8x16xf32>
    %373 = arith.addf %371, %372 : vector<8x16xf32>
    %374 = arith.negf %373 : vector<8x16xf32>
    %375 = math.exp %374 : vector<8x16xf32>
    %cst_118 = arith.constant 1.000000e+00 : f32
    %376 = vector.broadcast %cst_118 : f32 to vector<8x16xf32>
    %377 = arith.addf %376, %375 : vector<8x16xf32>
    %378 = arith.divf %376, %377 : vector<8x16xf32>
    %379 = vector.extract_strided_slice %361 {offsets = [0, 32], sizes = [8, 16], strides = [1, 1]} : vector<8x48xf32> to vector<8x16xf32>
    %380 = vector.extract_strided_slice %362 {offsets = [0, 32], sizes = [8, 16], strides = [1, 1]} : vector<8x48xf32> to vector<8x16xf32>
    %381 = vector.broadcast %179 : vector<1x16xf32> to vector<8x16xf32>
    %382 = arith.addf %380, %381 : vector<8x16xf32>
    %383 = arith.mulf %370, %382 : vector<8x16xf32>
    %384 = arith.addf %379, %383 : vector<8x16xf32>
    %385 = math.tanh %384 : vector<8x16xf32>
    %cst_119 = arith.constant 1.000000e+00 : f32
    %386 = vector.broadcast %cst_119 : f32 to vector<8x16xf32>
    %387 = arith.subf %386, %378 : vector<8x16xf32>
    %388 = arith.mulf %387, %385 : vector<8x16xf32>
    %389 = arith.mulf %378, %360 : vector<8x16xf32>
    %390 = arith.addf %388, %389 : vector<8x16xf32>
    %391 = vector.extract_strided_slice %175 {offsets = [56, 0], sizes = [8, 48], strides = [1, 1]} : vector<64x48xf32> to vector<8x48xf32>
    %cst_120 = arith.constant dense<0.000000e+00> : vector<8x48xf32>
    %392 = tpu.matmul %390, %177, %cst_120 {dimension_numbers = #tpu.dot_dimension_numbers<[1], [0], [0], [1], [0, 0, 1, 1], [], []>} : vector<8x16xf32>, vector<16x48xf32>, vector<8x48xf32> -> vector<8x48xf32>
    %393 = vector.extract_strided_slice %391 {offsets = [0, 0], sizes = [8, 16], strides = [1, 1]} : vector<8x48xf32> to vector<8x16xf32>
    %394 = vector.extract_strided_slice %392 {offsets = [0, 0], sizes = [8, 16], strides = [1, 1]} : vector<8x48xf32> to vector<8x16xf32>
    %395 = arith.addf %393, %394 : vector<8x16xf32>
    %396 = arith.negf %395 : vector<8x16xf32>
    %397 = math.exp %396 : vector<8x16xf32>
    %cst_121 = arith.constant 1.000000e+00 : f32
    %398 = vector.broadcast %cst_121 : f32 to vector<8x16xf32>
    %399 = arith.addf %398, %397 : vector<8x16xf32>
    %400 = arith.divf %398, %399 : vector<8x16xf32>
    %401 = vector.extract_strided_slice %391 {offsets = [0, 16], sizes = [8, 16], strides = [1, 1]} : vector<8x48xf32> to vector<8x16xf32>
    %402 = vector.extract_strided_slice %392 {offsets = [0, 16], sizes = [8, 16], strides = [1, 1]} : vector<8x48xf32> to vector<8x16xf32>
    %403 = arith.addf %401, %402 : vector<8x16xf32>
    %404 = arith.negf %403 : vector<8x16xf32>
    %405 = math.exp %404 : vector<8x16xf32>
    %cst_122 = arith.constant 1.000000e+00 : f32
    %406 = vector.broadcast %cst_122 : f32 to vector<8x16xf32>
    %407 = arith.addf %406, %405 : vector<8x16xf32>
    %408 = arith.divf %406, %407 : vector<8x16xf32>
    %409 = vector.extract_strided_slice %391 {offsets = [0, 32], sizes = [8, 16], strides = [1, 1]} : vector<8x48xf32> to vector<8x16xf32>
    %410 = vector.extract_strided_slice %392 {offsets = [0, 32], sizes = [8, 16], strides = [1, 1]} : vector<8x48xf32> to vector<8x16xf32>
    %411 = vector.broadcast %179 : vector<1x16xf32> to vector<8x16xf32>
    %412 = arith.addf %410, %411 : vector<8x16xf32>
    %413 = arith.mulf %400, %412 : vector<8x16xf32>
    %414 = arith.addf %409, %413 : vector<8x16xf32>
    %415 = math.tanh %414 : vector<8x16xf32>
    %cst_123 = arith.constant 1.000000e+00 : f32
    %416 = vector.broadcast %cst_123 : f32 to vector<8x16xf32>
    %417 = arith.subf %416, %408 : vector<8x16xf32>
    %418 = arith.mulf %417, %415 : vector<8x16xf32>
    %419 = arith.mulf %408, %390 : vector<8x16xf32>
    %420 = arith.addf %418, %419 : vector<8x16xf32>
    %c568 = arith.constant 568 : index
    %c0_124 = arith.constant 0 : index
    %421 = vector.load %arg1[%c568, %c0_124] : memref<664x128xf32, #tpu.memory_space<vmem>>, vector<16x128xf32>
    %422 = vector.extract_strided_slice %421 {offsets = [0, 0], sizes = [16, 16], strides = [1, 1]} : vector<16x128xf32> to vector<16x16xf32>
    %cst_125 = arith.constant dense<0.000000e+00> : vector<8x16xf32>
    %423 = tpu.matmul %420, %422, %cst_125 {dimension_numbers = #tpu.dot_dimension_numbers<[1], [0], [0], [1], [0, 0, 1, 1], [], []>} : vector<8x16xf32>, vector<16x16xf32>, vector<8x16xf32> -> vector<8x16xf32>
    %c584 = arith.constant 584 : index
    %c0_126 = arith.constant 0 : index
    %424 = vector.load %arg1[%c584, %c0_126] : memref<664x128xf32, #tpu.memory_space<vmem>>, vector<8x128xf32>
    %425 = vector.extract_strided_slice %424 {offsets = [0, 0], sizes = [1, 16], strides = [1, 1]} : vector<8x128xf32> to vector<1x16xf32>
    %426 = vector.broadcast %425 : vector<1x16xf32> to vector<8x16xf32>
    %427 = arith.addf %423, %426 : vector<8x16xf32>
    %cst_127 = arith.constant 0.000000e+00 : f32
    %428 = vector.broadcast %cst_127 : f32 to vector<8x16xf32>
    %429 = arith.maximumf %427, %428 : vector<8x16xf32>
    %c656 = arith.constant 656 : index
    %c0_128 = arith.constant 0 : index
    %430 = vector.load %arg1[%c656, %c0_128] : memref<664x128xf32, #tpu.memory_space<vmem>>, vector<8x128xf32>
    %431 = vector.extract_strided_slice %430 {offsets = [0, 0], sizes = [8, 2], strides = [1, 1]} : vector<8x128xf32> to vector<8x2xf32>
    %cst_129 = arith.constant dense<0.000000e+00> : vector<8x32xf32>
    %432 = tpu.matmul %431, %151, %cst_129 {dimension_numbers = #tpu.dot_dimension_numbers<[1], [0], [0], [1], [0, 0, 1, 1], [], []>} : vector<8x2xf32>, vector<2x32xf32>, vector<8x32xf32> -> vector<8x32xf32>
    %c592 = arith.constant 592 : index
    %c0_130 = arith.constant 0 : index
    %433 = vector.load %arg1[%c592, %c0_130] : memref<664x128xf32, #tpu.memory_space<vmem>>, vector<16x128xf32>
    %434 = vector.extract_strided_slice %433 {offsets = [0, 0], sizes = [16, 32], strides = [1, 1]} : vector<16x128xf32> to vector<16x32xf32>
    %cst_131 = arith.constant dense<0.000000e+00> : vector<8x32xf32>
    %435 = tpu.matmul %429, %434, %cst_131 {dimension_numbers = #tpu.dot_dimension_numbers<[1], [0], [0], [1], [0, 0, 1, 1], [], []>} : vector<8x16xf32>, vector<16x32xf32>, vector<8x32xf32> -> vector<8x32xf32>
    %436 = arith.addf %432, %435 : vector<8x32xf32>
    %c608 = arith.constant 608 : index
    %c0_132 = arith.constant 0 : index
    %437 = vector.load %arg1[%c608, %c0_132] : memref<664x128xf32, #tpu.memory_space<vmem>>, vector<8x128xf32>
    %438 = vector.extract_strided_slice %437 {offsets = [0, 0], sizes = [1, 32], strides = [1, 1]} : vector<8x128xf32> to vector<1x32xf32>
    %439 = vector.broadcast %438 : vector<1x32xf32> to vector<8x32xf32>
    %440 = arith.addf %436, %439 : vector<8x32xf32>
    %cst_133 = arith.constant 0.000000e+00 : f32
    %441 = vector.broadcast %cst_133 : f32 to vector<8x32xf32>
    %442 = arith.maximumf %440, %441 : vector<8x32xf32>
    %c616 = arith.constant 616 : index
    %c0_134 = arith.constant 0 : index
    %443 = vector.load %arg1[%c616, %c0_134] : memref<664x128xf32, #tpu.memory_space<vmem>>, vector<32x128xf32>
    %cst_135 = arith.constant dense<0.000000e+00> : vector<8x128xf32>
    %444 = tpu.matmul %442, %443, %cst_135 {dimension_numbers = #tpu.dot_dimension_numbers<[1], [0], [0], [1], [0, 0, 1, 1], [], []>} : vector<8x32xf32>, vector<32x128xf32>, vector<8x128xf32> -> vector<8x128xf32>
    %c648 = arith.constant 648 : index
    %c0_136 = arith.constant 0 : index
    %445 = vector.load %arg1[%c648, %c0_136] : memref<664x128xf32, #tpu.memory_space<vmem>>, vector<8x128xf32>
    %446 = vector.extract_strided_slice %445 {offsets = [0, 0], sizes = [1, 128], strides = [1, 1]} : vector<8x128xf32> to vector<1x128xf32>
    %447 = vector.broadcast %446 : vector<1x128xf32> to vector<8x128xf32>
    %448 = arith.addf %444, %447 : vector<8x128xf32>
    %cst_137 = arith.constant 0.000000e+00 : f32
    %449 = vector.broadcast %cst_137 : f32 to vector<16x128xf32>
    %c0_138 = arith.constant 0 : index
    %c0_139 = arith.constant 0 : index
    %450 = vector.load %arg3[%c0_138, %c0_139] : memref<16x128xf32, #tpu.memory_space<vmem>>, vector<16x128xf32>
    tpu.vector_store %arg3[%c0_138, %c0_139], %449 {strides = array<i32>} : memref<16x128xf32, #tpu.memory_space<vmem>>, vector<16x128xf32>,
    %c0_140 = arith.constant 0 : index
    %c0_141 = arith.constant 0 : index
    %451 = vector.load %arg3[%c0_140, %c0_141] : memref<16x128xf32, #tpu.memory_space<vmem>>, vector<2x128xf32>
    tpu.vector_store %arg3[%c0_140, %c0_141], %166 {strides = array<i32>} : memref<16x128xf32, #tpu.memory_space<vmem>>, vector<2x128xf32>,
    %c8 = arith.constant 8 : index
    %c0_142 = arith.constant 0 : index
    %452 = vector.load %arg3[%c8, %c0_142] : memref<16x128xf32, #tpu.memory_space<vmem>>, vector<8x128xf32>
    tpu.vector_store %arg3[%c8, %c0_142], %448 {strides = array<i32>} : memref<16x128xf32, #tpu.memory_space<vmem>>, vector<8x128xf32>,
    return
  }
}

</mosaic_0001>

<llo_original>
// kernel: rasterized_ec_forward.1
$region0: #{rasterized_ec_forward.1}
  #allocation0 [shape = 'u32[]', space=smem, size = 0x4, offset = 0x4, fixed_abs, tag = 'smem constant byte address 0x4 - core index']
  #allocation1 [shape = 'u32[144,128]{1,0:T(1,128)}', space=vmem, size = 0x12000, scoped, tag = 'internal scratch']
  #allocation2 [shape = 'f32[2,256,128]{2,1,0:T(8,128)}', space=vmem, size = 0x40000, scoped, tag = 'scratch operand']
  %s0 = inlined_call_operand.vmem [shape: bf16[512,128], index: 0, kind: input, shape index: {}]
  %s1 = inlined_call_operand.vmem [shape: f32[664,128], index: 1, kind: input, shape index: {}]
  %s2 = inlined_call_operand.vmem [shape: f32[72,128], index: 2, kind: input, shape index: {}]
  %s3 = inlined_call_operand.vmem [shape: f32[16,128], index: 3, kind: output, shape index: {}]
  %s4 = sld [smem:[#allocation0]]
  $region22: #{rasterized_ec_forward.1} parent=0
    _
  %s6 = ssub.s32 1, %s4
  %s7 = scalar_select 0, %s6, %s4
  // Predicated region
  $region2: #{rasterized_ec_forward.1} parent=0 // pred_check
    _
  $region3: #{rasterized_ec_forward.1} parent=0 // pred_check_branch
    %9 = sbr.rel (0) target = $region5
  $region4: #{rasterized_ec_forward.1} parent=0 // pred_region
    _
  $region5: #{rasterized_ec_forward.1} parent=0 // pred_fallthru
    _
  // Predicated region
  $region6: #{rasterized_ec_forward.1} parent=0 // pred_check
    _
  $region7: #{rasterized_ec_forward.1} parent=0 // pred_check_branch
    %11 = sbr.rel (0) target = $region9
  $region8: #{rasterized_ec_forward.1} parent=0 // pred_region
    _
  $region9: #{rasterized_ec_forward.1} parent=0 // pred_fallthru
    _
  // Predicated region
  $region10: #{rasterized_ec_forward.1} parent=0 // pred_check
    _
  $region11: #{rasterized_ec_forward.1} parent=0 // pred_check_branch
    %13 = sbr.rel (0) target = $region13
  $region12: #{rasterized_ec_forward.1} parent=0 // pred_region
    _
  $region13: #{rasterized_ec_forward.1} parent=0 // pred_fallthru
    _
  %v15 = vld [vmem:[%s1] sm:$0xff]
  %v16 = vld [vmem:[%s1 + $0x8] sm:$0xff]
  %v17 = vld [vmem:[%s1 + $0x10] sm:$0xff]
  %v18 = vld [vmem:[%s1 + $0x18] sm:$0xff]
  %v19 = vld [vmem:[%s1 + $0x20] sm:$0xff]
  %v20 = vld [vmem:[%s1 + $0x28] sm:$0xff]
  %v21 = vld [vmem:[%s1 + $0x30] sm:$0xff]
  %v22 = vld [vmem:[%s1 + $0x38] sm:$0xff]
  %v23 = vld [vmem:[%s1 + $0x40] sm:$0xff]
  %v24 = vld [vmem:[%s1 + $0x48] sm:$0xff]
  %v25 = vld [vmem:[%s1 + $0x50] sm:$0xff]
  %v26 = vld [vmem:[%s1 + $0x58] sm:$0xff]
  %v27 = vld [vmem:[%s1 + $0x60] sm:$0xff]
  %v28 = vld [vmem:[%s1 + $0x68] sm:$0xff]
  %v29 = vld [vmem:[%s1 + $0x70] sm:$0xff]
  %v30 = vld [vmem:[%s1 + $0x78] sm:$0xff]
  %v31 = vpack.c.bf16 %v16, %v15
  %v32 = vpack.c.bf16 %v18, %v17
  %v33 = vpack.c.bf16 %v20, %v19
  %v34 = vpack.c.bf16 %v22, %v21
  %v35 = vpack.c.bf16 %v24, %v23
  %v36 = vpack.c.bf16 %v26, %v25
  %v37 = vpack.c.bf16 %v28, %v27
  %v38 = vpack.c.bf16 %v30, %v29
  %v39 = vld [vmem:[%s1 + $0x80] sm:$0xff]
  %v40 = vld [vmem:[%s0] sm:$0xf]
  %v41 = vld [vmem:[%s0 + $0x4] sm:$0xf]
  %v42 = vld [vmem:[%s0 + $0x8] sm:$0xf]
  %v43 = vld [vmem:[%s0 + $0xc] sm:$0xf]
  %v44 = vld [vmem:[%s0 + $0x10] sm:$0xf]
  %v45 = vld [vmem:[%s0 + $0x14] sm:$0xf]
  %v46 = vld [vmem:[%s0 + $0x18] sm:$0xf]
  %v47 = vld [vmem:[%s0 + $0x1c] sm:$0xf]
  %v48 = vld [vmem:[%s0 + $0x20] sm:$0xf]
  %v49 = vld [vmem:[%s0 + $0x24] sm:$0xf]
  %v50 = vld [vmem:[%s0 + $0x28] sm:$0xf]
  %v51 = vld [vmem:[%s0 + $0x2c] sm:$0xf]
  %v52 = vld [vmem:[%s0 + $0x30] sm:$0xf]
  %v53 = vld [vmem:[%s0 + $0x34] sm:$0xf]
  %v54 = vld [vmem:[%s0 + $0x38] sm:$0xf]
  %v55 = vld [vmem:[%s0 + $0x3c] sm:$0xf]
  %v56 = vld [vmem:[%s0 + $0x40] sm:$0xf]
  %v57 = vld [vmem:[%s0 + $0x44] sm:$0xf]
  %v58 = vld [vmem:[%s0 + $0x48] sm:$0xf]
  %v59 = vld [vmem:[%s0 + $0x4c] sm:$0xf]
  %v60 = vld [vmem:[%s0 + $0x50] sm:$0xf]
  %v61 = vld [vmem:[%s0 + $0x54] sm:$0xf]
  %v62 = vld [vmem:[%s0 + $0x58] sm:$0xf]
  %v63 = vld [vmem:[%s0 + $0x5c] sm:$0xf]
  %v64 = vld [vmem:[%s0 + $0x60] sm:$0xf]
  %v65 = vld [vmem:[%s0 + $0x64] sm:$0xf]
  %v66 = vld [vmem:[%s0 + $0x68] sm:$0xf]
  %v67 = vld [vmem:[%s0 + $0x6c] sm:$0xf]
  %v68 = vld [vmem:[%s0 + $0x70] sm:$0xf]
  %v69 = vld [vmem:[%s0 + $0x74] sm:$0xf]
  %v70 = vld [vmem:[%s0 + $0x78] sm:$0xf]
  %v71 = vld [vmem:[%s0 + $0x7c] sm:$0xf]
  %v72 = vld [vmem:[%s0 + $0x80] sm:$0xf]
  %v73 = vld [vmem:[%s0 + $0x84] sm:$0xf]
  %v74 = vld [vmem:[%s0 + $0x88] sm:$0xf]
  %v75 = vld [vmem:[%s0 + $0x8c] sm:$0xf]
  %v76 = vld [vmem:[%s0 + $0x90] sm:$0xf]
  %v77 = vld [vmem:[%s0 + $0x94] sm:$0xf]
  %v78 = vld [vmem:[%s0 + $0x98] sm:$0xf]
  %v79 = vld [vmem:[%s0 + $0x9c] sm:$0xf]
  %v80 = vld [vmem:[%s0 + $0xa0] sm:$0xf]
  %v81 = vld [vmem:[%s0 + $0xa4] sm:$0xf]
  %v82 = vld [vmem:[%s0 + $0xa8] sm:$0xf]
  %v83 = vld [vmem:[%s0 + $0xac] sm:$0xf]
  %v84 = vld [vmem:[%s0 + $0xb0] sm:$0xf]
  %v85 = vld [vmem:[%s0 + $0xb4] sm:$0xf]
  %v86 = vld [vmem:[%s0 + $0xb8] sm:$0xf]
  %v87 = vld [vmem:[%s0 + $0xbc] sm:$0xf]
  %v88 = vld [vmem:[%s0 + $0xc0] sm:$0xf]
  %v89 = vld [vmem:[%s0 + $0xc4] sm:$0xf]
  %v90 = vld [vmem:[%s0 + $0xc8] sm:$0xf]
  %v91 = vld [vmem:[%s0 + $0xcc] sm:$0xf]
  %v92 = vld [vmem:[%s0 + $0xd0] sm:$0xf]
  %v93 = vld [vmem:[%s0 + $0xd4] sm:$0xf]
  %v94 = vld [vmem:[%s0 + $0xd8] sm:$0xf]
  %v95 = vld [vmem:[%s0 + $0xdc] sm:$0xf]
  %v96 = vld [vmem:[%s0 + $0xe0] sm:$0xf]
  %v97 = vld [vmem:[%s0 + $0xe4] sm:$0xf]
  %v98 = vld [vmem:[%s0 + $0xe8] sm:$0xf]
  %v99 = vld [vmem:[%s0 + $0xec] sm:$0xf]
  %v100 = vld [vmem:[%s0 + $0xf0] sm:$0xf]
  %v101 = vld [vmem:[%s0 + $0xf4] sm:$0xf]
  %v102 = vld [vmem:[%s0 + $0xf8] sm:$0xf]
  %v103 = vld [vmem:[%s0 + $0xfc] sm:$0xf]
  %v104 = vlaneseq
  %v105 = vshrl.u32 %v104, 7
  %v106 = vsub.s32 0, %v105
  %v107 = vrot.slane %v39, %v106
  %v172 = vunpack.c.l.b16 %v40
  %v173 = vunpack.c.l.b16 %v41
  %v174 = vunpack.c.l.b16 %v42
  %v175 = vunpack.c.l.b16 %v43
  %v176 = vunpack.c.l.b16 %v44
  %v177 = vunpack.c.l.b16 %v45
  %v178 = vunpack.c.l.b16 %v46
  %v179 = vunpack.c.l.b16 %v47
  %v180 = vunpack.c.l.b16 %v48
  %v181 = vunpack.c.l.b16 %v49
  %v182 = vunpack.c.l.b16 %v50
  %v183 = vunpack.c.l.b16 %v51
  %v184 = vunpack.c.l.b16 %v52
  %v185 = vunpack.c.l.b16 %v53
  %v186 = vunpack.c.l.b16 %v54
  %v187 = vunpack.c.l.b16 %v55
  %v188 = vunpack.c.l.b16 %v56
  %v189 = vunpack.c.l.b16 %v57
  %v190 = vunpack.c.l.b16 %v58
  %v191 = vunpack.c.l.b16 %v59
  %v192 = vunpack.c.l.b16 %v60
  %v193 = vunpack.c.l.b16 %v61
  %v194 = vunpack.c.l.b16 %v62
  %v195 = vunpack.c.l.b16 %v63
  %v196 = vunpack.c.l.b16 %v64
  %v197 = vunpack.c.l.b16 %v65
  %v198 = vunpack.c.l.b16 %v66
  %v199 = vunpack.c.l.b16 %v67
  %v200 = vunpack.c.l.b16 %v68
  %v201 = vunpack.c.l.b16 %v69
  %v202 = vunpack.c.l.b16 %v70
  %v203 = vunpack.c.l.b16 %v71
  %v204 = vunpack.c.l.b16 %v72
  %v205 = vunpack.c.l.b16 %v73
  %v206 = vunpack.c.l.b16 %v74
  %v207 = vunpack.c.l.b16 %v75
  %v208 = vunpack.c.l.b16 %v76
  %v209 = vunpack.c.l.b16 %v77
  %v210 = vunpack.c.l.b16 %v78
  %v211 = vunpack.c.l.b16 %v79
  %v212 = vunpack.c.l.b16 %v80
  %v213 = vunpack.c.l.b16 %v81
  %v214 = vunpack.c.l.b16 %v82
  %v215 = vunpack.c.l.b16 %v83
  %v216 = vunpack.c.l.b16 %v84
  %v217 = vunpack.c.l.b16 %v85
  %v218 = vunpack.c.l.b16 %v86
  %v219 = vunpack.c.l.b16 %v87
  %v220 = vunpack.c.l.b16 %v88
  %v221 = vunpack.c.l.b16 %v89
  %v222 = vunpack.c.l.b16 %v90
  %v223 = vunpack.c.l.b16 %v91
  %v224 = vunpack.c.l.b16 %v92
  %v225 = vunpack.c.l.b16 %v93
  %v226 = vunpack.c.l.b16 %v94
  %v227 = vunpack.c.l.b16 %v95
  %v228 = vunpack.c.l.b16 %v96
  %v229 = vunpack.c.l.b16 %v97
  %v230 = vunpack.c.l.b16 %v98
  %v231 = vunpack.c.l.b16 %v99
  %v232 = vunpack.c.l.b16 %v100
  %v233 = vunpack.c.l.b16 %v101
  %v234 = vunpack.c.l.b16 %v102
  %v235 = vunpack.c.l.b16 %v103
  %v236 = vpack.c.b16 %v173, %v172
  %v237 = vpack.c.b16 %v175, %v174
  %v238 = vpack.c.b16 %v177, %v176
  %v239 = vpack.c.b16 %v179, %v178
  %v240 = vpack.c.b16 %v181, %v180
  %v241 = vpack.c.b16 %v183, %v182
  %v242 = vpack.c.b16 %v185, %v184
  %v243 = vpack.c.b16 %v187, %v186
  %v244 = vpack.c.b16 %v189, %v188
  %v245 = vpack.c.b16 %v191, %v190
  %v246 = vpack.c.b16 %v193, %v192
  %v247 = vpack.c.b16 %v195, %v194
  %v248 = vpack.c.b16 %v197, %v196
  %v249 = vpack.c.b16 %v199, %v198
  %v250 = vpack.c.b16 %v201, %v200
  %v251 = vpack.c.b16 %v203, %v202
  %v252 = vpack.c.b16 %v205, %v204
  %v253 = vpack.c.b16 %v207, %v206
  %v254 = vpack.c.b16 %v209, %v208
  %v255 = vpack.c.b16 %v211, %v210
  %v256 = vpack.c.b16 %v213, %v212
  %v257 = vpack.c.b16 %v215, %v214
  %v258 = vpack.c.b16 %v217, %v216
  %v259 = vpack.c.b16 %v219, %v218
  %v260 = vpack.c.b16 %v221, %v220
  %v261 = vpack.c.b16 %v223, %v222
  %v262 = vpack.c.b16 %v225, %v224
  %v263 = vpack.c.b16 %v227, %v226
  %v264 = vpack.c.b16 %v229, %v228
  %v265 = vpack.c.b16 %v231, %v230
  %v266 = vpack.c.b16 %v233, %v232
  %v267 = vpack.c.b16 %v235, %v234
  %300 = vmatprep.subr.bf16.mxu0 0
  %301 = vmatpush1.bf16.msra.mxu0 %v31
  %302 = vmatprep.subr.bf16.mxu0 0
  %303 = vmatpush1.bf16.msra.mxu0 %v32
  %304 = vmatprep.subr.bf16.mxu0 0
  %305 = vmatpush1.bf16.msra.mxu0 %v33
  %306 = vmatprep.subr.bf16.mxu0 0
  %307 = vmatpush1.bf16.msra.mxu0 %v34
  %308 = vmatprep.subr.bf16.mxu0 0
  %309 = vmatpush1.bf16.msra.mxu0 %v35
  %310 = vmatprep.subr.bf16.mxu0 0
  %311 = vmatpush1.bf16.msra.mxu0 %v36
  %312 = vmatprep.subr.bf16.mxu0 0
  %313 = vmatpush1.bf16.msra.mxu0 %v37
  %314 = vmatprep.subr.bf16.mxu0 0
  %315 = vmatpush1.bf16.msra.mxu0 %v38
  %316 = vmatprep.subr.bf16.mxu0 0
  %317 = vmatpush1.bf16.msra.mxu0 0
  %318 = vmatprep.subr.bf16.mxu0 0
  %319 = vmatpush1.bf16.msra.mxu0 0
  %320 = vmatprep.subr.bf16.mxu0 0
  %321 = vmatpush1.bf16.msra.mxu0 0
  %322 = vmatprep.subr.bf16.mxu0 0
  %323 = vmatpush1.bf16.msra.mxu0 0
  %324 = vmatprep.subr.bf16.mxu0 0
  %325 = vmatpush1.bf16.msra.mxu0 0
  %326 = vmatprep.subr.bf16.mxu0 0
  %327 = vmatpush1.bf16.msra.mxu0 0
  %328 = vmatprep.subr.bf16.mxu0 0
  %329 = vmatpush1.bf16.msra.mxu0 0
  %330 = vmatprep.subr.bf16.mxu0 0
  %331 = vmatpush1.bf16.msra.mxu0 0
  %332 = vmatprep.mubr.bf16.mxu0 0
  %333 = vmatmul.mubr.bf16.gmra.mrb[0].mxu0 %v236
  %v334 = vpop.f32.mrb[0].mxu0
  %v335 = vadd.f32 %v107, %v334
  %v336 = vpop.f32.mrb[0].mxu0
  %v337 = vpop.f32.mrb[0].mxu0
  %v338 = vadd.f32 %v107, %v337
  %v339 = vpop.f32.mrb[0].mxu0
  %340 = vmatprep.mubr.bf16.mxu0 0
  %341 = vmatmul.mubr.bf16.gmra.mrb[0].mxu0 %v237
  %v342 = vpop.f32.mrb[0].mxu0
  %v343 = vadd.f32 %v107, %v342
  %v344 = vpop.f32.mrb[0].mxu0
  %v345 = vpop.f32.mrb[0].mxu0
  %v346 = vadd.f32 %v107, %v345
  %v347 = vpop.f32.mrb[0].mxu0
  %348 = vmatprep.mubr.bf16.mxu0 0
  %349 = vmatmul.mubr.bf16.gmra.mrb[0].mxu0 %v238
  %v350 = vpop.f32.mrb[0].mxu0
  %v351 = vadd.f32 %v107, %v350
  %v352 = vpop.f32.mrb[0].mxu0
  %v353 = vpop.f32.mrb[0].mxu0
  %v354 = vadd.f32 %v107, %v353
  %v355 = vpop.f32.mrb[0].mxu0
  %356 = vmatprep.mubr.bf16.mxu0 0
  %357 = vmatmul.mubr.bf16.gmra.mrb[0].mxu0 %v239
  %v358 = vpop.f32.mrb[0].mxu0
  %v359 = vadd.f32 %v107, %v358
  %v360 = vpop.f32.mrb[0].mxu0
  %v361 = vpop.f32.mrb[0].mxu0
  %v362 = vadd.f32 %v107, %v361
  %v363 = vpop.f32.mrb[0].mxu0
  %364 = vmatprep.mubr.bf16.mxu0 0
  %365 = vmatmul.mubr.bf16.gmra.mrb[0].mxu0 %v240
  %v366 = vpop.f32.mrb[0].mxu0
  %v367 = vadd.f32 %v107, %v366
  %v368 = vpop.f32.mrb[0].mxu0
  %v369 = vpop.f32.mrb[0].mxu0
  %v370 = vadd.f32 %v107, %v369
  %v371 = vpop.f32.mrb[0].mxu0
  %372 = vmatprep.mubr.bf16.mxu0 0
  %373 = vmatmul.mubr.bf16.gmra.mrb[0].mxu0 %v241
  %v374 = vpop.f32.mrb[0].mxu0
  %v375 = vadd.f32 %v107, %v374
  %v376 = vpop.f32.mrb[0].mxu0
  %v377 = vpop.f32.mrb[0].mxu0
  %v378 = vadd.f32 %v107, %v377
  %v379 = vpop.f32.mrb[0].mxu0
  %380 = vmatprep.mubr.bf16.mxu0 0
  %381 = vmatmul.mubr.bf16.gmra.mrb[0].mxu0 %v242
  %v382 = vpop.f32.mrb[0].mxu0
  %v383 = vadd.f32 %v107, %v382
  %v384 = vpop.f32.mrb[0].mxu0
  %v385 = vpop.f32.mrb[0].mxu0
  %v386 = vadd.f32 %v107, %v385
  %v387 = vpop.f32.mrb[0].mxu0
  %388 = vmatprep.mubr.bf16.mxu0 0
  %389 = vmatmul.mubr.bf16.gmra.mrb[0].mxu0 %v243
  %v390 = vpop.f32.mrb[0].mxu0
  %v391 = vadd.f32 %v107, %v390
  %v392 = vpop.f32.mrb[0].mxu0
  %v393 = vpop.f32.mrb[0].mxu0
  %v394 = vadd.f32 %v107, %v393
  %v395 = vpop.f32.mrb[0].mxu0
  %396 = vmatprep.mubr.bf16.mxu0 0
  %397 = vmatmul.mubr.bf16.gmra.mrb[0].mxu0 %v244
  %v398 = vpop.f32.mrb[0].mxu0
  %v399 = vadd.f32 %v107, %v398
  %v400 = vpop.f32.mrb[0].mxu0
  %v401 = vpop.f32.mrb[0].mxu0
  %v402 = vadd.f32 %v107, %v401
  %v403 = vpop.f32.mrb[0].mxu0
  %404 = vmatprep.mubr.bf16.mxu0 0
  %405 = vmatmul.mubr.bf16.gmra.mrb[0].mxu0 %v245
  %v406 = vpop.f32.mrb[0].mxu0
  %v407 = vadd.f32 %v107, %v406
  %v408 = vpop.f32.mrb[0].mxu0
  %v409 = vpop.f32.mrb[0].mxu0
  %v410 = vadd.f32 %v107, %v409
  %v411 = vpop.f32.mrb[0].mxu0
  %412 = vmatprep.mubr.bf16.mxu0 0
  %413 = vmatmul.mubr.bf16.gmra.mrb[0].mxu0 %v246
  %v414 = vpop.f32.mrb[0].mxu0
  %v415 = vadd.f32 %v107, %v414
  %v416 = vpop.f32.mrb[0].mxu0
  %v417 = vpop.f32.mrb[0].mxu0
  %v418 = vadd.f32 %v107, %v417
  %v419 = vpop.f32.mrb[0].mxu0
  %420 = vmatprep.mubr.bf16.mxu0 0
  %421 = vmatmul.mubr.bf16.gmra.mrb[0].mxu0 %v247
  %v422 = vpop.f32.mrb[0].mxu0
  %v423 = vadd.f32 %v107, %v422
  %v424 = vpop.f32.mrb[0].mxu0
  %v425 = vpop.f32.mrb[0].mxu0
  %v426 = vadd.f32 %v107, %v425
  %v427 = vpop.f32.mrb[0].mxu0
  %428 = vmatprep.mubr.bf16.mxu0 0
  %429 = vmatmul.mubr.bf16.gmra.mrb[0].mxu0 %v248
  %v430 = vpop.f32.mrb[0].mxu0
  %v431 = vadd.f32 %v107, %v430
  %v432 = vpop.f32.mrb[0].mxu0
  %v433 = vpop.f32.mrb[0].mxu0
  %v434 = vadd.f32 %v107, %v433
  %v435 = vpop.f32.mrb[0].mxu0
  %436 = vmatprep.mubr.bf16.mxu0 0
  %437 = vmatmul.mubr.bf16.gmra.mrb[0].mxu0 %v249
  %v438 = vpop.f32.mrb[0].mxu0
  %v439 = vadd.f32 %v107, %v438
  %v440 = vpop.f32.mrb[0].mxu0
  %v441 = vpop.f32.mrb[0].mxu0
  %v442 = vadd.f32 %v107, %v441
  %v443 = vpop.f32.mrb[0].mxu0
  %444 = vmatprep.mubr.bf16.mxu0 0
  %445 = vmatmul.mubr.bf16.gmra.mrb[0].mxu0 %v250
  %v446 = vpop.f32.mrb[0].mxu0
  %v447 = vadd.f32 %v107, %v446
  %v448 = vpop.f32.mrb[0].mxu0
  %v449 = vpop.f32.mrb[0].mxu0
  %v450 = vadd.f32 %v107, %v449
  %v451 = vpop.f32.mrb[0].mxu0
  %452 = vmatprep.mubr.bf16.mxu0 0
  %453 = vmatmul.mubr.bf16.gmra.mrb[0].mxu0 %v251
  %v454 = vpop.f32.mrb[0].mxu0
  %v455 = vadd.f32 %v107, %v454
  %v456 = vpop.f32.mrb[0].mxu0
  %v457 = vpop.f32.mrb[0].mxu0
  %v458 = vadd.f32 %v107, %v457
  %v459 = vpop.f32.mrb[0].mxu0
  %460 = vmatprep.mubr.bf16.mxu0 0
  %461 = vmatmul.mubr.bf16.gmra.mrb[0].mxu0 %v252
  %v462 = vpop.f32.mrb[0].mxu0
  %v463 = vadd.f32 %v107, %v462
  %v464 = vpop.f32.mrb[0].mxu0
  %v465 = vpop.f32.mrb[0].mxu0
  %v466 = vadd.f32 %v107, %v465
  %v467 = vpop.f32.mrb[0].mxu0
  %468 = vmatprep.mubr.bf16.mxu0 0
  %469 = vmatmul.mubr.bf16.gmra.mrb[0].mxu0 %v253
  %v470 = vpop.f32.mrb[0].mxu0
  %v471 = vadd.f32 %v107, %v470
  %v472 = vpop.f32.mrb[0].mxu0
  %v473 = vpop.f32.mrb[0].mxu0
  %v474 = vadd.f32 %v107, %v473
  %v475 = vpop.f32.mrb[0].mxu0
  %476 = vmatprep.mubr.bf16.mxu0 0
  %477 = vmatmul.mubr.bf16.gmra.mrb[0].mxu0 %v254
  %v478 = vpop.f32.mrb[0].mxu0
  %v479 = vadd.f32 %v107, %v478
  %v480 = vpop.f32.mrb[0].mxu0
  %v481 = vpop.f32.mrb[0].mxu0
  %v482 = vadd.f32 %v107, %v481
  %v483 = vpop.f32.mrb[0].mxu0
  %484 = vmatprep.mubr.bf16.mxu0 0
  %485 = vmatmul.mubr.bf16.gmra.mrb[0].mxu0 %v255
  %v486 = vpop.f32.mrb[0].mxu0
  %v487 = vadd.f32 %v107, %v486
  %v488 = vpop.f32.mrb[0].mxu0
  %v489 = vpop.f32.mrb[0].mxu0
  %v490 = vadd.f32 %v107, %v489
  %v491 = vpop.f32.mrb[0].mxu0
  %492 = vmatprep.mubr.bf16.mxu0 0
  %493 = vmatmul.mubr.bf16.gmra.mrb[0].mxu0 %v256
  %v494 = vpop.f32.mrb[0].mxu0
  %v495 = vadd.f32 %v107, %v494
  %v496 = vpop.f32.mrb[0].mxu0
  %v497 = vpop.f32.mrb[0].mxu0
  %v498 = vadd.f32 %v107, %v497
  %v499 = vpop.f32.mrb[0].mxu0
  %500 = vmatprep.mubr.bf16.mxu0 0
  %501 = vmatmul.mubr.bf16.gmra.mrb[0].mxu0 %v257
  %v502 = vpop.f32.mrb[0].mxu0
  %v503 = vadd.f32 %v107, %v502
  %v504 = vpop.f32.mrb[0].mxu0
  %v505 = vpop.f32.mrb[0].mxu0
  %v506 = vadd.f32 %v107, %v505
  %v507 = vpop.f32.mrb[0].mxu0
  %508 = vmatprep.mubr.bf16.mxu0 0
  %509 = vmatmul.mubr.bf16.gmra.mrb[0].mxu0 %v258
  %v510 = vpop.f32.mrb[0].mxu0
  %v511 = vadd.f32 %v107, %v510
  %v512 = vpop.f32.mrb[0].mxu0
  %v513 = vpop.f32.mrb[0].mxu0
  %v514 = vadd.f32 %v107, %v513
  %v515 = vpop.f32.mrb[0].mxu0
  %516 = vmatprep.mubr.bf16.mxu0 0
  %517 = vmatmul.mubr.bf16.gmra.mrb[0].mxu0 %v259
  %v518 = vpop.f32.mrb[0].mxu0
  %v519 = vadd.f32 %v107, %v518
  %v520 = vpop.f32.mrb[0].mxu0
  %v521 = vpop.f32.mrb[0].mxu0
  %v522 = vadd.f32 %v107, %v521
  %v523 = vpop.f32.mrb[0].mxu0
  %524 = vmatprep.mubr.bf16.mxu0 0
  %525 = vmatmul.mubr.bf16.gmra.mrb[0].mxu0 %v260
  %v526 = vpop.f32.mrb[0].mxu0
  %v527 = vadd.f32 %v107, %v526
  %v528 = vpop.f32.mrb[0].mxu0
  %v529 = vpop.f32.mrb[0].mxu0
  %v530 = vadd.f32 %v107, %v529
  %v531 = vpop.f32.mrb[0].mxu0
  %532 = vmatprep.mubr.bf16.mxu0 0
  %533 = vmatmul.mubr.bf16.gmra.mrb[0].mxu0 %v261
  %v534 = vpop.f32.mrb[0].mxu0
  %v535 = vadd.f32 %v107, %v534
  %v536 = vpop.f32.mrb[0].mxu0
  %v537 = vpop.f32.mrb[0].mxu0
  %v538 = vadd.f32 %v107, %v537
  %v539 = vpop.f32.mrb[0].mxu0
  %540 = vmatprep.mubr.bf16.mxu0 0
  %541 = vmatmul.mubr.bf16.gmra.mrb[0].mxu0 %v262
  %v542 = vpop.f32.mrb[0].mxu0
  %v543 = vadd.f32 %v107, %v542
  %v544 = vpop.f32.mrb[0].mxu0
  %v545 = vpop.f32.mrb[0].mxu0
  %v546 = vadd.f32 %v107, %v545
  %v547 = vpop.f32.mrb[0].mxu0
  %548 = vmatprep.mubr.bf16.mxu0 0
  %549 = vmatmul.mubr.bf16.gmra.mrb[0].mxu0 %v263
  %v550 = vpop.f32.mrb[0].mxu0
  %v551 = vadd.f32 %v107, %v550
  %v552 = vpop.f32.mrb[0].mxu0
  %v553 = vpop.f32.mrb[0].mxu0
  %v554 = vadd.f32 %v107, %v553
  %v555 = vpop.f32.mrb[0].mxu0
  %556 = vmatprep.mubr.bf16.mxu0 0
  %557 = vmatmul.mubr.bf16.gmra.mrb[0].mxu0 %v264
  %v558 = vpop.f32.mrb[0].mxu0
  %v559 = vadd.f32 %v107, %v558
  %v560 = vpop.f32.mrb[0].mxu0
  %v561 = vpop.f32.mrb[0].mxu0
  %v562 = vadd.f32 %v107, %v561
  %v563 = vpop.f32.mrb[0].mxu0
  %564 = vmatprep.mubr.bf16.mxu0 0
  %565 = vmatmul.mubr.bf16.gmra.mrb[0].mxu0 %v265
  %v566 = vpop.f32.mrb[0].mxu0
  %v567 = vadd.f32 %v107, %v566
  %v568 = vpop.f32.mrb[0].mxu0
  %v569 = vpop.f32.mrb[0].mxu0
  %v570 = vadd.f32 %v107, %v569
  %v571 = vpop.f32.mrb[0].mxu0
  %572 = vmatprep.mubr.bf16.mxu0 0
  %573 = vmatmul.mubr.bf16.gmra.mrb[0].mxu0 %v266
  %v574 = vpop.f32.mrb[0].mxu0
  %v575 = vadd.f32 %v107, %v574
  %v576 = vpop.f32.mrb[0].mxu0
  %v577 = vpop.f32.mrb[0].mxu0
  %v578 = vadd.f32 %v107, %v577
  %v579 = vpop.f32.mrb[0].mxu0
  %580 = vmatprep.mubr.bf16.mxu0 0
  %581 = vmatmul.mubr.bf16.gmra.mrb[0].mxu0 %v267
  %v582 = vpop.f32.mrb[0].mxu0
  %v583 = vadd.f32 %v107, %v582
  %v584 = vpop.f32.mrb[0].mxu0
  %v585 = vpop.f32.mrb[0].mxu0
  %v586 = vadd.f32 %v107, %v585
  %v587 = vpop.f32.mrb[0].mxu0
  %588 = vdwg.mxu0
  %v589 = vmax.f32 %v335, 0.0
  %v590 = vmax.f32 %v338, 0.0
  %v591 = vmax.f32 %v343, 0.0
  %v592 = vmax.f32 %v346, 0.0
  %v593 = vmax.f32 %v351, 0.0
  %v594 = vmax.f32 %v354, 0.0
  %v595 = vmax.f32 %v359, 0.0
  %v596 = vmax.f32 %v362, 0.0
  %v597 = vmax.f32 %v367, 0.0
  %v598 = vmax.f32 %v370, 0.0
  %v599 = vmax.f32 %v375, 0.0
  %v600 = vmax.f32 %v378, 0.0
  %v601 = vmax.f32 %v383, 0.0
  %v602 = vmax.f32 %v386, 0.0
  %v603 = vmax.f32 %v391, 0.0
  %v604 = vmax.f32 %v394, 0.0
  %v605 = vmax.f32 %v399, 0.0
  %v606 = vmax.f32 %v402, 0.0
  %v607 = vmax.f32 %v407, 0.0
  %v608 = vmax.f32 %v410, 0.0
  %v609 = vmax.f32 %v415, 0.0
  %v610 = vmax.f32 %v418, 0.0
  %v611 = vmax.f32 %v423, 0.0
  %v612 = vmax.f32 %v426, 0.0
  %v613 = vmax.f32 %v431, 0.0
  %v614 = vmax.f32 %v434, 0.0
  %v615 = vmax.f32 %v439, 0.0
  %v616 = vmax.f32 %v442, 0.0
  %v617 = vmax.f32 %v447, 0.0
  %v618 = vmax.f32 %v450, 0.0
  %v619 = vmax.f32 %v455, 0.0
  %v620 = vmax.f32 %v458, 0.0
  %v621 = vmax.f32 %v463, 0.0
  %v622 = vmax.f32 %v466, 0.0
  %v623 = vmax.f32 %v471, 0.0
  %v624 = vmax.f32 %v474, 0.0
  %v625 = vmax.f32 %v479, 0.0
  %v626 = vmax.f32 %v482, 0.0
  %v627 = vmax.f32 %v487, 0.0
  %v628 = vmax.f32 %v490, 0.0
  %v629 = vmax.f32 %v495, 0.0
  %v630 = vmax.f32 %v498, 0.0
  %v631 = vmax.f32 %v503, 0.0
  %v632 = vmax.f32 %v506, 0.0
  %v633 = vmax.f32 %v511, 0.0
  %v634 = vmax.f32 %v514, 0.0
  %v635 = vmax.f32 %v519, 0.0
  %v636 = vmax.f32 %v522, 0.0
  %v637 = vmax.f32 %v527, 0.0
  %v638 = vmax.f32 %v530, 0.0
  %v639 = vmax.f32 %v535, 0.0
  %v640 = vmax.f32 %v538, 0.0
  %v641 = vmax.f32 %v543, 0.0
  %v642 = vmax.f32 %v546, 0.0
  %v643 = vmax.f32 %v551, 0.0
  %v644 = vmax.f32 %v554, 0.0
  %v645 = vmax.f32 %v559, 0.0
  %v646 = vmax.f32 %v562, 0.0
  %v647 = vmax.f32 %v567, 0.0
  %v648 = vmax.f32 %v570, 0.0
  %v649 = vmax.f32 %v575, 0.0
  %v650 = vmax.f32 %v578, 0.0
  %v651 = vmax.f32 %v583, 0.0
  %v652 = vmax.f32 %v586, 0.0
  %653 = vst [vmem:[#allocation2] sm:$0xff] %v589
  %654 = vst [vmem:[#allocation2 + $0x8] sm:$0xff] %v590
  %655 = vst [vmem:[#allocation2 + $0x10] sm:$0xff] %v591
  %656 = vst [vmem:[#allocation2 + $0x18] sm:$0xff] %v592
  %657 = vst [vmem:[#allocation2 + $0x20] sm:$0xff] %v593
  %658 = vst [vmem:[#allocation2 + $0x28] sm:$0xff] %v594
  %659 = vst [vmem:[#allocation2 + $0x30] sm:$0xff] %v595
  %660 = vst [vmem:[#allocation2 + $0x38] sm:$0xff] %v596
  %661 = vst [vmem:[#allocation2 + $0x40] sm:$0xff] %v597
  %662 = vst [vmem:[#allocation2 + $0x48] sm:$0xff] %v598
  %663 = vst [vmem:[#allocation2 + $0x50] sm:$0xff] %v599
  %664 = vst [vmem:[#allocation2 + $0x58] sm:$0xff] %v600
  %665 = vst [vmem:[#allocation2 + $0x60] sm:$0xff] %v601
  %666 = vst [vmem:[#allocation2 + $0x68] sm:$0xff] %v602
  %667 = vst [vmem:[#allocation2 + $0x70] sm:$0xff] %v603
  %668 = vst [vmem:[#allocation2 + $0x78] sm:$0xff] %v604
  %669 = vst [vmem:[#allocation2 + $0x80] sm:$0xff] %v605
  %670 = vst [vmem:[#allocation2 + $0x88] sm:$0xff] %v606
  %671 = vst [vmem:[#allocation2 + $0x90] sm:$0xff] %v607
  %672 = vst [vmem:[#allocation2 + $0x98] sm:$0xff] %v608
  %673 = vst [vmem:[#allocation2 + $0xa0] sm:$0xff] %v609
  %674 = vst [vmem:[#allocation2 + $0xa8] sm:$0xff] %v610
  %675 = vst [vmem:[#allocation2 + $0xb0] sm:$0xff] %v611
  %676 = vst [vmem:[#allocation2 + $0xb8] sm:$0xff] %v612
  %677 = vst [vmem:[#allocation2 + $0xc0] sm:$0xff] %v613
  %678 = vst [vmem:[#allocation2 + $0xc8] sm:$0xff] %v614
  %679 = vst [vmem:[#allocation2 + $0xd0] sm:$0xff] %v615
  %680 = vst [vmem:[#allocation2 + $0xd8] sm:$0xff] %v616
  %681 = vst [vmem:[#allocation2 + $0xe0] sm:$0xff] %v617
  %682 = vst [vmem:[#allocation2 + $0xe8] sm:$0xff] %v618
  %683 = vst [vmem:[#allocation2 + $0xf0] sm:$0xff] %v619
  %684 = vst [vmem:[#allocation2 + $0xf8] sm:$0xff] %v620
  %685 = vst [vmem:[#allocation2 + $0x100] sm:$0xff] %v621
  %686 = vst [vmem:[#allocation2 + $0x108] sm:$0xff] %v622
  %687 = vst [vmem:[#allocation2 + $0x110] sm:$0xff] %v623
  %688 = vst [vmem:[#allocation2 + $0x118] sm:$0xff] %v624
  %689 = vst [vmem:[#allocation2 + $0x120] sm:$0xff] %v625
  %690 = vst [vmem:[#allocation2 + $0x128] sm:$0xff] %v626
  %691 = vst [vmem:[#allocation2 + $0x130] sm:$0xff] %v627
  %692 = vst [vmem:[#allocation2 + $0x138] sm:$0xff] %v628
  %693 = vst [vmem:[#allocation2 + $0x140] sm:$0xff] %v629
  %694 = vst [vmem:[#allocation2 + $0x148] sm:$0xff] %v630
  %695 = vst [vmem:[#allocation2 + $0x150] sm:$0xff] %v631
  %696 = vst [vmem:[#allocation2 + $0x158] sm:$0xff] %v632
  %697 = vst [vmem:[#allocation2 + $0x160] sm:$0xff] %v633
  %698 = vst [vmem:[#allocation2 + $0x168] sm:$0xff] %v634
  %699 = vst [vmem:[#allocation2 + $0x170] sm:$0xff] %v635
  %700 = vst [vmem:[#allocation2 + $0x178] sm:$0xff] %v636
  %701 = vst [vmem:[#allocation2 + $0x180] sm:$0xff] %v637
  %702 = vst [vmem:[#allocation2 + $0x188] sm:$0xff] %v638
  %703 = vst [vmem:[#allocation2 + $0x190] sm:$0xff] %v639
  %704 = vst [vmem:[#allocation2 + $0x198] sm:$0xff] %v640
  %705 = vst [vmem:[#allocation2 + $0x1a0] sm:$0xff] %v641
  %706 = vst [vmem:[#allocation2 + $0x1a8] sm:$0xff] %v642
  %707 = vst [vmem:[#allocation2 + $0x1b0] sm:$0xff] %v643
  %708 = vst [vmem:[#allocation2 + $0x1b8] sm:$0xff] %v644
  %709 = vst [vmem:[#allocation2 + $0x1c0] sm:$0xff] %v645
  %710 = vst [vmem:[#allocation2 + $0x1c8] sm:$0xff] %v646
  %711 = vst [vmem:[#allocation2 + $0x1d0] sm:$0xff] %v647
  %712 = vst [vmem:[#allocation2 + $0x1d8] sm:$0xff] %v648
  %713 = vst [vmem:[#allocation2 + $0x1e0] sm:$0xff] %v649
  %714 = vst [vmem:[#allocation2 + $0x1e8] sm:$0xff] %v650
  %715 = vst [vmem:[#allocation2 + $0x1f0] sm:$0xff] %v651
  %716 = vst [vmem:[#allocation2 + $0x1f8] sm:$0xff] %v652
  %v717 = vlaneseq
  %v718 = vshrl.u32 %v717, 7
  %v719 = vadd.s32 %v718, 8
  %v720 = vadd.s32 %v718, 16
  %v721 = vadd.s32 %v718, 24
  %v722 = vadd.s32 %v718, 32
  %v723 = vadd.s32 %v718, 40
  %v724 = vadd.s32 %v718, 48
  %v725 = vadd.s32 %v718, 56
  %vm726 = vcmp.ge.s32.totalorder %v718, 8
  %vm727 = vcmp.ge.s32.totalorder %v719, 8
  %vm728 = vcmp.ge.s32.totalorder %v720, 8
  %vm729 = vcmp.ge.s32.totalorder %v721, 8
  %vm730 = vcmp.ge.s32.totalorder %v722, 8
  %vm731 = vcmp.ge.s32.totalorder %v723, 8
  %vm732 = vcmp.ge.s32.totalorder %v724, 8
  %vm733 = vcmp.ge.s32.totalorder %v725, 8
  %v734 = vsel %vm726, 1, 0
  %v735 = vsel %vm727, 1, 0
  %v736 = vsel %vm728, 1, 0
  %v737 = vsel %vm729, 1, 0
  %v738 = vsel %vm730, 1, 0
  %v739 = vsel %vm731, 1, 0
  %v740 = vsel %vm732, 1, 0
  %v741 = vsel %vm733, 1, 0
  %v742 = vcvt.s32.f32 %v734
  %v743 = vcvt.s32.f32 %v735
  %v744 = vcvt.s32.f32 %v736
  %v745 = vcvt.s32.f32 %v737
  %v746 = vcvt.s32.f32 %v738
  %v747 = vcvt.s32.f32 %v739
  %v748 = vcvt.s32.f32 %v740
  %v749 = vcvt.s32.f32 %v741
  %vm750 = vcmp.lt.s32.totalorder %v718, 0
  %v751 = vsub.s32 0, %v718
  %v752 = vsel %vm750, %v751, %v718
  %v753 = vshrl.u32 %v752, 3
  %v754 = vand.u32 %v752, 7
  %v755 = vsub.s32 0, %v754
  %v756 = vsel %vm750, %v755, %v754
  %vm757 = vcmp.lt.s32.totalorder %v719, 0
  %v758 = vsub.s32 0, %v719
  %v759 = vsel %vm757, %v758, %v719
  %v760 = vshrl.u32 %v759, 3
  %v761 = vand.u32 %v759, 7
  %v762 = vsub.s32 0, %v761
  %v763 = vsel %vm757, %v762, %v761
  %vm764 = vcmp.lt.s32.totalorder %v720, 0
  %v765 = vsub.s32 0, %v720
  %v766 = vsel %vm764, %v765, %v720
  %v767 = vshrl.u32 %v766, 3
  %v768 = vand.u32 %v766, 7
  %v769 = vsub.s32 0, %v768
  %v770 = vsel %vm764, %v769, %v768
  %vm771 = vcmp.lt.s32.totalorder %v721, 0
  %v772 = vsub.s32 0, %v721
  %v773 = vsel %vm771, %v772, %v721
  %v774 = vshrl.u32 %v773, 3
  %v775 = vand.u32 %v773, 7
  %v776 = vsub.s32 0, %v775
  %v777 = vsel %vm771, %v776, %v775
  %vm778 = vcmp.lt.s32.totalorder %v722, 0
  %v779 = vsub.s32 0, %v722
  %v780 = vsel %vm778, %v779, %v722
  %v781 = vshrl.u32 %v780, 3
  %v782 = vand.u32 %v780, 7
  %v783 = vsub.s32 0, %v782
  %v784 = vsel %vm778, %v783, %v782
  %vm785 = vcmp.lt.s32.totalorder %v723, 0
  %v786 = vsub.s32 0, %v723
  %v787 = vsel %vm785, %v786, %v723
  %v788 = vshrl.u32 %v787, 3
  %v789 = vand.u32 %v787, 7
  %v790 = vsub.s32 0, %v789
  %v791 = vsel %vm785, %v790, %v789
  %vm792 = vcmp.lt.s32.totalorder %v724, 0
  %v793 = vsub.s32 0, %v724
  %v794 = vsel %vm792, %v793, %v724
  %v795 = vshrl.u32 %v794, 3
  %v796 = vand.u32 %v794, 7
  %v797 = vsub.s32 0, %v796
  %v798 = vsel %vm792, %v797, %v796
  %vm799 = vcmp.lt.s32.totalorder %v725, 0
  %v800 = vsub.s32 0, %v725
  %v801 = vsel %vm799, %v800, %v725
  %v802 = vshrl.u32 %v801, 3
  %v803 = vand.u32 %v801, 7
  %v804 = vsub.s32 0, %v803
  %v805 = vsel %vm799, %v804, %v803
  %vm806 = vcmp.ne.s32.totalorder %v756, 0
  %vm807 = vcmp.ne.s32.totalorder %v763, 0
  %vm808 = vcmp.ne.s32.totalorder %v770, 0
  %vm809 = vcmp.ne.s32.totalorder %v777, 0
  %vm810 = vcmp.ne.s32.totalorder %v784, 0
  %vm811 = vcmp.ne.s32.totalorder %v791, 0
  %vm812 = vcmp.ne.s32.totalorder %v798, 0
  %vm813 = vcmp.ne.s32.totalorder %v805, 0
  %vm814 = vcmp.lt.s32.totalorder %v756, 0
  %vm815 = vcmp.lt.s32.totalorder %v763, 0
  %vm816 = vcmp.lt.s32.totalorder %v770, 0
  %vm817 = vcmp.lt.s32.totalorder %v777, 0
  %vm818 = vcmp.lt.s32.totalorder %v784, 0
  %vm819 = vcmp.lt.s32.totalorder %v791, 0
  %vm820 = vcmp.lt.s32.totalorder %v798, 0
  %vm821 = vcmp.lt.s32.totalorder %v805, 0
  %vm822 = vmand %vm814, %vm806
  %vm823 = vmand %vm815, %vm807
  %vm824 = vmand %vm816, %vm808
  %vm825 = vmand %vm817, %vm809
  %vm826 = vmand %vm818, %vm810
  %vm827 = vmand %vm819, %vm811
  %vm828 = vmand %vm820, %vm812
  %vm829 = vmand %vm821, %vm813
  %v830 = vadd.s32 %v756, 8
  %v831 = vadd.s32 %v763, 8
  %v832 = vadd.s32 %v770, 8
  %v833 = vadd.s32 %v777, 8
  %v834 = vadd.s32 %v784, 8
  %v835 = vadd.s32 %v791, 8
  %v836 = vadd.s32 %v798, 8
  %v837 = vadd.s32 %v805, 8
  %v838 = vsel %vm822, %v830, %v756
  %v839 = vsel %vm823, %v831, %v763
  %v840 = vsel %vm824, %v832, %v770
  %v841 = vsel %vm825, %v833, %v777
  %v842 = vsel %vm826, %v834, %v784
  %v843 = vsel %vm827, %v835, %v791
  %v844 = vsel %vm828, %v836, %v798
  %v845 = vsel %vm829, %v837, %v805
  %vm846 = vcmp.gt.s32.totalorder %v838, 0
  %vm847 = vcmp.gt.s32.totalorder %v839, 0
  %vm848 = vcmp.gt.s32.totalorder %v840, 0
  %vm849 = vcmp.gt.s32.totalorder %v841, 0
  %vm850 = vcmp.gt.s32.totalorder %v842, 0
  %vm851 = vcmp.gt.s32.totalorder %v843, 0
  %vm852 = vcmp.gt.s32.totalorder %v844, 0
  %vm853 = vcmp.gt.s32.totalorder %v845, 0
  %v854 = vsel %vm846, 1, 0
  %v855 = vsel %vm847, 1, 0
  %v856 = vsel %vm848, 1, 0
  %v857 = vsel %vm849, 1, 0
  %v858 = vsel %vm850, 1, 0
  %v859 = vsel %vm851, 1, 0
  %v860 = vsel %vm852, 1, 0
  %v861 = vsel %vm853, 1, 0
  %v862 = vcvt.s32.f32 %v854
  %v863 = vcvt.s32.f32 %v855
  %v864 = vcvt.s32.f32 %v856
  %v865 = vcvt.s32.f32 %v857
  %v866 = vcvt.s32.f32 %v858
  %v867 = vcvt.s32.f32 %v859
  %v868 = vcvt.s32.f32 %v860
  %v869 = vcvt.s32.f32 %v861
  %v870 = vld [vmem:[#allocation2 + $0xb7] sm:$0xff]
  %v871 = vld [vmem:[#allocation2 + $0xbf] sm:$0xff]
  %v872 = vld [vmem:[#allocation2 + $0xc7] sm:$0xff]
  %v873 = vld [vmem:[#allocation2 + $0xcf] sm:$0xff]
  %v874 = vld [vmem:[#allocation2 + $0xd7] sm:$0xff]
  %v875 = vld [vmem:[#allocation2 + $0xdf] sm:$0xff]
  %v876 = vld [vmem:[#allocation2 + $0xe7] sm:$0xff]
  %v877 = vld [vmem:[#allocation2 + $0xef] sm:$0xff]
  %v878 = vld [vmem:[#allocation2 + $0x1b7] sm:$0xff]
  %v879 = vld [vmem:[#allocation2 + $0x1bf] sm:$0xff]
  %v880 = vld [vmem:[#allocation2 + $0x1c7] sm:$0xff]
  %v881 = vld [vmem:[#allocation2 + $0x1cf] sm:$0xff]
  %v882 = vld [vmem:[#allocation2 + $0x1d7] sm:$0xff]
  %v883 = vld [vmem:[#allocation2 + $0x1df] sm:$0xff]
  %v884 = vld [vmem:[#allocation2 + $0x1e7] sm:$0xff]
  %v885 = vld [vmem:[#allocation2 + $0x1ef] sm:$0xff]
  %v886 = vmul.f32 %v742, %v862
  %v887 = vmul.f32 %v743, %v863
  %v888 = vmul.f32 %v744, %v864
  %v889 = vmul.f32 %v745, %v865
  %v890 = vmul.f32 %v746, %v866
  %v891 = vmul.f32 %v747, %v867
  %v892 = vmul.f32 %v748, %v868
  %v893 = vmul.f32 %v749, %v869
  %v894 = vmul.f32 %v870, %v886
  %v895 = vmul.f32 %v871, %v887
  %v896 = vmul.f32 %v872, %v888
  %v897 = vmul.f32 %v873, %v889
  %v898 = vmul.f32 %v874, %v890
  %v899 = vmul.f32 %v875, %v891
  %v900 = vmul.f32 %v876, %v892
  %v901 = vmul.f32 %v877, %v893
  %v902 = vmul.f32 %v878, %v886
  %v903 = vmul.f32 %v879, %v887
  %v904 = vmul.f32 %v880, %v888
  %v905 = vmul.f32 %v881, %v889
  %v906 = vmul.f32 %v882, %v890
  %v907 = vmul.f32 %v883, %v891
  %v908 = vmul.f32 %v884, %v892
  %v909 = vmul.f32 %v885, %v893
  %v910 = vld [vmem:[%s1 + $0x88] sm:$0xff]
  %v911 = vld [vmem:[%s1 + $0x90] sm:$0xff]
  %v912 = vld [vmem:[%s1 + $0x98] sm:$0xff]
  %v913 = vld [vmem:[%s1 + $0xa0] sm:$0xff]
  %v914 = vld [vmem:[%s1 + $0xa8] sm:$0xff]
  %v915 = vld [vmem:[%s1 + $0xb0] sm:$0xff]
  %v916 = vld [vmem:[%s1 + $0xb8] sm:$0xff]
  %v917 = vld [vmem:[%s1 + $0xc0] sm:$0xff]
  %v918 = vld [vmem:[%s1 + $0xc8] sm:$0xff]
  %v919 = vld [vmem:[%s1 + $0xd0] sm:$0xff]
  %v920 = vld [vmem:[%s1 + $0xd8] sm:$0xff]
  %v921 = vld [vmem:[%s1 + $0xe0] sm:$0xff]
  %v922 = vld [vmem:[%s1 + $0xe8] sm:$0xff]
  %v923 = vld [vmem:[%s1 + $0xf0] sm:$0xff]
  %v924 = vld [vmem:[%s1 + $0xf8] sm:$0xff]
  %v925 = vld [vmem:[%s1 + $0x100] sm:$0xff]
  %v926 = vld [vmem:[#allocation2 + $0x78] sm:$0xff]
  %v927 = vld [vmem:[#allocation2 + $0x80] sm:$0xff]
  %v928 = vld [vmem:[#allocation2 + $0x88] sm:$0xff]
  %v929 = vld [vmem:[#allocation2 + $0x90] sm:$0xff]
  %v930 = vld [vmem:[#allocation2 + $0x98] sm:$0xff]
  %v931 = vld [vmem:[#allocation2 + $0xa0] sm:$0xff]
  %v932 = vld [vmem:[#allocation2 + $0xa8] sm:$0xff]
  %v933 = vld [vmem:[#allocation2 + $0xb0] sm:$0xff]
  %v934 = vld [vmem:[#allocation2 + $0x178] sm:$0xff]
  %v935 = vld [vmem:[#allocation2 + $0x180] sm:$0xff]
  %v936 = vld [vmem:[#allocation2 + $0x188] sm:$0xff]
  %v937 = vld [vmem:[#allocation2 + $0x190] sm:$0xff]
  %v938 = vld [vmem:[#allocation2 + $0x198] sm:$0xff]
  %v939 = vld [vmem:[#allocation2 + $0x1a0] sm:$0xff]
  %v940 = vld [vmem:[#allocation2 + $0x1a8] sm:$0xff]
  %v941 = vld [vmem:[#allocation2 + $0x1b0] sm:$0xff]
  %v942 = vmul.f32 %v926, %v742
  %v943 = vmul.f32 %v927, %v743
  %v944 = vmul.f32 %v928, %v744
  %v945 = vmul.f32 %v929, %v745
  %v946 = vmul.f32 %v930, %v746
  %v947 = vmul.f32 %v931, %v747
  %v948 = vmul.f32 %v932, %v748
  %v949 = vmul.f32 %v933, %v749
  %v950 = vmul.f32 %v934, %v742
  %v951 = vmul.f32 %v935, %v743
  %v952 = vmul.f32 %v936, %v744
  %v953 = vmul.f32 %v937, %v745
  %v954 = vmul.f32 %v938, %v746
  %v955 = vmul.f32 %v939, %v747
  %v956 = vmul.f32 %v940, %v748
  %v957 = vmul.f32 %v941, %v749
  %v958 = vld [vmem:[%s1 + $0x108] sm:$0xff]
  %959 = vmatprep.subr.mxu0 0.0
  %960 = vmatpush1.msra.mxu0 %v911
  %961 = vmatprep.subr.mxu0 0.0
  %962 = vmatpush1.msra.mxu0 %v912
  %963 = vmatprep.subr.mxu0 0.0
  %964 = vmatpush1.msra.mxu0 %v913
  %965 = vmatprep.subr.mxu0 0.0
  %966 = vmatpush1.msra.mxu0 %v914
  %967 = vmatprep.subr.mxu0 0.0
  %968 = vmatpush1.msra.mxu0 %v915
  %969 = vmatprep.subr.mxu0 0.0
  %970 = vmatpush1.msra.mxu0 %v916
  %971 = vmatprep.subr.mxu0 0.0
  %972 = vmatpush1.msra.mxu0 %v917
  %973 = vmatprep.subr.mxu0 0.0
  %974 = vmatpush1.msra.mxu0 %v918
  %975 = vmatprep.subr.mxu0 0.0
  %976 = vmatpush1.msra.mxu0 %v919
  %977 = vmatprep.subr.mxu0 0.0
  %978 = vmatpush1.msra.mxu0 %v920
  %979 = vmatprep.subr.mxu0 0.0
  %980 = vmatpush1.msra.mxu0 %v921
  %981 = vmatprep.subr.mxu0 0.0
  %982 = vmatpush1.msra.mxu0 %v922
  %983 = vmatprep.subr.mxu0 0.0
  %984 = vmatpush1.msra.mxu0 %v923
  %985 = vmatprep.subr.mxu0 0.0
  %986 = vmatpush1.msra.mxu0 %v924
  %987 = vmatprep.subr.mxu0 0.0
  %988 = vmatpush1.msra.mxu0 %v925
  %989 = vmatprep.subr.mxu0 0.0
  %990 = vmatpush1.msra.mxu0 %v958
  %991 = vmatprep.subr.mxu0 0.0
  %992 = vmatpush1.msra.mxu0 0.0
  %993 = vmatprep.subr.mxu0 0.0
  %994 = vmatpush1.msra.mxu0 0.0
  %995 = vmatprep.subr.mxu0 0.0
  %996 = vmatpush1.msra.mxu0 0.0
  %997 = vmatprep.subr.mxu0 0.0
  %998 = vmatpush1.msra.mxu0 0.0
  %999 = vmatprep.subr.mxu0 0.0
  %1000 = vmatpush1.msra.mxu0 0.0
  %1001 = vmatprep.subr.mxu0 0.0
  %1002 = vmatpush1.msra.mxu0 0.0
  %1003 = vmatprep.subr.mxu0 0.0
  %1004 = vmatpush1.msra.mxu0 0.0
  %1005 = vmatprep.subr.mxu0 0.0
  %1006 = vmatpush1.msra.mxu0 0.0
  %1007 = vmatprep.subr.mxu0 0.0
  %1008 = vmatpush1.msra.mxu0 0.0
  %1009 = vmatprep.subr.mxu0 0.0
  %1010 = vmatpush1.msra.mxu0 0.0
  %1011 = vmatprep.subr.mxu0 0.0
  %1012 = vmatpush1.msra.mxu0 0.0
  %1013 = vmatprep.subr.mxu0 0.0
  %1014 = vmatpush1.msra.mxu0 0.0
  %1015 = vmatprep.subr.mxu0 0.0
  %1016 = vmatpush1.msra.mxu0 0.0
  %1017 = vmatprep.subr.mxu0 0.0
  %1018 = vmatpush1.msra.mxu0 0.0
  %1019 = vmatprep.subr.mxu0 0.0
  %1020 = vmatpush1.msra.mxu0 0.0
  %1021 = vmatprep.subr.mxu0 0.0
  %1022 = vmatpush1.msra.mxu0 0.0
  %1023 = vmatprep.mubr.f32.mxu0 0.0
  %1024 = vmatmul.mubr.f32.gmra.mrb[0].mxu0 %v942
  %v1025 = vpop.f32.mrb[0].mxu0
  %v1026 = vadd.f32 0.0, %v1025
  %v1027 = vpop.f32.mrb[0].mxu0
  %1028 = vmatprep.mubr.f32.mxu0 0.0
  %1029 = vmatmul.mubr.f32.gmra.mrb[0].mxu0 %v943
  %v1030 = vpop.f32.mrb[0].mxu0
  %v1031 = vadd.f32 0.0, %v1030
  %v1032 = vpop.f32.mrb[0].mxu0
  %1033 = vmatprep.mubr.f32.mxu0 0.0
  %1034 = vmatmul.mubr.f32.gmra.mrb[0].mxu0 %v944
  %v1035 = vpop.f32.mrb[0].mxu0
  %v1036 = vadd.f32 0.0, %v1035
  %v1037 = vpop.f32.mrb[0].mxu0
  %1038 = vmatprep.mubr.f32.mxu0 0.0
  %1039 = vmatmul.mubr.f32.gmra.mrb[0].mxu0 %v945
  %v1040 = vpop.f32.mrb[0].mxu0
  %v1041 = vadd.f32 0.0, %v1040
  %v1042 = vpop.f32.mrb[0].mxu0
  %1043 = vmatprep.mubr.f32.mxu0 0.0
  %1044 = vmatmul.mubr.f32.gmra.mrb[0].mxu0 %v946
  %v1045 = vpop.f32.mrb[0].mxu0
  %v1046 = vadd.f32 0.0, %v1045
  %v1047 = vpop.f32.mrb[0].mxu0
  %1048 = vmatprep.mubr.f32.mxu0 0.0
  %1049 = vmatmul.mubr.f32.gmra.mrb[0].mxu0 %v947
  %v1050 = vpop.f32.mrb[0].mxu0
  %v1051 = vadd.f32 0.0, %v1050
  %v1052 = vpop.f32.mrb[0].mxu0
  %1053 = vmatprep.mubr.f32.mxu0 0.0
  %1054 = vmatmul.mubr.f32.gmra.mrb[0].mxu0 %v948
  %v1055 = vpop.f32.mrb[0].mxu0
  %v1056 = vadd.f32 0.0, %v1055
  %v1057 = vpop.f32.mrb[0].mxu0
  %1058 = vmatprep.mubr.f32.mxu0 0.0
  %1059 = vmatmul.mubr.f32.gmra.mrb[0].mxu0 %v949
  %v1060 = vpop.f32.mrb[0].mxu0
  %v1061 = vadd.f32 0.0, %v1060
  %v1062 = vpop.f32.mrb[0].mxu0
  %1063 = vmatprep.mubr.f32.mxu0 0.0
  %1064 = vmatmul.mubr.f32.gmra.mrb[0].mxu0 %v950
  %v1065 = vpop.f32.mrb[0].mxu0
  %v1066 = vadd.f32 0.0, %v1065
  %v1067 = vpop.f32.mrb[0].mxu0
  %1068 = vmatprep.mubr.f32.mxu0 0.0
  %1069 = vmatmul.mubr.f32.gmra.mrb[0].mxu0 %v951
  %v1070 = vpop.f32.mrb[0].mxu0
  %v1071 = vadd.f32 0.0, %v1070
  %v1072 = vpop.f32.mrb[0].mxu0
  %1073 = vmatprep.mubr.f32.mxu0 0.0
  %1074 = vmatmul.mubr.f32.gmra.mrb[0].mxu0 %v952
  %v1075 = vpop.f32.mrb[0].mxu0
  %v1076 = vadd.f32 0.0, %v1075
  %v1077 = vpop.f32.mrb[0].mxu0
  %1078 = vmatprep.mubr.f32.mxu0 0.0
  %1079 = vmatmul.mubr.f32.gmra.mrb[0].mxu0 %v953
  %v1080 = vpop.f32.mrb[0].mxu0
  %v1081 = vadd.f32 0.0, %v1080
  %v1082 = vpop.f32.mrb[0].mxu0
  %1083 = vmatprep.mubr.f32.mxu0 0.0
  %1084 = vmatmul.mubr.f32.gmra.mrb[0].mxu0 %v954
  %v1085 = vpop.f32.mrb[0].mxu0
  %v1086 = vadd.f32 0.0, %v1085
  %v1087 = vpop.f32.mrb[0].mxu0
  %1088 = vmatprep.mubr.f32.mxu0 0.0
  %1089 = vmatmul.mubr.f32.gmra.mrb[0].mxu0 %v955
  %v1090 = vpop.f32.mrb[0].mxu0
  %v1091 = vadd.f32 0.0, %v1090
  %v1092 = vpop.f32.mrb[0].mxu0
  %1093 = vmatprep.mubr.f32.mxu0 0.0
  %1094 = vmatmul.mubr.f32.gmra.mrb[0].mxu0 %v956
  %v1095 = vpop.f32.mrb[0].mxu0
  %v1096 = vadd.f32 0.0, %v1095
  %v1097 = vpop.f32.mrb[0].mxu0
  %1098 = vmatprep.mubr.f32.mxu0 0.0
  %1099 = vmatmul.mubr.f32.gmra.mrb[0].mxu0 %v957
  %v1100 = vpop.f32.mrb[0].mxu0
  %v1101 = vadd.f32 0.0, %v1100
  %v1102 = vpop.f32.mrb[0].mxu0
  %1103 = vdwg.mxu0
  %1104 = vmatprep.subr.mxu0 0.0
  %1105 = vmatpush1.msra.mxu0 %v910
  %1106 = vmatprep.subr.mxu0 0.0
  %1107 = vmatpush1.msra.mxu0 %v911
  %1108 = vmatprep.subr.mxu0 0.0
  %1109 = vmatpush1.msra.mxu0 %v912
  %1110 = vmatprep.subr.mxu0 0.0
  %1111 = vmatpush1.msra.mxu0 %v913
  %1112 = vmatprep.subr.mxu0 0.0
  %1113 = vmatpush1.msra.mxu0 %v914
  %1114 = vmatprep.subr.mxu0 0.0
  %1115 = vmatpush1.msra.mxu0 %v915
  %1116 = vmatprep.subr.mxu0 0.0
  %1117 = vmatpush1.msra.mxu0 %v916
  %1118 = vmatprep.subr.mxu0 0.0
  %1119 = vmatpush1.msra.mxu0 %v917
  %1120 = vmatprep.subr.mxu0 0.0
  %1121 = vmatpush1.msra.mxu0 %v918
  %1122 = vmatprep.subr.mxu0 0.0
  %1123 = vmatpush1.msra.mxu0 %v919
  %1124 = vmatprep.subr.mxu0 0.0
  %1125 = vmatpush1.msra.mxu0 %v920
  %1126 = vmatprep.subr.mxu0 0.0
  %1127 = vmatpush1.msra.mxu0 %v921
  %1128 = vmatprep.subr.mxu0 0.0
  %1129 = vmatpush1.msra.mxu0 %v922
  %1130 = vmatprep.subr.mxu0 0.0
  %1131 = vmatpush1.msra.mxu0 %v923
  %1132 = vmatprep.subr.mxu0 0.0
  %1133 = vmatpush1.msra.mxu0 %v924
  %1134 = vmatprep.subr.mxu0 0.0
  %1135 = vmatpush1.msra.mxu0 %v925
  %1136 = vmatprep.subr.mxu0 0.0
  %1137 = vmatpush1.msra.mxu0 0.0
  %1138 = vmatprep.subr.mxu0 0.0
  %1139 = vmatpush1.msra.mxu0 0.0
  %1140 = vmatprep.subr.mxu0 0.0
  %1141 = vmatpush1.msra.mxu0 0.0
  %1142 = vmatprep.subr.mxu0 0.0
  %1143 = vmatpush1.msra.mxu0 0.0
  %1144 = vmatprep.subr.mxu0 0.0
  %1145 = vmatpush1.msra.mxu0 0.0
  %1146 = vmatprep.subr.mxu0 0.0
  %1147 = vmatpush1.msra.mxu0 0.0
  %1148 = vmatprep.subr.mxu0 0.0
  %1149 = vmatpush1.msra.mxu0 0.0
  %1150 = vmatprep.subr.mxu0 0.0
  %1151 = vmatpush1.msra.mxu0 0.0
  %1152 = vmatprep.subr.mxu0 0.0
  %1153 = vmatpush1.msra.mxu0 0.0
  %1154 = vmatprep.subr.mxu0 0.0
  %1155 = vmatpush1.msra.mxu0 0.0
  %1156 = vmatprep.subr.mxu0 0.0
  %1157 = vmatpush1.msra.mxu0 0.0
  %1158 = vmatprep.subr.mxu0 0.0
  %1159 = vmatpush1.msra.mxu0 0.0
  %1160 = vmatprep.subr.mxu0 0.0
  %1161 = vmatpush1.msra.mxu0 0.0
  %1162 = vmatprep.subr.mxu0 0.0
  %1163 = vmatpush1.msra.mxu0 0.0
  %1164 = vmatprep.subr.mxu0 0.0
  %1165 = vmatpush1.msra.mxu0 0.0
  %1166 = vmatprep.subr.mxu0 0.0
  %1167 = vmatpush1.msra.mxu0 0.0
  %1168 = vmatprep.mubr.f32.mxu0 0.0
  %1169 = vmatmul.mubr.f32.gmra.mrb[0].mxu0 %v894
  %v1170 = vpop.f32.mrb[0].mxu0
  %v1171 = vadd.f32 %v1026, %v1170
  %v1172 = vpop.f32.mrb[0].mxu0
  %1173 = vmatprep.mubr.f32.mxu0 0.0
  %1174 = vmatmul.mubr.f32.gmra.mrb[0].mxu0 %v895
  %v1175 = vpop.f32.mrb[0].mxu0
  %v1176 = vadd.f32 %v1031, %v1175
  %v1177 = vpop.f32.mrb[0].mxu0
  %1178 = vmatprep.mubr.f32.mxu0 0.0
  %1179 = vmatmul.mubr.f32.gmra.mrb[0].mxu0 %v896
  %v1180 = vpop.f32.mrb[0].mxu0
  %v1181 = vadd.f32 %v1036, %v1180
  %v1182 = vpop.f32.mrb[0].mxu0
  %1183 = vmatprep.mubr.f32.mxu0 0.0
  %1184 = vmatmul.mubr.f32.gmra.mrb[0].mxu0 %v897
  %v1185 = vpop.f32.mrb[0].mxu0
  %v1186 = vadd.f32 %v1041, %v1185
  %v1187 = vpop.f32.mrb[0].mxu0
  %1188 = vmatprep.mubr.f32.mxu0 0.0
  %1189 = vmatmul.mubr.f32.gmra.mrb[0].mxu0 %v898
  %v1190 = vpop.f32.mrb[0].mxu0
  %v1191 = vadd.f32 %v1046, %v1190
  %v1192 = vpop.f32.mrb[0].mxu0
  %1193 = vmatprep.mubr.f32.mxu0 0.0
  %1194 = vmatmul.mubr.f32.gmra.mrb[0].mxu0 %v899
  %v1195 = vpop.f32.mrb[0].mxu0
  %v1196 = vadd.f32 %v1051, %v1195
  %v1197 = vpop.f32.mrb[0].mxu0
  %1198 = vmatprep.mubr.f32.mxu0 0.0
  %1199 = vmatmul.mubr.f32.gmra.mrb[0].mxu0 %v900
  %v1200 = vpop.f32.mrb[0].mxu0
  %v1201 = vadd.f32 %v1056, %v1200
  %v1202 = vpop.f32.mrb[0].mxu0
  %1203 = vmatprep.mubr.f32.mxu0 0.0
  %1204 = vmatmul.mubr.f32.gmra.mrb[0].mxu0 %v901
  %v1205 = vpop.f32.mrb[0].mxu0
  %v1206 = vadd.f32 %v1061, %v1205
  %v1207 = vpop.f32.mrb[0].mxu0
  %1208 = vmatprep.mubr.f32.mxu0 0.0
  %1209 = vmatmul.mubr.f32.gmra.mrb[0].mxu0 %v902
  %v1210 = vpop.f32.mrb[0].mxu0
  %v1211 = vadd.f32 %v1066, %v1210
  %v1212 = vpop.f32.mrb[0].mxu0
  %1213 = vmatprep.mubr.f32.mxu0 0.0
  %1214 = vmatmul.mubr.f32.gmra.mrb[0].mxu0 %v903
  %v1215 = vpop.f32.mrb[0].mxu0
  %v1216 = vadd.f32 %v1071, %v1215
  %v1217 = vpop.f32.mrb[0].mxu0
  %1218 = vmatprep.mubr.f32.mxu0 0.0
  %1219 = vmatmul.mubr.f32.gmra.mrb[0].mxu0 %v904
  %v1220 = vpop.f32.mrb[0].mxu0
  %v1221 = vadd.f32 %v1076, %v1220
  %v1222 = vpop.f32.mrb[0].mxu0
  %1223 = vmatprep.mubr.f32.mxu0 0.0
  %1224 = vmatmul.mubr.f32.gmra.mrb[0].mxu0 %v905
  %v1225 = vpop.f32.mrb[0].mxu0
  %v1226 = vadd.f32 %v1081, %v1225
  %v1227 = vpop.f32.mrb[0].mxu0
  %1228 = vmatprep.mubr.f32.mxu0 0.0
  %1229 = vmatmul.mubr.f32.gmra.mrb[0].mxu0 %v906
  %v1230 = vpop.f32.mrb[0].mxu0
  %v1231 = vadd.f32 %v1086, %v1230
  %v1232 = vpop.f32.mrb[0].mxu0
  %1233 = vmatprep.mubr.f32.mxu0 0.0
  %1234 = vmatmul.mubr.f32.gmra.mrb[0].mxu0 %v907
  %v1235 = vpop.f32.mrb[0].mxu0
  %v1236 = vadd.f32 %v1091, %v1235
  %v1237 = vpop.f32.mrb[0].mxu0
  %1238 = vmatprep.mubr.f32.mxu0 0.0
  %1239 = vmatmul.mubr.f32.gmra.mrb[0].mxu0 %v908
  %v1240 = vpop.f32.mrb[0].mxu0
  %v1241 = vadd.f32 %v1096, %v1240
  %v1242 = vpop.f32.mrb[0].mxu0
  %1243 = vmatprep.mubr.f32.mxu0 0.0
  %1244 = vmatmul.mubr.f32.gmra.mrb[0].mxu0 %v909
  %v1245 = vpop.f32.mrb[0].mxu0
  %v1246 = vadd.f32 %v1101, %v1245
  %v1247 = vpop.f32.mrb[0].mxu0
  %1248 = vdwg.mxu0
  %v1249 = vld [vmem:[#allocation2 + $0xb8] sm:$0xff]
  %v1250 = vld [vmem:[#allocation2 + $0xc0] sm:$0xff]
  %v1251 = vld [vmem:[#allocation2 + $0xc8] sm:$0xff]
  %v1252 = vld [vmem:[#allocation2 + $0xd0] sm:$0xff]
  %v1253 = vld [vmem:[#allocation2 + $0xd8] sm:$0xff]
  %v1254 = vld [vmem:[#allocation2 + $0xe0] sm:$0xff]
  %v1255 = vld [vmem:[#allocation2 + $0xe8] sm:$0xff]
  %v1256 = vld [vmem:[#allocation2 + $0xf0] sm:$0xff]
  %v1257 = vld [vmem:[#allocation2 + $0x1b8] sm:$0xff]
  %v1258 = vld [vmem:[#allocation2 + $0x1c0] sm:$0xff]
  %v1259 = vld [vmem:[#allocation2 + $0x1c8] sm:$0xff]
  %v1260 = vld [vmem:[#allocation2 + $0x1d0] sm:$0xff]
  %v1261 = vld [vmem:[#allocation2 + $0x1d8] sm:$0xff]
  %v1262 = vld [vmem:[#allocation2 + $0x1e0] sm:$0xff]
  %v1263 = vld [vmem:[#allocation2 + $0x1e8] sm:$0xff]
  %v1264 = vld [vmem:[#allocation2 + $0x1f0] sm:$0xff]
  %v1265 = vmul.f32 %v1249, %v742
  %v1266 = vmul.f32 %v1250, %v743
  %v1267 = vmul.f32 %v1251, %v744
  %v1268 = vmul.f32 %v1252, %v745
  %v1269 = vmul.f32 %v1253, %v746
  %v1270 = vmul.f32 %v1254, %v747
  %v1271 = vmul.f32 %v1255, %v748
  %v1272 = vmul.f32 %v1256, %v749
  %v1273 = vmul.f32 %v1257, %v742
  %v1274 = vmul.f32 %v1258, %v743
  %v1275 = vmul.f32 %v1259, %v744
  %v1276 = vmul.f32 %v1260, %v745
  %v1277 = vmul.f32 %v1261, %v746
  %v1278 = vmul.f32 %v1262, %v747
  %v1279 = vmul.f32 %v1263, %v748
  %v1280 = vmul.f32 %v1264, %v749
  %v1281 = vld [vmem:[%s1 + $0x98] sm:$0xff]
  %v1282 = vld [vmem:[%s1 + $0xa0] sm:$0xff]
  %v1283 = vld [vmem:[%s1 + $0xa8] sm:$0xff]
  %v1284 = vld [vmem:[%s1 + $0xb0] sm:$0xff]
  %v1285 = vld [vmem:[%s1 + $0xb8] sm:$0xff]
  %v1286 = vld [vmem:[%s1 + $0xc0] sm:$0xff]
  %v1287 = vld [vmem:[%s1 + $0xc8] sm:$0xff]
  %v1288 = vld [vmem:[%s1 + $0xd0] sm:$0xff]
  %v1289 = vld [vmem:[%s1 + $0xd8] sm:$0xff]
  %v1290 = vld [vmem:[%s1 + $0xe0] sm:$0xff]
  %v1291 = vld [vmem:[%s1 + $0xe8] sm:$0xff]
  %v1292 = vld [vmem:[%s1 + $0xf0] sm:$0xff]
  %v1293 = vld [vmem:[%s1 + $0xf8] sm:$0xff]
  %v1294 = vld [vmem:[%s1 + $0x100] sm:$0xff]
  %v1295 = vld [vmem:[%s1 + $0x108] sm:$0xff]
  %v1296 = vld [vmem:[%s1 + $0x110] sm:$0xff]
  %1297 = vmatprep.subr.mxu0 0.0
  %1298 = vmatpush1.msra.mxu0 %v1281
  %1299 = vmatprep.subr.mxu0 0.0
  %1300 = vmatpush1.msra.mxu0 %v1282
  %1301 = vmatprep.subr.mxu0 0.0
  %1302 = vmatpush1.msra.mxu0 %v1283
  %1303 = vmatprep.subr.mxu0 0.0
  %1304 = vmatpush1.msra.mxu0 %v1284
  %1305 = vmatprep.subr.mxu0 0.0
  %1306 = vmatpush1.msra.mxu0 %v1285
  %1307 = vmatprep.subr.mxu0 0.0
  %1308 = vmatpush1.msra.mxu0 %v1286
  %1309 = vmatprep.subr.mxu0 0.0
  %1310 = vmatpush1.msra.mxu0 %v1287
  %1311 = vmatprep.subr.mxu0 0.0
  %1312 = vmatpush1.msra.mxu0 %v1288
  %1313 = vmatprep.subr.mxu0 0.0
  %1314 = vmatpush1.msra.mxu0 %v1289
  %1315 = vmatprep.subr.mxu0 0.0
  %1316 = vmatpush1.msra.mxu0 %v1290
  %1317 = vmatprep.subr.mxu0 0.0
  %1318 = vmatpush1.msra.mxu0 %v1291
  %1319 = vmatprep.subr.mxu0 0.0
  %1320 = vmatpush1.msra.mxu0 %v1292
  %1321 = vmatprep.subr.mxu0 0.0
  %1322 = vmatpush1.msra.mxu0 %v1293
  %1323 = vmatprep.subr.mxu0 0.0
  %1324 = vmatpush1.msra.mxu0 %v1294
  %1325 = vmatprep.subr.mxu0 0.0
  %1326 = vmatpush1.msra.mxu0 %v1295
  %1327 = vmatprep.subr.mxu0 0.0
  %1328 = vmatpush1.msra.mxu0 %v1296
  %1329 = vmatprep.subr.mxu0 0.0
  %1330 = vmatpush1.msra.mxu0 0.0
  %1331 = vmatprep.subr.mxu0 0.0
  %1332 = vmatpush1.msra.mxu0 0.0
  %1333 = vmatprep.subr.mxu0 0.0
  %1334 = vmatpush1.msra.mxu0 0.0
  %1335 = vmatprep.subr.mxu0 0.0
  %1336 = vmatpush1.msra.mxu0 0.0
  %1337 = vmatprep.subr.mxu0 0.0
  %1338 = vmatpush1.msra.mxu0 0.0
  %1339 = vmatprep.subr.mxu0 0.0
  %1340 = vmatpush1.msra.mxu0 0.0
  %1341 = vmatprep.subr.mxu0 0.0
  %1342 = vmatpush1.msra.mxu0 0.0
  %1343 = vmatprep.subr.mxu0 0.0
  %1344 = vmatpush1.msra.mxu0 0.0
  %1345 = vmatprep.subr.mxu0 0.0
  %1346 = vmatpush1.msra.mxu0 0.0
  %1347 = vmatprep.subr.mxu0 0.0
  %1348 = vmatpush1.msra.mxu0 0.0
  %1349 = vmatprep.subr.mxu0 0.0
  %1350 = vmatpush1.msra.mxu0 0.0
  %1351 = vmatprep.subr.mxu0 0.0
  %1352 = vmatpush1.msra.mxu0 0.0
  %1353 = vmatprep.subr.mxu0 0.0
  %1354 = vmatpush1.msra.mxu0 0.0
  %1355 = vmatprep.subr.mxu0 0.0
  %1356 = vmatpush1.msra.mxu0 0.0
  %1357 = vmatprep.subr.mxu0 0.0
  %1358 = vmatpush1.msra.mxu0 0.0
  %1359 = vmatprep.subr.mxu0 0.0
  %1360 = vmatpush1.msra.mxu0 0.0
  %1361 = vmatprep.mubr.f32.mxu0 0.0
  %1362 = vmatmul.mubr.f32.gmra.mrb[0].mxu0 %v1265
  %v1363 = vpop.f32.mrb[0].mxu0
  %v1364 = vadd.f32 0.0, %v1363
  %v1365 = vpop.f32.mrb[0].mxu0
  %1366 = vmatprep.mubr.f32.mxu0 0.0
  %1367 = vmatmul.mubr.f32.gmra.mrb[0].mxu0 %v1266
  %v1368 = vpop.f32.mrb[0].mxu0
  %v1369 = vadd.f32 0.0, %v1368
  %v1370 = vpop.f32.mrb[0].mxu0
  %1371 = vmatprep.mubr.f32.mxu0 0.0
  %1372 = vmatmul.mubr.f32.gmra.mrb[0].mxu0 %v1267
  %v1373 = vpop.f32.mrb[0].mxu0
  %v1374 = vadd.f32 0.0, %v1373
  %v1375 = vpop.f32.mrb[0].mxu0
  %1376 = vmatprep.mubr.f32.mxu0 0.0
  %1377 = vmatmul.mubr.f32.gmra.mrb[0].mxu0 %v1268
  %v1378 = vpop.f32.mrb[0].mxu0
  %v1379 = vadd.f32 0.0, %v1378
  %v1380 = vpop.f32.mrb[0].mxu0
  %1381 = vmatprep.mubr.f32.mxu0 0.0
  %1382 = vmatmul.mubr.f32.gmra.mrb[0].mxu0 %v1269
  %v1383 = vpop.f32.mrb[0].mxu0
  %v1384 = vadd.f32 0.0, %v1383
  %v1385 = vpop.f32.mrb[0].mxu0
  %1386 = vmatprep.mubr.f32.mxu0 0.0
  %1387 = vmatmul.mubr.f32.gmra.mrb[0].mxu0 %v1270
  %v1388 = vpop.f32.mrb[0].mxu0
  %v1389 = vadd.f32 0.0, %v1388
  %v1390 = vpop.f32.mrb[0].mxu0
  %1391 = vmatprep.mubr.f32.mxu0 0.0
  %1392 = vmatmul.mubr.f32.gmra.mrb[0].mxu0 %v1271
  %v1393 = vpop.f32.mrb[0].mxu0
  %v1394 = vadd.f32 0.0, %v1393
  %v1395 = vpop.f32.mrb[0].mxu0
  %1396 = vmatprep.mubr.f32.mxu0 0.0
  %1397 = vmatmul.mubr.f32.gmra.mrb[0].mxu0 %v1272
  %v1398 = vpop.f32.mrb[0].mxu0
  %v1399 = vadd.f32 0.0, %v1398
  %v1400 = vpop.f32.mrb[0].mxu0
  %1401 = vmatprep.mubr.f32.mxu0 0.0
  %1402 = vmatmul.mubr.f32.gmra.mrb[0].mxu0 %v1273
  %v1403 = vpop.f32.mrb[0].mxu0
  %v1404 = vadd.f32 0.0, %v1403
  %v1405 = vpop.f32.mrb[0].mxu0
  %1406 = vmatprep.mubr.f32.mxu0 0.0
  %1407 = vmatmul.mubr.f32.gmra.mrb[0].mxu0 %v1274
  %v1408 = vpop.f32.mrb[0].mxu0
  %v1409 = vadd.f32 0.0, %v1408
  %v1410 = vpop.f32.mrb[0].mxu0
  %1411 = vmatprep.mubr.f32.mxu0 0.0
  %1412 = vmatmul.mubr.f32.gmra.mrb[0].mxu0 %v1275
  %v1413 = vpop.f32.mrb[0].mxu0
  %v1414 = vadd.f32 0.0, %v1413
  %v1415 = vpop.f32.mrb[0].mxu0
  %1416 = vmatprep.mubr.f32.mxu0 0.0
  %1417 = vmatmul.mubr.f32.gmra.mrb[0].mxu0 %v1276
  %v1418 = vpop.f32.mrb[0].mxu0
  %v1419 = vadd.f32 0.0, %v1418
  %v1420 = vpop.f32.mrb[0].mxu0
  %1421 = vmatprep.mubr.f32.mxu0 0.0
  %1422 = vmatmul.mubr.f32.gmra.mrb[0].mxu0 %v1277
  %v1423 = vpop.f32.mrb[0].mxu0
  %v1424 = vadd.f32 0.0, %v1423
  %v1425 = vpop.f32.mrb[0].mxu0
  %1426 = vmatprep.mubr.f32.mxu0 0.0
  %1427 = vmatmul.mubr.f32.gmra.mrb[0].mxu0 %v1278
  %v1428 = vpop.f32.mrb[0].mxu0
  %v1429 = vadd.f32 0.0, %v1428
  %v1430 = vpop.f32.mrb[0].mxu0
  %1431 = vmatprep.mubr.f32.mxu0 0.0
  %1432 = vmatmul.mubr.f32.gmra.mrb[0].mxu0 %v1279
  %v1433 = vpop.f32.mrb[0].mxu0
  %v1434 = vadd.f32 0.0, %v1433
  %v1435 = vpop.f32.mrb[0].mxu0
  %1436 = vmatprep.mubr.f32.mxu0 0.0
  %1437 = vmatmul.mubr.f32.gmra.mrb[0].mxu0 %v1280
  %v1438 = vpop.f32.mrb[0].mxu0
  %v1439 = vadd.f32 0.0, %v1438
  %v1440 = vpop.f32.mrb[0].mxu0
  %1441 = vdwg.mxu0
  %v1442 = vadd.f32 %v1171, %v1364
  %v1443 = vadd.f32 %v1176, %v1369
  %v1444 = vadd.f32 %v1181, %v1374
  %v1445 = vadd.f32 %v1186, %v1379
  %v1446 = vadd.f32 %v1191, %v1384
  %v1447 = vadd.f32 %v1196, %v1389
  %v1448 = vadd.f32 %v1201, %v1394
  %v1449 = vadd.f32 %v1206, %v1399
  %v1450 = vadd.f32 %v1211, %v1404
  %v1451 = vadd.f32 %v1216, %v1409
  %v1452 = vadd.f32 %v1221, %v1414
  %v1453 = vadd.f32 %v1226, %v1419
  %v1454 = vadd.f32 %v1231, %v1424
  %v1455 = vadd.f32 %v1236, %v1429
  %v1456 = vadd.f32 %v1241, %v1434
  %v1457 = vadd.f32 %v1246, %v1439
  %v1458 = vld [vmem:[#allocation2 + $0x3f] sm:$0xff]
  %v1459 = vld [vmem:[#allocation2 + $0x47] sm:$0xff]
  %v1460 = vld [vmem:[#allocation2 + $0x4f] sm:$0xff]
  %v1461 = vld [vmem:[#allocation2 + $0x57] sm:$0xff]
  %v1462 = vld [vmem:[#allocation2 + $0x5f] sm:$0xff]
  %v1463 = vld [vmem:[#allocation2 + $0x67] sm:$0xff]
  %v1464 = vld [vmem:[#allocation2 + $0x6f] sm:$0xff]
  %v1465 = vld [vmem:[#allocation2 + $0x77] sm:$0xff]
  %v1466 = vld [vmem:[#allocation2 + $0x13f] sm:$0xff]
  %v1467 = vld [vmem:[#allocation2 + $0x147] sm:$0xff]
  %v1468 = vld [vmem:[#allocation2 + $0x14f] sm:$0xff]
  %v1469 = vld [vmem:[#allocation2 + $0x157] sm:$0xff]
  %v1470 = vld [vmem:[#allocation2 + $0x15f] sm:$0xff]
  %v1471 = vld [vmem:[#allocation2 + $0x167] sm:$0xff]
  %v1472 = vld [vmem:[#allocation2 + $0x16f] sm:$0xff]
  %v1473 = vld [vmem:[#allocation2 + $0x177] sm:$0xff]
  %v1474 = vmul.f32 %v1458, %v862
  %v1475 = vmul.f32 %v1459, %v863
  %v1476 = vmul.f32 %v1460, %v864
  %v1477 = vmul.f32 %v1461, %v865
  %v1478 = vmul.f32 %v1462, %v866
  %v1479 = vmul.f32 %v1463, %v867
  %v1480 = vmul.f32 %v1464, %v868
  %v1481 = vmul.f32 %v1465, %v869
  %v1482 = vmul.f32 %v1466, %v862
  %v1483 = vmul.f32 %v1467, %v863
  %v1484 = vmul.f32 %v1468, %v864
  %v1485 = vmul.f32 %v1469, %v865
  %v1486 = vmul.f32 %v1470, %v866
  %v1487 = vmul.f32 %v1471, %v867
  %v1488 = vmul.f32 %v1472, %v868
  %v1489 = vmul.f32 %v1473, %v869
  %v1490 = vld [vmem:[%s1 + $0xa0] sm:$0xff]
  %v1491 = vld [vmem:[%s1 + $0xa8] sm:$0xff]
  %v1492 = vld [vmem:[%s1 + $0xb0] sm:$0xff]
  %v1493 = vld [vmem:[%s1 + $0xb8] sm:$0xff]
  %v1494 = vld [vmem:[%s1 + $0xc0] sm:$0xff]
  %v1495 = vld [vmem:[%s1 + $0xc8] sm:$0xff]
  %v1496 = vld [vmem:[%s1 + $0xd0] sm:$0xff]
  %v1497 = vld [vmem:[%s1 + $0xd8] sm:$0xff]
  %v1498 = vld [vmem:[%s1 + $0xe0] sm:$0xff]
  %v1499 = vld [vmem:[%s1 + $0xe8] sm:$0xff]
  %v1500 = vld [vmem:[%s1 + $0xf0] sm:$0xff]
  %v1501 = vld [vmem:[%s1 + $0xf8] sm:$0xff]
  %v1502 = vld [vmem:[%s1 + $0x100] sm:$0xff]
  %v1503 = vld [vmem:[%s1 + $0x108] sm:$0xff]
  %v1504 = vld [vmem:[%s1 + $0x110] sm:$0xff]
  %v1505 = vld [vmem:[%s1 + $0x118] sm:$0xff]
  %1506 = vmatprep.subr.mxu0 0.0
  %1507 = vmatpush1.msra.mxu0 %v1490
  %1508 = vmatprep.subr.mxu0 0.0
  %1509 = vmatpush1.msra.mxu0 %v1491
  %1510 = vmatprep.subr.mxu0 0.0
  %1511 = vmatpush1.msra.mxu0 %v1492
  %1512 = vmatprep.subr.mxu0 0.0
  %1513 = vmatpush1.msra.mxu0 %v1493
  %1514 = vmatprep.subr.mxu0 0.0
  %1515 = vmatpush1.msra.mxu0 %v1494
  %1516 = vmatprep.subr.mxu0 0.0
  %1517 = vmatpush1.msra.mxu0 %v1495
  %1518 = vmatprep.subr.mxu0 0.0
  %1519 = vmatpush1.msra.mxu0 %v1496
  %1520 = vmatprep.subr.mxu0 0.0
  %1521 = vmatpush1.msra.mxu0 %v1497
  %1522 = vmatprep.subr.mxu0 0.0
  %1523 = vmatpush1.msra.mxu0 %v1498
  %1524 = vmatprep.subr.mxu0 0.0
  %1525 = vmatpush1.msra.mxu0 %v1499
  %1526 = vmatprep.subr.mxu0 0.0
  %1527 = vmatpush1.msra.mxu0 %v1500
  %1528 = vmatprep.subr.mxu0 0.0
  %1529 = vmatpush1.msra.mxu0 %v1501
  %1530 = vmatprep.subr.mxu0 0.0
  %1531 = vmatpush1.msra.mxu0 %v1502
  %1532 = vmatprep.subr.mxu0 0.0
  %1533 = vmatpush1.msra.mxu0 %v1503
  %1534 = vmatprep.subr.mxu0 0.0
  %1535 = vmatpush1.msra.mxu0 %v1504
  %1536 = vmatprep.subr.mxu0 0.0
  %1537 = vmatpush1.msra.mxu0 %v1505
  %1538 = vmatprep.subr.mxu0 0.0
  %1539 = vmatpush1.msra.mxu0 0.0
  %1540 = vmatprep.subr.mxu0 0.0
  %1541 = vmatpush1.msra.mxu0 0.0
  %1542 = vmatprep.subr.mxu0 0.0
  %1543 = vmatpush1.msra.mxu0 0.0
  %1544 = vmatprep.subr.mxu0 0.0
  %1545 = vmatpush1.msra.mxu0 0.0
  %1546 = vmatprep.subr.mxu0 0.0
  %1547 = vmatpush1.msra.mxu0 0.0
  %1548 = vmatprep.subr.mxu0 0.0
  %1549 = vmatpush1.msra.mxu0 0.0
  %1550 = vmatprep.subr.mxu0 0.0
  %1551 = vmatpush1.msra.mxu0 0.0
  %1552 = vmatprep.subr.mxu0 0.0
  %1553 = vmatpush1.msra.mxu0 0.0
  %1554 = vmatprep.subr.mxu0 0.0
  %1555 = vmatpush1.msra.mxu0 0.0
  %1556 = vmatprep.subr.mxu0 0.0
  %1557 = vmatpush1.msra.mxu0 0.0
  %1558 = vmatprep.subr.mxu0 0.0
  %1559 = vmatpush1.msra.mxu0 0.0
  %1560 = vmatprep.subr.mxu0 0.0
  %1561 = vmatpush1.msra.mxu0 0.0
  %1562 = vmatprep.subr.mxu0 0.0
  %1563 = vmatpush1.msra.mxu0 0.0
  %1564 = vmatprep.subr.mxu0 0.0
  %1565 = vmatpush1.msra.mxu0 0.0
  %1566 = vmatprep.subr.mxu0 0.0
  %1567 = vmatpush1.msra.mxu0 0.0
  %1568 = vmatprep.subr.mxu0 0.0
  %1569 = vmatpush1.msra.mxu0 0.0
  %1570 = vmatprep.mubr.f32.mxu0 0.0
  %1571 = vmatmul.mubr.f32.gmra.mrb[0].mxu0 %v1474
  %v1572 = vpop.f32.mrb[0].mxu0
  %v1573 = vadd.f32 0.0, %v1572
  %v1574 = vpop.f32.mrb[0].mxu0
  %1575 = vmatprep.mubr.f32.mxu0 0.0
  %1576 = vmatmul.mubr.f32.gmra.mrb[0].mxu0 %v1475
  %v1577 = vpop.f32.mrb[0].mxu0
  %v1578 = vadd.f32 0.0, %v1577
  %v1579 = vpop.f32.mrb[0].mxu0
  %1580 = vmatprep.mubr.f32.mxu0 0.0
  %1581 = vmatmul.mubr.f32.gmra.mrb[0].mxu0 %v1476
  %v1582 = vpop.f32.mrb[0].mxu0
  %v1583 = vadd.f32 0.0, %v1582
  %v1584 = vpop.f32.mrb[0].mxu0
  %1585 = vmatprep.mubr.f32.mxu0 0.0
  %1586 = vmatmul.mubr.f32.gmra.mrb[0].mxu0 %v1477
  %v1587 = vpop.f32.mrb[0].mxu0
  %v1588 = vadd.f32 0.0, %v1587
  %v1589 = vpop.f32.mrb[0].mxu0
  %1590 = vmatprep.mubr.f32.mxu0 0.0
  %1591 = vmatmul.mubr.f32.gmra.mrb[0].mxu0 %v1478
  %v1592 = vpop.f32.mrb[0].mxu0
  %v1593 = vadd.f32 0.0, %v1592
  %v1594 = vpop.f32.mrb[0].mxu0
  %1595 = vmatprep.mubr.f32.mxu0 0.0
  %1596 = vmatmul.mubr.f32.gmra.mrb[0].mxu0 %v1479
  %v1597 = vpop.f32.mrb[0].mxu0
  %v1598 = vadd.f32 0.0, %v1597
  %v1599 = vpop.f32.mrb[0].mxu0
  %1600 = vmatprep.mubr.f32.mxu0 0.0
  %1601 = vmatmul.mubr.f32.gmra.mrb[0].mxu0 %v1480
  %v1602 = vpop.f32.mrb[0].mxu0
  %v1603 = vadd.f32 0.0, %v1602
  %v1604 = vpop.f32.mrb[0].mxu0
  %1605 = vmatprep.mubr.f32.mxu0 0.0
  %1606 = vmatmul.mubr.f32.gmra.mrb[0].mxu0 %v1481
  %v1607 = vpop.f32.mrb[0].mxu0
  %v1608 = vadd.f32 0.0, %v1607
  %v1609 = vpop.f32.mrb[0].mxu0
  %1610 = vmatprep.mubr.f32.mxu0 0.0
  %1611 = vmatmul.mubr.f32.gmra.mrb[0].mxu0 %v1482
  %v1612 = vpop.f32.mrb[0].mxu0
  %v1613 = vadd.f32 0.0, %v1612
  %v1614 = vpop.f32.mrb[0].mxu0
  %1615 = vmatprep.mubr.f32.mxu0 0.0
  %1616 = vmatmul.mubr.f32.gmra.mrb[0].mxu0 %v1483
  %v1617 = vpop.f32.mrb[0].mxu0
  %v1618 = vadd.f32 0.0, %v1617
  %v1619 = vpop.f32.mrb[0].mxu0
  %1620 = vmatprep.mubr.f32.mxu0 0.0
  %1621 = vmatmul.mubr.f32.gmra.mrb[0].mxu0 %v1484
  %v1622 = vpop.f32.mrb[0].mxu0
  %v1623 = vadd.f32 0.0, %v1622
  %v1624 = vpop.f32.mrb[0].mxu0
  %1625 = vmatprep.mubr.f32.mxu0 0.0
  %1626 = vmatmul.mubr.f32.gmra.mrb[0].mxu0 %v1485
  %v1627 = vpop.f32.mrb[0].mxu0
  %v1628 = vadd.f32 0.0, %v1627
  %v1629 = vpop.f32.mrb[0].mxu0
  %1630 = vmatprep.mubr.f32.mxu0 0.0
  %1631 = vmatmul.mubr.f32.gmra.mrb[0].mxu0 %v1486
  %v1632 = vpop.f32.mrb[0].mxu0
  %v1633 = vadd.f32 0.0, %v1632
  %v1634 = vpop.f32.mrb[0].mxu0
  %1635 = vmatprep.mubr.f32.mxu0 0.0
  %1636 = vmatmul.mubr.f32.gmra.mrb[0].mxu0 %v1487
  %v1637 = vpop.f32.mrb[0].mxu0
  %v1638 = vadd.f32 0.0, %v1637
  %v1639 = vpop.f32.mrb[0].mxu0
  %1640 = vmatprep.mubr.f32.mxu0 0.0
  %1641 = vmatmul.mubr.f32.gmra.mrb[0].mxu0 %v1488
  %v1642 = vpop.f32.mrb[0].mxu0
  %v1643 = vadd.f32 0.0, %v1642
  %v1644 = vpop.f32.mrb[0].mxu0
  %1645 = vmatprep.mubr.f32.mxu0 0.0
  %1646 = vmatmul.mubr.f32.gmra.mrb[0].mxu0 %v1489
  %v1647 = vpop.f32.mrb[0].mxu0
  %v1648 = vadd.f32 0.0, %v1647
  %v1649 = vpop.f32.mrb[0].mxu0
  %1650 = vdwg.mxu0
  %v1651 = vadd.f32 %v1442, %v1573
  %v1652 = vadd.f32 %v1443, %v1578
  %v1653 = vadd.f32 %v1444, %v1583
  %v1654 = vadd.f32 %v1445, %v1588
  %v1655 = vadd.f32 %v1446, %v1593
  %v1656 = vadd.f32 %v1447, %v1598
  %v1657 = vadd.f32 %v1448, %v1603
  %v1658 = vadd.f32 %v1449, %v1608
  %v1659 = vadd.f32 %v1450, %v1613
  %v1660 = vadd.f32 %v1451, %v1618
  %v1661 = vadd.f32 %v1452, %v1623
  %v1662 = vadd.f32 %v1453, %v1628
  %v1663 = vadd.f32 %v1454, %v1633
  %v1664 = vadd.f32 %v1455, %v1638
  %v1665 = vadd.f32 %v1456, %v1643
  %v1666 = vadd.f32 %v1457, %v1648
  %v1667 = vld [vmem:[#allocation2] sm:$0xff]
  %v1668 = vld [vmem:[#allocation2 + $0x8] sm:$0xff]
  %v1669 = vld [vmem:[#allocation2 + $0x10] sm:$0xff]
  %v1670 = vld [vmem:[#allocation2 + $0x18] sm:$0xff]
  %v1671 = vld [vmem:[#allocation2 + $0x20] sm:$0xff]
  %v1672 = vld [vmem:[#allocation2 + $0x28] sm:$0xff]
  %v1673 = vld [vmem:[#allocation2 + $0x30] sm:$0xff]
  %v1674 = vld [vmem:[#allocation2 + $0x38] sm:$0xff]
  %v1675 = vld [vmem:[#allocation2 + $0x100] sm:$0xff]
  %v1676 = vld [vmem:[#allocation2 + $0x108] sm:$0xff]
  %v1677 = vld [vmem:[#allocation2 + $0x110] sm:$0xff]
  %v1678 = vld [vmem:[#allocation2 + $0x118] sm:$0xff]
  %v1679 = vld [vmem:[#allocation2 + $0x120] sm:$0xff]
  %v1680 = vld [vmem:[#allocation2 + $0x128] sm:$0xff]
  %v1681 = vld [vmem:[#allocation2 + $0x130] sm:$0xff]
  %v1682 = vld [vmem:[#allocation2 + $0x138] sm:$0xff]
  %v1683 = vld [vmem:[%s1 + $0xa8] sm:$0xff]
  %v1684 = vld [vmem:[%s1 + $0xb0] sm:$0xff]
  %v1685 = vld [vmem:[%s1 + $0xb8] sm:$0xff]
  %v1686 = vld [vmem:[%s1 + $0xc0] sm:$0xff]
  %v1687 = vld [vmem:[%s1 + $0xc8] sm:$0xff]
  %v1688 = vld [vmem:[%s1 + $0xd0] sm:$0xff]
  %v1689 = vld [vmem:[%s1 + $0xd8] sm:$0xff]
  %v1690 = vld [vmem:[%s1 + $0xe0] sm:$0xff]
  %v1691 = vld [vmem:[%s1 + $0xe8] sm:$0xff]
  %v1692 = vld [vmem:[%s1 + $0xf0] sm:$0xff]
  %v1693 = vld [vmem:[%s1 + $0xf8] sm:$0xff]
  %v1694 = vld [vmem:[%s1 + $0x100] sm:$0xff]
  %v1695 = vld [vmem:[%s1 + $0x108] sm:$0xff]
  %v1696 = vld [vmem:[%s1 + $0x110] sm:$0xff]
  %v1697 = vld [vmem:[%s1 + $0x118] sm:$0xff]
  %v1698 = vld [vmem:[%s1 + $0x120] sm:$0xff]
  %1699 = vmatprep.subr.mxu0 0.0
  %1700 = vmatpush1.msra.mxu0 %v1683
  %1701 = vmatprep.subr.mxu0 0.0
  %1702 = vmatpush1.msra.mxu0 %v1684
  %1703 = vmatprep.subr.mxu0 0.0
  %1704 = vmatpush1.msra.mxu0 %v1685
  %1705 = vmatprep.subr.mxu0 0.0
  %1706 = vmatpush1.msra.mxu0 %v1686
  %1707 = vmatprep.subr.mxu0 0.0
  %1708 = vmatpush1.msra.mxu0 %v1687
  %1709 = vmatprep.subr.mxu0 0.0
  %1710 = vmatpush1.msra.mxu0 %v1688
  %1711 = vmatprep.subr.mxu0 0.0
  %1712 = vmatpush1.msra.mxu0 %v1689
  %1713 = vmatprep.subr.mxu0 0.0
  %1714 = vmatpush1.msra.mxu0 %v1690
  %1715 = vmatprep.subr.mxu0 0.0
  %1716 = vmatpush1.msra.mxu0 %v1691
  %1717 = vmatprep.subr.mxu0 0.0
  %1718 = vmatpush1.msra.mxu0 %v1692
  %1719 = vmatprep.subr.mxu0 0.0
  %1720 = vmatpush1.msra.mxu0 %v1693
  %1721 = vmatprep.subr.mxu0 0.0
  %1722 = vmatpush1.msra.mxu0 %v1694
  %1723 = vmatprep.subr.mxu0 0.0
  %1724 = vmatpush1.msra.mxu0 %v1695
  %1725 = vmatprep.subr.mxu0 0.0
  %1726 = vmatpush1.msra.mxu0 %v1696
  %1727 = vmatprep.subr.mxu0 0.0
  %1728 = vmatpush1.msra.mxu0 %v1697
  %1729 = vmatprep.subr.mxu0 0.0
  %1730 = vmatpush1.msra.mxu0 %v1698
  %1731 = vmatprep.subr.mxu0 0.0
  %1732 = vmatpush1.msra.mxu0 0.0
  %1733 = vmatprep.subr.mxu0 0.0
  %1734 = vmatpush1.msra.mxu0 0.0
  %1735 = vmatprep.subr.mxu0 0.0
  %1736 = vmatpush1.msra.mxu0 0.0
  %1737 = vmatprep.subr.mxu0 0.0
  %1738 = vmatpush1.msra.mxu0 0.0
  %1739 = vmatprep.subr.mxu0 0.0
  %1740 = vmatpush1.msra.mxu0 0.0
  %1741 = vmatprep.subr.mxu0 0.0
  %1742 = vmatpush1.msra.mxu0 0.0
  %1743 = vmatprep.subr.mxu0 0.0
  %1744 = vmatpush1.msra.mxu0 0.0
  %1745 = vmatprep.subr.mxu0 0.0
  %1746 = vmatpush1.msra.mxu0 0.0
  %1747 = vmatprep.subr.mxu0 0.0
  %1748 = vmatpush1.msra.mxu0 0.0
  %1749 = vmatprep.subr.mxu0 0.0
  %1750 = vmatpush1.msra.mxu0 0.0
  %1751 = vmatprep.subr.mxu0 0.0
  %1752 = vmatpush1.msra.mxu0 0.0
  %1753 = vmatprep.subr.mxu0 0.0
  %1754 = vmatpush1.msra.mxu0 0.0
  %1755 = vmatprep.subr.mxu0 0.0
  %1756 = vmatpush1.msra.mxu0 0.0
  %1757 = vmatprep.subr.mxu0 0.0
  %1758 = vmatpush1.msra.mxu0 0.0
  %1759 = vmatprep.subr.mxu0 0.0
  %1760 = vmatpush1.msra.mxu0 0.0
  %1761 = vmatprep.subr.mxu0 0.0
  %1762 = vmatpush1.msra.mxu0 0.0
  %1763 = vmatprep.mubr.f32.mxu0 0.0
  %1764 = vmatmul.mubr.f32.gmra.mrb[0].mxu0 %v1667
  %v1765 = vpop.f32.mrb[0].mxu0
  %v1766 = vadd.f32 0.0, %v1765
  %v1767 = vpop.f32.mrb[0].mxu0
  %1768 = vmatprep.mubr.f32.mxu0 0.0
  %1769 = vmatmul.mubr.f32.gmra.mrb[0].mxu0 %v1668
  %v1770 = vpop.f32.mrb[0].mxu0
  %v1771 = vadd.f32 0.0, %v1770
  %v1772 = vpop.f32.mrb[0].mxu0
  %1773 = vmatprep.mubr.f32.mxu0 0.0
  %1774 = vmatmul.mubr.f32.gmra.mrb[0].mxu0 %v1669
  %v1775 = vpop.f32.mrb[0].mxu0
  %v1776 = vadd.f32 0.0, %v1775
  %v1777 = vpop.f32.mrb[0].mxu0
  %1778 = vmatprep.mubr.f32.mxu0 0.0
  %1779 = vmatmul.mubr.f32.gmra.mrb[0].mxu0 %v1670
  %v1780 = vpop.f32.mrb[0].mxu0
  %v1781 = vadd.f32 0.0, %v1780
  %v1782 = vpop.f32.mrb[0].mxu0
  %1783 = vmatprep.mubr.f32.mxu0 0.0
  %1784 = vmatmul.mubr.f32.gmra.mrb[0].mxu0 %v1671
  %v1785 = vpop.f32.mrb[0].mxu0
  %v1786 = vadd.f32 0.0, %v1785
  %v1787 = vpop.f32.mrb[0].mxu0
  %1788 = vmatprep.mubr.f32.mxu0 0.0
  %1789 = vmatmul.mubr.f32.gmra.mrb[0].mxu0 %v1672
  %v1790 = vpop.f32.mrb[0].mxu0
  %v1791 = vadd.f32 0.0, %v1790
  %v1792 = vpop.f32.mrb[0].mxu0
  %1793 = vmatprep.mubr.f32.mxu0 0.0
  %1794 = vmatmul.mubr.f32.gmra.mrb[0].mxu0 %v1673
  %v1795 = vpop.f32.mrb[0].mxu0
  %v1796 = vadd.f32 0.0, %v1795
  %v1797 = vpop.f32.mrb[0].mxu0
  %1798 = vmatprep.mubr.f32.mxu0 0.0
  %1799 = vmatmul.mubr.f32.gmra.mrb[0].mxu0 %v1674
  %v1800 = vpop.f32.mrb[0].mxu0
  %v1801 = vadd.f32 0.0, %v1800
  %v1802 = vpop.f32.mrb[0].mxu0
  %1803 = vmatprep.mubr.f32.mxu0 0.0
  %1804 = vmatmul.mubr.f32.gmra.mrb[0].mxu0 %v1675
  %v1805 = vpop.f32.mrb[0].mxu0
  %v1806 = vadd.f32 0.0, %v1805
  %v1807 = vpop.f32.mrb[0].mxu0
  %1808 = vmatprep.mubr.f32.mxu0 0.0
  %1809 = vmatmul.mubr.f32.gmra.mrb[0].mxu0 %v1676
  %v1810 = vpop.f32.mrb[0].mxu0
  %v1811 = vadd.f32 0.0, %v1810
  %v1812 = vpop.f32.mrb[0].mxu0
  %1813 = vmatprep.mubr.f32.mxu0 0.0
  %1814 = vmatmul.mubr.f32.gmra.mrb[0].mxu0 %v1677
  %v1815 = vpop.f32.mrb[0].mxu0
  %v1816 = vadd.f32 0.0, %v1815
  %v1817 = vpop.f32.mrb[0].mxu0
  %1818 = vmatprep.mubr.f32.mxu0 0.0
  %1819 = vmatmul.mubr.f32.gmra.mrb[0].mxu0 %v1678
  %v1820 = vpop.f32.mrb[0].mxu0
  %v1821 = vadd.f32 0.0, %v1820
  %v1822 = vpop.f32.mrb[0].mxu0
  %1823 = vmatprep.mubr.f32.mxu0 0.0
  %1824 = vmatmul.mubr.f32.gmra.mrb[0].mxu0 %v1679
  %v1825 = vpop.f32.mrb[0].mxu0
  %v1826 = vadd.f32 0.0, %v1825
  %v1827 = vpop.f32.mrb[0].mxu0
  %1828 = vmatprep.mubr.f32.mxu0 0.0
  %1829 = vmatmul.mubr.f32.gmra.mrb[0].mxu0 %v1680
  %v1830 = vpop.f32.mrb[0].mxu0
  %v1831 = vadd.f32 0.0, %v1830
  %v1832 = vpop.f32.mrb[0].mxu0
  %1833 = vmatprep.mubr.f32.mxu0 0.0
  %1834 = vmatmul.mubr.f32.gmra.mrb[0].mxu0 %v1681
  %v1835 = vpop.f32.mrb[0].mxu0
  %v1836 = vadd.f32 0.0, %v1835
  %v1837 = vpop.f32.mrb[0].mxu0
  %1838 = vmatprep.mubr.f32.mxu0 0.0
  %1839 = vmatmul.mubr.f32.gmra.mrb[0].mxu0 %v1682
  %v1840 = vpop.f32.mrb[0].mxu0
  %v1841 = vadd.f32 0.0, %v1840
  %v1842 = vpop.f32.mrb[0].mxu0
  %1843 = vdwg.mxu0
  %v1844 = vadd.f32 %v1651, %v1766
  %v1845 = vadd.f32 %v1652, %v1771
  %v1846 = vadd.f32 %v1653, %v1776
  %v1847 = vadd.f32 %v1654, %v1781
  %v1848 = vadd.f32 %v1655, %v1786
  %v1849 = vadd.f32 %v1656, %v1791
  %v1850 = vadd.f32 %v1657, %v1796
  %v1851 = vadd.f32 %v1658, %v1801
  %v1852 = vadd.f32 %v1659, %v1806
  %v1853 = vadd.f32 %v1660, %v1811
  %v1854 = vadd.f32 %v1661, %v1816
  %v1855 = vadd.f32 %v1662, %v1821
  %v1856 = vadd.f32 %v1663, %v1826
  %v1857 = vadd.f32 %v1664, %v1831
  %v1858 = vadd.f32 %v1665, %v1836
  %v1859 = vadd.f32 %v1666, %v1841
  %v1860 = vld [vmem:[#allocation2 + $0x40] sm:$0xff]
  %v1861 = vld [vmem:[#allocation2 + $0x48] sm:$0xff]
  %v1862 = vld [vmem:[#allocation2 + $0x50] sm:$0xff]
  %v1863 = vld [vmem:[#allocation2 + $0x58] sm:$0xff]
  %v1864 = vld [vmem:[#allocation2 + $0x60] sm:$0xff]
  %v1865 = vld [vmem:[#allocation2 + $0x68] sm:$0xff]
  %v1866 = vld [vmem:[#allocation2 + $0x70] sm:$0xff]
  %v1867 = vld [vmem:[#allocation2 + $0x78] sm:$0xff]
  %v1868 = vld [vmem:[#allocation2 + $0x140] sm:$0xff]
  %v1869 = vld [vmem:[#allocation2 + $0x148] sm:$0xff]
  %v1870 = vld [vmem:[#allocation2 + $0x150] sm:$0xff]
  %v1871 = vld [vmem:[#allocation2 + $0x158] sm:$0xff]
  %v1872 = vld [vmem:[#allocation2 + $0x160] sm:$0xff]
  %v1873 = vld [vmem:[#allocation2 + $0x168] sm:$0xff]
  %v1874 = vld [vmem:[#allocation2 + $0x170] sm:$0xff]
  %v1875 = vld [vmem:[#allocation2 + $0x178] sm:$0xff]
  %v1876 = vld [vmem:[%s1 + $0xb0] sm:$0xff]
  %v1877 = vld [vmem:[%s1 + $0xb8] sm:$0xff]
  %v1878 = vld [vmem:[%s1 + $0xc0] sm:$0xff]
  %v1879 = vld [vmem:[%s1 + $0xc8] sm:$0xff]
  %v1880 = vld [vmem:[%s1 + $0xd0] sm:$0xff]
  %v1881 = vld [vmem:[%s1 + $0xd8] sm:$0xff]
  %v1882 = vld [vmem:[%s1 + $0xe0] sm:$0xff]
  %v1883 = vld [vmem:[%s1 + $0xe8] sm:$0xff]
  %v1884 = vld [vmem:[%s1 + $0xf0] sm:$0xff]
  %v1885 = vld [vmem:[%s1 + $0xf8] sm:$0xff]
  %v1886 = vld [vmem:[%s1 + $0x100] sm:$0xff]
  %v1887 = vld [vmem:[%s1 + $0x108] sm:$0xff]
  %v1888 = vld [vmem:[%s1 + $0x110] sm:$0xff]
  %v1889 = vld [vmem:[%s1 + $0x118] sm:$0xff]
  %v1890 = vld [vmem:[%s1 + $0x120] sm:$0xff]
  %v1891 = vld [vmem:[%s1 + $0x128] sm:$0xff]
  %1892 = vmatprep.subr.mxu0 0.0
  %1893 = vmatpush1.msra.mxu0 %v1876
  %1894 = vmatprep.subr.mxu0 0.0
  %1895 = vmatpush1.msra.mxu0 %v1877
  %1896 = vmatprep.subr.mxu0 0.0
  %1897 = vmatpush1.msra.mxu0 %v1878
  %1898 = vmatprep.subr.mxu0 0.0
  %1899 = vmatpush1.msra.mxu0 %v1879
  %1900 = vmatprep.subr.mxu0 0.0
  %1901 = vmatpush1.msra.mxu0 %v1880
  %1902 = vmatprep.subr.mxu0 0.0
  %1903 = vmatpush1.msra.mxu0 %v1881
  %1904 = vmatprep.subr.mxu0 0.0
  %1905 = vmatpush1.msra.mxu0 %v1882
  %1906 = vmatprep.subr.mxu0 0.0
  %1907 = vmatpush1.msra.mxu0 %v1883
  %1908 = vmatprep.subr.mxu0 0.0
  %1909 = vmatpush1.msra.mxu0 %v1884
  %1910 = vmatprep.subr.mxu0 0.0
  %1911 = vmatpush1.msra.mxu0 %v1885
  %1912 = vmatprep.subr.mxu0 0.0
  %1913 = vmatpush1.msra.mxu0 %v1886
  %1914 = vmatprep.subr.mxu0 0.0
  %1915 = vmatpush1.msra.mxu0 %v1887
  %1916 = vmatprep.subr.mxu0 0.0
  %1917 = vmatpush1.msra.mxu0 %v1888
  %1918 = vmatprep.subr.mxu0 0.0
  %1919 = vmatpush1.msra.mxu0 %v1889
  %1920 = vmatprep.subr.mxu0 0.0
  %1921 = vmatpush1.msra.mxu0 %v1890
  %1922 = vmatprep.subr.mxu0 0.0
  %1923 = vmatpush1.msra.mxu0 %v1891
  %1924 = vmatprep.subr.mxu0 0.0
  %1925 = vmatpush1.msra.mxu0 0.0
  %1926 = vmatprep.subr.mxu0 0.0
  %1927 = vmatpush1.msra.mxu0 0.0
  %1928 = vmatprep.subr.mxu0 0.0
  %1929 = vmatpush1.msra.mxu0 0.0
  %1930 = vmatprep.subr.mxu0 0.0
  %1931 = vmatpush1.msra.mxu0 0.0
  %1932 = vmatprep.subr.mxu0 0.0
  %1933 = vmatpush1.msra.mxu0 0.0
  %1934 = vmatprep.subr.mxu0 0.0
  %1935 = vmatpush1.msra.mxu0 0.0
  %1936 = vmatprep.subr.mxu0 0.0
  %1937 = vmatpush1.msra.mxu0 0.0
  %1938 = vmatprep.subr.mxu0 0.0
  %1939 = vmatpush1.msra.mxu0 0.0
  %1940 = vmatprep.subr.mxu0 0.0
  %1941 = vmatpush1.msra.mxu0 0.0
  %1942 = vmatprep.subr.mxu0 0.0
  %1943 = vmatpush1.msra.mxu0 0.0
  %1944 = vmatprep.subr.mxu0 0.0
  %1945 = vmatpush1.msra.mxu0 0.0
  %1946 = vmatprep.subr.mxu0 0.0
  %1947 = vmatpush1.msra.mxu0 0.0
  %1948 = vmatprep.subr.mxu0 0.0
  %1949 = vmatpush1.msra.mxu0 0.0
  %1950 = vmatprep.subr.mxu0 0.0
  %1951 = vmatpush1.msra.mxu0 0.0
  %1952 = vmatprep.subr.mxu0 0.0
  %1953 = vmatpush1.msra.mxu0 0.0
  %1954 = vmatprep.subr.mxu0 0.0
  %1955 = vmatpush1.msra.mxu0 0.0
  %1956 = vmatprep.mubr.f32.mxu0 0.0
  %1957 = vmatmul.mubr.f32.gmra.mrb[0].mxu0 %v1860
  %v1958 = vpop.f32.mrb[0].mxu0
  %v1959 = vadd.f32 0.0, %v1958
  %v1960 = vpop.f32.mrb[0].mxu0
  %1961 = vmatprep.mubr.f32.mxu0 0.0
  %1962 = vmatmul.mubr.f32.gmra.mrb[0].mxu0 %v1861
  %v1963 = vpop.f32.mrb[0].mxu0
  %v1964 = vadd.f32 0.0, %v1963
  %v1965 = vpop.f32.mrb[0].mxu0
  %1966 = vmatprep.mubr.f32.mxu0 0.0
  %1967 = vmatmul.mubr.f32.gmra.mrb[0].mxu0 %v1862
  %v1968 = vpop.f32.mrb[0].mxu0
  %v1969 = vadd.f32 0.0, %v1968
  %v1970 = vpop.f32.mrb[0].mxu0
  %1971 = vmatprep.mubr.f32.mxu0 0.0
  %1972 = vmatmul.mubr.f32.gmra.mrb[0].mxu0 %v1863
  %v1973 = vpop.f32.mrb[0].mxu0
  %v1974 = vadd.f32 0.0, %v1973
  %v1975 = vpop.f32.mrb[0].mxu0
  %1976 = vmatprep.mubr.f32.mxu0 0.0
  %1977 = vmatmul.mubr.f32.gmra.mrb[0].mxu0 %v1864
  %v1978 = vpop.f32.mrb[0].mxu0
  %v1979 = vadd.f32 0.0, %v1978
  %v1980 = vpop.f32.mrb[0].mxu0
  %1981 = vmatprep.mubr.f32.mxu0 0.0
  %1982 = vmatmul.mubr.f32.gmra.mrb[0].mxu0 %v1865
  %v1983 = vpop.f32.mrb[0].mxu0
  %v1984 = vadd.f32 0.0, %v1983
  %v1985 = vpop.f32.mrb[0].mxu0
  %1986 = vmatprep.mubr.f32.mxu0 0.0
  %1987 = vmatmul.mubr.f32.gmra.mrb[0].mxu0 %v1866
  %v1988 = vpop.f32.mrb[0].mxu0
  %v1989 = vadd.f32 0.0, %v1988
  %v1990 = vpop.f32.mrb[0].mxu0
  %1991 = vmatprep.mubr.f32.mxu0 0.0
  %1992 = vmatmul.mubr.f32.gmra.mrb[0].mxu0 %v1867
  %v1993 = vpop.f32.mrb[0].mxu0
  %v1994 = vadd.f32 0.0, %v1993
  %v1995 = vpop.f32.mrb[0].mxu0
  %1996 = vmatprep.mubr.f32.mxu0 0.0
  %1997 = vmatmul.mubr.f32.gmra.mrb[0].mxu0 %v1868
  %v1998 = vpop.f32.mrb[0].mxu0
  %v1999 = vadd.f32 0.0, %v1998
  %v2000 = vpop.f32.mrb[0].mxu0
  %2001 = vmatprep.mubr.f32.mxu0 0.0
  %2002 = vmatmul.mubr.f32.gmra.mrb[0].mxu0 %v1869
  %v2003 = vpop.f32.mrb[0].mxu0
  %v2004 = vadd.f32 0.0, %v2003
  %v2005 = vpop.f32.mrb[0].mxu0
  %2006 = vmatprep.mubr.f32.mxu0 0.0
  %2007 = vmatmul.mubr.f32.gmra.mrb[0].mxu0 %v1870
  %v2008 = vpop.f32.mrb[0].mxu0
  %v2009 = vadd.f32 0.0, %v2008
  %v2010 = vpop.f32.mrb[0].mxu0
  %2011 = vmatprep.mubr.f32.mxu0 0.0
  %2012 = vmatmul.mubr.f32.gmra.mrb[0].mxu0 %v1871
  %v2013 = vpop.f32.mrb[0].mxu0
  %v2014 = vadd.f32 0.0, %v2013
  %v2015 = vpop.f32.mrb[0].mxu0
  %2016 = vmatprep.mubr.f32.mxu0 0.0
  %2017 = vmatmul.mubr.f32.gmra.mrb[0].mxu0 %v1872
  %v2018 = vpop.f32.mrb[0].mxu0
  %v2019 = vadd.f32 0.0, %v2018
  %v2020 = vpop.f32.mrb[0].mxu0
  %2021 = vmatprep.mubr.f32.mxu0 0.0
  %2022 = vmatmul.mubr.f32.gmra.mrb[0].mxu0 %v1873
  %v2023 = vpop.f32.mrb[0].mxu0
  %v2024 = vadd.f32 0.0, %v2023
  %v2025 = vpop.f32.mrb[0].mxu0
  %2026 = vmatprep.mubr.f32.mxu0 0.0
  %2027 = vmatmul.mubr.f32.gmra.mrb[0].mxu0 %v1874
  %v2028 = vpop.f32.mrb[0].mxu0
  %v2029 = vadd.f32 0.0, %v2028
  %v2030 = vpop.f32.mrb[0].mxu0
  %2031 = vmatprep.mubr.f32.mxu0 0.0
  %2032 = vmatmul.mubr.f32.gmra.mrb[0].mxu0 %v1875
  %v2033 = vpop.f32.mrb[0].mxu0
  %v2034 = vadd.f32 0.0, %v2033
  %v2035 = vpop.f32.mrb[0].mxu0
  %2036 = vdwg.mxu0
  %v2037 = vadd.f32 %v1844, %v1959
  %v2038 = vadd.f32 %v1845, %v1964
  %v2039 = vadd.f32 %v1846, %v1969
  %v2040 = vadd.f32 %v1847, %v1974
  %v2041 = vadd.f32 %v1848, %v1979
  %v2042 = vadd.f32 %v1849, %v1984
  %v2043 = vadd.f32 %v1850, %v1989
  %v2044 = vadd.f32 %v1851, %v1994
  %v2045 = vadd.f32 %v1852, %v1999
  %v2046 = vadd.f32 %v1853, %v2004
  %v2047 = vadd.f32 %v1854, %v2009
  %v2048 = vadd.f32 %v1855, %v2014
  %v2049 = vadd.f32 %v1856, %v2019
  %v2050 = vadd.f32 %v1857, %v2024
  %v2051 = vadd.f32 %v1858, %v2029
  %v2052 = vadd.f32 %v1859, %v2034
  %v2053 = vld [vmem:[#allocation2 + $0xbf] sm:$0xff]
  %v2054 = vld [vmem:[#allocation2 + $0xc7] sm:$0xff]
  %v2055 = vld [vmem:[#allocation2 + $0xcf] sm:$0xff]
  %v2056 = vld [vmem:[#allocation2 + $0xd7] sm:$0xff]
  %v2057 = vld [vmem:[#allocation2 + $0xdf] sm:$0xff]
  %v2058 = vld [vmem:[#allocation2 + $0xe7] sm:$0xff]
  %v2059 = vld [vmem:[#allocation2 + $0xef] sm:$0xff]
  %v2060 = vld [vmem:[#allocation2 + $0xf7] sm:$0xff]
  %v2061 = vld [vmem:[#allocation2 + $0x1bf] sm:$0xff]
  %v2062 = vld [vmem:[#allocation2 + $0x1c7] sm:$0xff]
  %v2063 = vld [vmem:[#allocation2 + $0x1cf] sm:$0xff]
  %v2064 = vld [vmem:[#allocation2 + $0x1d7] sm:$0xff]
  %v2065 = vld [vmem:[#allocation2 + $0x1df] sm:$0xff]
  %v2066 = vld [vmem:[#allocation2 + $0x1e7] sm:$0xff]
  %v2067 = vld [vmem:[#allocation2 + $0x1ef] sm:$0xff]
  %v2068 = vld [vmem:[#allocation2 + $0x1f7] sm:$0xff]
  %v2069 = vmul.f32 %v2053, %v862
  %v2070 = vmul.f32 %v2054, %v863
  %v2071 = vmul.f32 %v2055, %v864
  %v2072 = vmul.f32 %v2056, %v865
  %v2073 = vmul.f32 %v2057, %v866
  %v2074 = vmul.f32 %v2058, %v867
  %v2075 = vmul.f32 %v2059, %v868
  %v2076 = vmul.f32 %v2060, %v869
  %v2077 = vmul.f32 %v2061, %v862
  %v2078 = vmul.f32 %v2062, %v863
  %v2079 = vmul.f32 %v2063, %v864
  %v2080 = vmul.f32 %v2064, %v865
  %v2081 = vmul.f32 %v2065, %v866
  %v2082 = vmul.f32 %v2066, %v867
  %v2083 = vmul.f32 %v2067, %v868
  %v2084 = vmul.f32 %v2068, %v869
  %v2085 = vld [vmem:[%s1 + $0xb8] sm:$0xff]
  %v2086 = vld [vmem:[%s1 + $0xc0] sm:$0xff]
  %v2087 = vld [vmem:[%s1 + $0xc8] sm:$0xff]
  %v2088 = vld [vmem:[%s1 + $0xd0] sm:$0xff]
  %v2089 = vld [vmem:[%s1 + $0xd8] sm:$0xff]
  %v2090 = vld [vmem:[%s1 + $0xe0] sm:$0xff]
  %v2091 = vld [vmem:[%s1 + $0xe8] sm:$0xff]
  %v2092 = vld [vmem:[%s1 + $0xf0] sm:$0xff]
  %v2093 = vld [vmem:[%s1 + $0xf8] sm:$0xff]
  %v2094 = vld [vmem:[%s1 + $0x100] sm:$0xff]
  %v2095 = vld [vmem:[%s1 + $0x108] sm:$0xff]
  %v2096 = vld [vmem:[%s1 + $0x110] sm:$0xff]
  %v2097 = vld [vmem:[%s1 + $0x118] sm:$0xff]
  %v2098 = vld [vmem:[%s1 + $0x120] sm:$0xff]
  %v2099 = vld [vmem:[%s1 + $0x128] sm:$0xff]
  %v2100 = vld [vmem:[%s1 + $0x130] sm:$0xff]
  %2101 = vmatprep.subr.mxu0 0.0
  %2102 = vmatpush1.msra.mxu0 %v2085
  %2103 = vmatprep.subr.mxu0 0.0
  %2104 = vmatpush1.msra.mxu0 %v2086
  %2105 = vmatprep.subr.mxu0 0.0
  %2106 = vmatpush1.msra.mxu0 %v2087
  %2107 = vmatprep.subr.mxu0 0.0
  %2108 = vmatpush1.msra.mxu0 %v2088
  %2109 = vmatprep.subr.mxu0 0.0
  %2110 = vmatpush1.msra.mxu0 %v2089
  %2111 = vmatprep.subr.mxu0 0.0
  %2112 = vmatpush1.msra.mxu0 %v2090
  %2113 = vmatprep.subr.mxu0 0.0
  %2114 = vmatpush1.msra.mxu0 %v2091
  %2115 = vmatprep.subr.mxu0 0.0
  %2116 = vmatpush1.msra.mxu0 %v2092
  %2117 = vmatprep.subr.mxu0 0.0
  %2118 = vmatpush1.msra.mxu0 %v2093
  %2119 = vmatprep.subr.mxu0 0.0
  %2120 = vmatpush1.msra.mxu0 %v2094
  %2121 = vmatprep.subr.mxu0 0.0
  %2122 = vmatpush1.msra.mxu0 %v2095
  %2123 = vmatprep.subr.mxu0 0.0
  %2124 = vmatpush1.msra.mxu0 %v2096
  %2125 = vmatprep.subr.mxu0 0.0
  %2126 = vmatpush1.msra.mxu0 %v2097
  %2127 = vmatprep.subr.mxu0 0.0
  %2128 = vmatpush1.msra.mxu0 %v2098
  %2129 = vmatprep.subr.mxu0 0.0
  %2130 = vmatpush1.msra.mxu0 %v2099
  %2131 = vmatprep.subr.mxu0 0.0
  %2132 = vmatpush1.msra.mxu0 %v2100
  %2133 = vmatprep.subr.mxu0 0.0
  %2134 = vmatpush1.msra.mxu0 0.0
  %2135 = vmatprep.subr.mxu0 0.0
  %2136 = vmatpush1.msra.mxu0 0.0
  %2137 = vmatprep.subr.mxu0 0.0
  %2138 = vmatpush1.msra.mxu0 0.0
  %2139 = vmatprep.subr.mxu0 0.0
  %2140 = vmatpush1.msra.mxu0 0.0
  %2141 = vmatprep.subr.mxu0 0.0
  %2142 = vmatpush1.msra.mxu0 0.0
  %2143 = vmatprep.subr.mxu0 0.0
  %2144 = vmatpush1.msra.mxu0 0.0
  %2145 = vmatprep.subr.mxu0 0.0
  %2146 = vmatpush1.msra.mxu0 0.0
  %2147 = vmatprep.subr.mxu0 0.0
  %2148 = vmatpush1.msra.mxu0 0.0
  %2149 = vmatprep.subr.mxu0 0.0
  %2150 = vmatpush1.msra.mxu0 0.0
  %2151 = vmatprep.subr.mxu0 0.0
  %2152 = vmatpush1.msra.mxu0 0.0
  %2153 = vmatprep.subr.mxu0 0.0
  %2154 = vmatpush1.msra.mxu0 0.0
  %2155 = vmatprep.subr.mxu0 0.0
  %2156 = vmatpush1.msra.mxu0 0.0
  %2157 = vmatprep.subr.mxu0 0.0
  %2158 = vmatpush1.msra.mxu0 0.0
  %2159 = vmatprep.subr.mxu0 0.0
  %2160 = vmatpush1.msra.mxu0 0.0
  %2161 = vmatprep.subr.mxu0 0.0
  %2162 = vmatpush1.msra.mxu0 0.0
  %2163 = vmatprep.subr.mxu0 0.0
  %2164 = vmatpush1.msra.mxu0 0.0
  %2165 = vmatprep.mubr.f32.mxu0 0.0
  %2166 = vmatmul.mubr.f32.gmra.mrb[0].mxu0 %v2069
  %v2167 = vpop.f32.mrb[0].mxu0
  %v2168 = vadd.f32 0.0, %v2167
  %v2169 = vpop.f32.mrb[0].mxu0
  %2170 = vmatprep.mubr.f32.mxu0 0.0
  %2171 = vmatmul.mubr.f32.gmra.mrb[0].mxu0 %v2070
  %v2172 = vpop.f32.mrb[0].mxu0
  %v2173 = vadd.f32 0.0, %v2172
  %v2174 = vpop.f32.mrb[0].mxu0
  %2175 = vmatprep.mubr.f32.mxu0 0.0
  %2176 = vmatmul.mubr.f32.gmra.mrb[0].mxu0 %v2071
  %v2177 = vpop.f32.mrb[0].mxu0
  %v2178 = vadd.f32 0.0, %v2177
  %v2179 = vpop.f32.mrb[0].mxu0
  %2180 = vmatprep.mubr.f32.mxu0 0.0
  %2181 = vmatmul.mubr.f32.gmra.mrb[0].mxu0 %v2072
  %v2182 = vpop.f32.mrb[0].mxu0
  %v2183 = vadd.f32 0.0, %v2182
  %v2184 = vpop.f32.mrb[0].mxu0
  %2185 = vmatprep.mubr.f32.mxu0 0.0
  %2186 = vmatmul.mubr.f32.gmra.mrb[0].mxu0 %v2073
  %v2187 = vpop.f32.mrb[0].mxu0
  %v2188 = vadd.f32 0.0, %v2187
  %v2189 = vpop.f32.mrb[0].mxu0
  %2190 = vmatprep.mubr.f32.mxu0 0.0
  %2191 = vmatmul.mubr.f32.gmra.mrb[0].mxu0 %v2074
  %v2192 = vpop.f32.mrb[0].mxu0
  %v2193 = vadd.f32 0.0, %v2192
  %v2194 = vpop.f32.mrb[0].mxu0
  %2195 = vmatprep.mubr.f32.mxu0 0.0
  %2196 = vmatmul.mubr.f32.gmra.mrb[0].mxu0 %v2075
  %v2197 = vpop.f32.mrb[0].mxu0
  %v2198 = vadd.f32 0.0, %v2197
  %v2199 = vpop.f32.mrb[0].mxu0
  %2200 = vmatprep.mubr.f32.mxu0 0.0
  %2201 = vmatmul.mubr.f32.gmra.mrb[0].mxu0 %v2076
  %v2202 = vpop.f32.mrb[0].mxu0
  %v2203 = vadd.f32 0.0, %v2202
  %v2204 = vpop.f32.mrb[0].mxu0
  %2205 = vmatprep.mubr.f32.mxu0 0.0
  %2206 = vmatmul.mubr.f32.gmra.mrb[0].mxu0 %v2077
  %v2207 = vpop.f32.mrb[0].mxu0
  %v2208 = vadd.f32 0.0, %v2207
  %v2209 = vpop.f32.mrb[0].mxu0
  %2210 = vmatprep.mubr.f32.mxu0 0.0
  %2211 = vmatmul.mubr.f32.gmra.mrb[0].mxu0 %v2078
  %v2212 = vpop.f32.mrb[0].mxu0
  %v2213 = vadd.f32 0.0, %v2212
  %v2214 = vpop.f32.mrb[0].mxu0
  %2215 = vmatprep.mubr.f32.mxu0 0.0
  %2216 = vmatmul.mubr.f32.gmra.mrb[0].mxu0 %v2079
  %v2217 = vpop.f32.mrb[0].mxu0
  %v2218 = vadd.f32 0.0, %v2217
  %v2219 = vpop.f32.mrb[0].mxu0
  %2220 = vmatprep.mubr.f32.mxu0 0.0
  %2221 = vmatmul.mubr.f32.gmra.mrb[0].mxu0 %v2080
  %v2222 = vpop.f32.mrb[0].mxu0
  %v2223 = vadd.f32 0.0, %v2222
  %v2224 = vpop.f32.mrb[0].mxu0
  %2225 = vmatprep.mubr.f32.mxu0 0.0
  %2226 = vmatmul.mubr.f32.gmra.mrb[0].mxu0 %v2081
  %v2227 = vpop.f32.mrb[0].mxu0
  %v2228 = vadd.f32 0.0, %v2227
  %v2229 = vpop.f32.mrb[0].mxu0
  %2230 = vmatprep.mubr.f32.mxu0 0.0
  %2231 = vmatmul.mubr.f32.gmra.mrb[0].mxu0 %v2082
  %v2232 = vpop.f32.mrb[0].mxu0
  %v2233 = vadd.f32 0.0, %v2232
  %v2234 = vpop.f32.mrb[0].mxu0
  %2235 = vmatprep.mubr.f32.mxu0 0.0
  %2236 = vmatmul.mubr.f32.gmra.mrb[0].mxu0 %v2083
  %v2237 = vpop.f32.mrb[0].mxu0
  %v2238 = vadd.f32 0.0, %v2237
  %v2239 = vpop.f32.mrb[0].mxu0
  %2240 = vmatprep.mubr.f32.mxu0 0.0
  %2241 = vmatmul.mubr.f32.gmra.mrb[0].mxu0 %v2084
  %v2242 = vpop.f32.mrb[0].mxu0
  %v2243 = vadd.f32 0.0, %v2242
  %v2244 = vpop.f32.mrb[0].mxu0
  %2245 = vdwg.mxu0
  %v2246 = vadd.f32 %v2037, %v2168
  %v2247 = vadd.f32 %v2038, %v2173
  %v2248 = vadd.f32 %v2039, %v2178
  %v2249 = vadd.f32 %v2040, %v2183
  %v2250 = vadd.f32 %v2041, %v2188
  %v2251 = vadd.f32 %v2042, %v2193
  %v2252 = vadd.f32 %v2043, %v2198
  %v2253 = vadd.f32 %v2044, %v2203
  %v2254 = vadd.f32 %v2045, %v2208
  %v2255 = vadd.f32 %v2046, %v2213
  %v2256 = vadd.f32 %v2047, %v2218
  %v2257 = vadd.f32 %v2048, %v2223
  %v2258 = vadd.f32 %v2049, %v2228
  %v2259 = vadd.f32 %v2050, %v2233
  %v2260 = vadd.f32 %v2051, %v2238
  %v2261 = vadd.f32 %v2052, %v2243
  %v2262 = vld [vmem:[#allocation2 + $0x80] sm:$0xff]
  %v2263 = vld [vmem:[#allocation2 + $0x88] sm:$0xff]
  %v2264 = vld [vmem:[#allocation2 + $0x90] sm:$0xff]
  %v2265 = vld [vmem:[#allocation2 + $0x98] sm:$0xff]
  %v2266 = vld [vmem:[#allocation2 + $0xa0] sm:$0xff]
  %v2267 = vld [vmem:[#allocation2 + $0xa8] sm:$0xff]
  %v2268 = vld [vmem:[#allocation2 + $0xb0] sm:$0xff]
  %v2269 = vld [vmem:[#allocation2 + $0xb8] sm:$0xff]
  %v2270 = vld [vmem:[#allocation2 + $0x180] sm:$0xff]
  %v2271 = vld [vmem:[#allocation2 + $0x188] sm:$0xff]
  %v2272 = vld [vmem:[#allocation2 + $0x190] sm:$0xff]
  %v2273 = vld [vmem:[#allocation2 + $0x198] sm:$0xff]
  %v2274 = vld [vmem:[#allocation2 + $0x1a0] sm:$0xff]
  %v2275 = vld [vmem:[#allocation2 + $0x1a8] sm:$0xff]
  %v2276 = vld [vmem:[#allocation2 + $0x1b0] sm:$0xff]
  %v2277 = vld [vmem:[#allocation2 + $0x1b8] sm:$0xff]
  %v2278 = vld [vmem:[%s1 + $0xc0] sm:$0xff]
  %v2279 = vld [vmem:[%s1 + $0xc8] sm:$0xff]
  %v2280 = vld [vmem:[%s1 + $0xd0] sm:$0xff]
  %v2281 = vld [vmem:[%s1 + $0xd8] sm:$0xff]
  %v2282 = vld [vmem:[%s1 + $0xe0] sm:$0xff]
  %v2283 = vld [vmem:[%s1 + $0xe8] sm:$0xff]
  %v2284 = vld [vmem:[%s1 + $0xf0] sm:$0xff]
  %v2285 = vld [vmem:[%s1 + $0xf8] sm:$0xff]
  %v2286 = vld [vmem:[%s1 + $0x100] sm:$0xff]
  %v2287 = vld [vmem:[%s1 + $0x108] sm:$0xff]
  %v2288 = vld [vmem:[%s1 + $0x110] sm:$0xff]
  %v2289 = vld [vmem:[%s1 + $0x118] sm:$0xff]
  %v2290 = vld [vmem:[%s1 + $0x120] sm:$0xff]
  %v2291 = vld [vmem:[%s1 + $0x128] sm:$0xff]
  %v2292 = vld [vmem:[%s1 + $0x130] sm:$0xff]
  %v2293 = vld [vmem:[%s1 + $0x138] sm:$0xff]
  %2294 = vmatprep.subr.mxu0 0.0
  %2295 = vmatpush1.msra.mxu0 %v2278
  %2296 = vmatprep.subr.mxu0 0.0
  %2297 = vmatpush1.msra.mxu0 %v2279
  %2298 = vmatprep.subr.mxu0 0.0
  %2299 = vmatpush1.msra.mxu0 %v2280
  %2300 = vmatprep.subr.mxu0 0.0
  %2301 = vmatpush1.msra.mxu0 %v2281
  %2302 = vmatprep.subr.mxu0 0.0
  %2303 = vmatpush1.msra.mxu0 %v2282
  %2304 = vmatprep.subr.mxu0 0.0
  %2305 = vmatpush1.msra.mxu0 %v2283
  %2306 = vmatprep.subr.mxu0 0.0
  %2307 = vmatpush1.msra.mxu0 %v2284
  %2308 = vmatprep.subr.mxu0 0.0
  %2309 = vmatpush1.msra.mxu0 %v2285
  %2310 = vmatprep.subr.mxu0 0.0
  %2311 = vmatpush1.msra.mxu0 %v2286
  %2312 = vmatprep.subr.mxu0 0.0
  %2313 = vmatpush1.msra.mxu0 %v2287
  %2314 = vmatprep.subr.mxu0 0.0
  %2315 = vmatpush1.msra.mxu0 %v2288
  %2316 = vmatprep.subr.mxu0 0.0
  %2317 = vmatpush1.msra.mxu0 %v2289
  %2318 = vmatprep.subr.mxu0 0.0
  %2319 = vmatpush1.msra.mxu0 %v2290
  %2320 = vmatprep.subr.mxu0 0.0
  %2321 = vmatpush1.msra.mxu0 %v2291
  %2322 = vmatprep.subr.mxu0 0.0
  %2323 = vmatpush1.msra.mxu0 %v2292
  %2324 = vmatprep.subr.mxu0 0.0
  %2325 = vmatpush1.msra.mxu0 %v2293
  %2326 = vmatprep.subr.mxu0 0.0
  %2327 = vmatpush1.msra.mxu0 0.0
  %2328 = vmatprep.subr.mxu0 0.0
  %2329 = vmatpush1.msra.mxu0 0.0
  %2330 = vmatprep.subr.mxu0 0.0
  %2331 = vmatpush1.msra.mxu0 0.0
  %2332 = vmatprep.subr.mxu0 0.0
  %2333 = vmatpush1.msra.mxu0 0.0
  %2334 = vmatprep.subr.mxu0 0.0
  %2335 = vmatpush1.msra.mxu0 0.0
  %2336 = vmatprep.subr.mxu0 0.0
  %2337 = vmatpush1.msra.mxu0 0.0
  %2338 = vmatprep.subr.mxu0 0.0
  %2339 = vmatpush1.msra.mxu0 0.0
  %2340 = vmatprep.subr.mxu0 0.0
  %2341 = vmatpush1.msra.mxu0 0.0
  %2342 = vmatprep.subr.mxu0 0.0
  %2343 = vmatpush1.msra.mxu0 0.0
  %2344 = vmatprep.subr.mxu0 0.0
  %2345 = vmatpush1.msra.mxu0 0.0
  %2346 = vmatprep.subr.mxu0 0.0
  %2347 = vmatpush1.msra.mxu0 0.0
  %2348 = vmatprep.subr.mxu0 0.0
  %2349 = vmatpush1.msra.mxu0 0.0
  %2350 = vmatprep.subr.mxu0 0.0
  %2351 = vmatpush1.msra.mxu0 0.0
  %2352 = vmatprep.subr.mxu0 0.0
  %2353 = vmatpush1.msra.mxu0 0.0
  %2354 = vmatprep.subr.mxu0 0.0
  %2355 = vmatpush1.msra.mxu0 0.0
  %2356 = vmatprep.subr.mxu0 0.0
  %2357 = vmatpush1.msra.mxu0 0.0
  %2358 = vmatprep.mubr.f32.mxu0 0.0
  %2359 = vmatmul.mubr.f32.gmra.mrb[0].mxu0 %v2262
  %v2360 = vpop.f32.mrb[0].mxu0
  %v2361 = vadd.f32 0.0, %v2360
  %v2362 = vpop.f32.mrb[0].mxu0
  %2363 = vmatprep.mubr.f32.mxu0 0.0
  %2364 = vmatmul.mubr.f32.gmra.mrb[0].mxu0 %v2263
  %v2365 = vpop.f32.mrb[0].mxu0
  %v2366 = vadd.f32 0.0, %v2365
  %v2367 = vpop.f32.mrb[0].mxu0
  %2368 = vmatprep.mubr.f32.mxu0 0.0
  %2369 = vmatmul.mubr.f32.gmra.mrb[0].mxu0 %v2264
  %v2370 = vpop.f32.mrb[0].mxu0
  %v2371 = vadd.f32 0.0, %v2370
  %v2372 = vpop.f32.mrb[0].mxu0
  %2373 = vmatprep.mubr.f32.mxu0 0.0
  %2374 = vmatmul.mubr.f32.gmra.mrb[0].mxu0 %v2265
  %v2375 = vpop.f32.mrb[0].mxu0
  %v2376 = vadd.f32 0.0, %v2375
  %v2377 = vpop.f32.mrb[0].mxu0
  %2378 = vmatprep.mubr.f32.mxu0 0.0
  %2379 = vmatmul.mubr.f32.gmra.mrb[0].mxu0 %v2266
  %v2380 = vpop.f32.mrb[0].mxu0
  %v2381 = vadd.f32 0.0, %v2380
  %v2382 = vpop.f32.mrb[0].mxu0
  %2383 = vmatprep.mubr.f32.mxu0 0.0
  %2384 = vmatmul.mubr.f32.gmra.mrb[0].mxu0 %v2267
  %v2385 = vpop.f32.mrb[0].mxu0
  %v2386 = vadd.f32 0.0, %v2385
  %v2387 = vpop.f32.mrb[0].mxu0
  %2388 = vmatprep.mubr.f32.mxu0 0.0
  %2389 = vmatmul.mubr.f32.gmra.mrb[0].mxu0 %v2268
  %v2390 = vpop.f32.mrb[0].mxu0
  %v2391 = vadd.f32 0.0, %v2390
  %v2392 = vpop.f32.mrb[0].mxu0
  %2393 = vmatprep.mubr.f32.mxu0 0.0
  %2394 = vmatmul.mubr.f32.gmra.mrb[0].mxu0 %v2269
  %v2395 = vpop.f32.mrb[0].mxu0
  %v2396 = vadd.f32 0.0, %v2395
  %v2397 = vpop.f32.mrb[0].mxu0
  %2398 = vmatprep.mubr.f32.mxu0 0.0
  %2399 = vmatmul.mubr.f32.gmra.mrb[0].mxu0 %v2270
  %v2400 = vpop.f32.mrb[0].mxu0
  %v2401 = vadd.f32 0.0, %v2400
  %v2402 = vpop.f32.mrb[0].mxu0
  %2403 = vmatprep.mubr.f32.mxu0 0.0
  %2404 = vmatmul.mubr.f32.gmra.mrb[0].mxu0 %v2271
  %v2405 = vpop.f32.mrb[0].mxu0
  %v2406 = vadd.f32 0.0, %v2405
  %v2407 = vpop.f32.mrb[0].mxu0
  %2408 = vmatprep.mubr.f32.mxu0 0.0
  %2409 = vmatmul.mubr.f32.gmra.mrb[0].mxu0 %v2272
  %v2410 = vpop.f32.mrb[0].mxu0
  %v2411 = vadd.f32 0.0, %v2410
  %v2412 = vpop.f32.mrb[0].mxu0
  %2413 = vmatprep.mubr.f32.mxu0 0.0
  %2414 = vmatmul.mubr.f32.gmra.mrb[0].mxu0 %v2273
  %v2415 = vpop.f32.mrb[0].mxu0
  %v2416 = vadd.f32 0.0, %v2415
  %v2417 = vpop.f32.mrb[0].mxu0
  %2418 = vmatprep.mubr.f32.mxu0 0.0
  %2419 = vmatmul.mubr.f32.gmra.mrb[0].mxu0 %v2274
  %v2420 = vpop.f32.mrb[0].mxu0
  %v2421 = vadd.f32 0.0, %v2420
  %v2422 = vpop.f32.mrb[0].mxu0
  %2423 = vmatprep.mubr.f32.mxu0 0.0
  %2424 = vmatmul.mubr.f32.gmra.mrb[0].mxu0 %v2275
  %v2425 = vpop.f32.mrb[0].mxu0
  %v2426 = vadd.f32 0.0, %v2425
  %v2427 = vpop.f32.mrb[0].mxu0
  %2428 = vmatprep.mubr.f32.mxu0 0.0
  %2429 = vmatmul.mubr.f32.gmra.mrb[0].mxu0 %v2276
  %v2430 = vpop.f32.mrb[0].mxu0
  %v2431 = vadd.f32 0.0, %v2430
  %v2432 = vpop.f32.mrb[0].mxu0
  %2433 = vmatprep.mubr.f32.mxu0 0.0
  %2434 = vmatmul.mubr.f32.gmra.mrb[0].mxu0 %v2277
  %v2435 = vpop.f32.mrb[0].mxu0
  %v2436 = vadd.f32 0.0, %v2435
  %v2437 = vpop.f32.mrb[0].mxu0
  %2438 = vdwg.mxu0
  %v2439 = vadd.f32 %v2246, %v2361
  %v2440 = vadd.f32 %v2247, %v2366
  %v2441 = vadd.f32 %v2248, %v2371
  %v2442 = vadd.f32 %v2249, %v2376
  %v2443 = vadd.f32 %v2250, %v2381
  %v2444 = vadd.f32 %v2251, %v2386
  %v2445 = vadd.f32 %v2252, %v2391
  %v2446 = vadd.f32 %v2253, %v2396
  %v2447 = vadd.f32 %v2254, %v2401
  %v2448 = vadd.f32 %v2255, %v2406
  %v2449 = vadd.f32 %v2256, %v2411
  %v2450 = vadd.f32 %v2257, %v2416
  %v2451 = vadd.f32 %v2258, %v2421
  %v2452 = vadd.f32 %v2259, %v2426
  %v2453 = vadd.f32 %v2260, %v2431
  %v2454 = vadd.f32 %v2261, %v2436
  %v2455 = vld [vmem:[#allocation2 + $0xc0] sm:$0xff]
  %v2456 = vld [vmem:[#allocation2 + $0xc8] sm:$0xff]
  %v2457 = vld [vmem:[#allocation2 + $0xd0] sm:$0xff]
  %v2458 = vld [vmem:[#allocation2 + $0xd8] sm:$0xff]
  %v2459 = vld [vmem:[#allocation2 + $0xe0] sm:$0xff]
  %v2460 = vld [vmem:[#allocation2 + $0xe8] sm:$0xff]
  %v2461 = vld [vmem:[#allocation2 + $0xf0] sm:$0xff]
  %v2462 = vld [vmem:[#allocation2 + $0xf8] sm:$0xff]
  %v2463 = vld [vmem:[#allocation2 + $0x1c0] sm:$0xff]
  %v2464 = vld [vmem:[#allocation2 + $0x1c8] sm:$0xff]
  %v2465 = vld [vmem:[#allocation2 + $0x1d0] sm:$0xff]
  %v2466 = vld [vmem:[#allocation2 + $0x1d8] sm:$0xff]
  %v2467 = vld [vmem:[#allocation2 + $0x1e0] sm:$0xff]
  %v2468 = vld [vmem:[#allocation2 + $0x1e8] sm:$0xff]
  %v2469 = vld [vmem:[#allocation2 + $0x1f0] sm:$0xff]
  %v2470 = vld [vmem:[#allocation2 + $0x1f8] sm:$0xff]
  %v2471 = vld [vmem:[%s1 + $0xc8] sm:$0xff]
  %v2472 = vld [vmem:[%s1 + $0xd0] sm:$0xff]
  %v2473 = vld [vmem:[%s1 + $0xd8] sm:$0xff]
  %v2474 = vld [vmem:[%s1 + $0xe0] sm:$0xff]
  %v2475 = vld [vmem:[%s1 + $0xe8] sm:$0xff]
  %v2476 = vld [vmem:[%s1 + $0xf0] sm:$0xff]
  %v2477 = vld [vmem:[%s1 + $0xf8] sm:$0xff]
  %v2478 = vld [vmem:[%s1 + $0x100] sm:$0xff]
  %v2479 = vld [vmem:[%s1 + $0x108] sm:$0xff]
  %v2480 = vld [vmem:[%s1 + $0x110] sm:$0xff]
  %v2481 = vld [vmem:[%s1 + $0x118] sm:$0xff]
  %v2482 = vld [vmem:[%s1 + $0x120] sm:$0xff]
  %v2483 = vld [vmem:[%s1 + $0x128] sm:$0xff]
  %v2484 = vld [vmem:[%s1 + $0x130] sm:$0xff]
  %v2485 = vld [vmem:[%s1 + $0x138] sm:$0xff]
  %v2486 = vld [vmem:[%s1 + $0x140] sm:$0xff]
  %2487 = vmatprep.subr.mxu0 0.0
  %2488 = vmatpush1.msra.mxu0 %v2471
  %2489 = vmatprep.subr.mxu0 0.0
  %2490 = vmatpush1.msra.mxu0 %v2472
  %2491 = vmatprep.subr.mxu0 0.0
  %2492 = vmatpush1.msra.mxu0 %v2473
  %2493 = vmatprep.subr.mxu0 0.0
  %2494 = vmatpush1.msra.mxu0 %v2474
  %2495 = vmatprep.subr.mxu0 0.0
  %2496 = vmatpush1.msra.mxu0 %v2475
  %2497 = vmatprep.subr.mxu0 0.0
  %2498 = vmatpush1.msra.mxu0 %v2476
  %2499 = vmatprep.subr.mxu0 0.0
  %2500 = vmatpush1.msra.mxu0 %v2477
  %2501 = vmatprep.subr.mxu0 0.0
  %2502 = vmatpush1.msra.mxu0 %v2478
  %2503 = vmatprep.subr.mxu0 0.0
  %2504 = vmatpush1.msra.mxu0 %v2479
  %2505 = vmatprep.subr.mxu0 0.0
  %2506 = vmatpush1.msra.mxu0 %v2480
  %2507 = vmatprep.subr.mxu0 0.0
  %2508 = vmatpush1.msra.mxu0 %v2481
  %2509 = vmatprep.subr.mxu0 0.0
  %2510 = vmatpush1.msra.mxu0 %v2482
  %2511 = vmatprep.subr.mxu0 0.0
  %2512 = vmatpush1.msra.mxu0 %v2483
  %2513 = vmatprep.subr.mxu0 0.0
  %2514 = vmatpush1.msra.mxu0 %v2484
  %2515 = vmatprep.subr.mxu0 0.0
  %2516 = vmatpush1.msra.mxu0 %v2485
  %2517 = vmatprep.subr.mxu0 0.0
  %2518 = vmatpush1.msra.mxu0 %v2486
  %2519 = vmatprep.subr.mxu0 0.0
  %2520 = vmatpush1.msra.mxu0 0.0
  %2521 = vmatprep.subr.mxu0 0.0
  %2522 = vmatpush1.msra.mxu0 0.0
  %2523 = vmatprep.subr.mxu0 0.0
  %2524 = vmatpush1.msra.mxu0 0.0
  %2525 = vmatprep.subr.mxu0 0.0
  %2526 = vmatpush1.msra.mxu0 0.0
  %2527 = vmatprep.subr.mxu0 0.0
  %2528 = vmatpush1.msra.mxu0 0.0
  %2529 = vmatprep.subr.mxu0 0.0
  %2530 = vmatpush1.msra.mxu0 0.0
  %2531 = vmatprep.subr.mxu0 0.0
  %2532 = vmatpush1.msra.mxu0 0.0
  %2533 = vmatprep.subr.mxu0 0.0
  %2534 = vmatpush1.msra.mxu0 0.0
  %2535 = vmatprep.subr.mxu0 0.0
  %2536 = vmatpush1.msra.mxu0 0.0
  %2537 = vmatprep.subr.mxu0 0.0
  %2538 = vmatpush1.msra.mxu0 0.0
  %2539 = vmatprep.subr.mxu0 0.0
  %2540 = vmatpush1.msra.mxu0 0.0
  %2541 = vmatprep.subr.mxu0 0.0
  %2542 = vmatpush1.msra.mxu0 0.0
  %2543 = vmatprep.subr.mxu0 0.0
  %2544 = vmatpush1.msra.mxu0 0.0
  %2545 = vmatprep.subr.mxu0 0.0
  %2546 = vmatpush1.msra.mxu0 0.0
  %2547 = vmatprep.subr.mxu0 0.0
  %2548 = vmatpush1.msra.mxu0 0.0
  %2549 = vmatprep.subr.mxu0 0.0
  %2550 = vmatpush1.msra.mxu0 0.0
  %2551 = vmatprep.mubr.f32.mxu0 0.0
  %2552 = vmatmul.mubr.f32.gmra.mrb[0].mxu0 %v2455
  %v2553 = vpop.f32.mrb[0].mxu0
  %v2554 = vadd.f32 0.0, %v2553
  %v2555 = vpop.f32.mrb[0].mxu0
  %2556 = vmatprep.mubr.f32.mxu0 0.0
  %2557 = vmatmul.mubr.f32.gmra.mrb[0].mxu0 %v2456
  %v2558 = vpop.f32.mrb[0].mxu0
  %v2559 = vadd.f32 0.0, %v2558
  %v2560 = vpop.f32.mrb[0].mxu0
  %2561 = vmatprep.mubr.f32.mxu0 0.0
  %2562 = vmatmul.mubr.f32.gmra.mrb[0].mxu0 %v2457
  %v2563 = vpop.f32.mrb[0].mxu0
  %v2564 = vadd.f32 0.0, %v2563
  %v2565 = vpop.f32.mrb[0].mxu0
  %2566 = vmatprep.mubr.f32.mxu0 0.0
  %2567 = vmatmul.mubr.f32.gmra.mrb[0].mxu0 %v2458
  %v2568 = vpop.f32.mrb[0].mxu0
  %v2569 = vadd.f32 0.0, %v2568
  %v2570 = vpop.f32.mrb[0].mxu0
  %2571 = vmatprep.mubr.f32.mxu0 0.0
  %2572 = vmatmul.mubr.f32.gmra.mrb[0].mxu0 %v2459
  %v2573 = vpop.f32.mrb[0].mxu0
  %v2574 = vadd.f32 0.0, %v2573
  %v2575 = vpop.f32.mrb[0].mxu0
  %2576 = vmatprep.mubr.f32.mxu0 0.0
  %2577 = vmatmul.mubr.f32.gmra.mrb[0].mxu0 %v2460
  %v2578 = vpop.f32.mrb[0].mxu0
  %v2579 = vadd.f32 0.0, %v2578
  %v2580 = vpop.f32.mrb[0].mxu0
  %2581 = vmatprep.mubr.f32.mxu0 0.0
  %2582 = vmatmul.mubr.f32.gmra.mrb[0].mxu0 %v2461
  %v2583 = vpop.f32.mrb[0].mxu0
  %v2584 = vadd.f32 0.0, %v2583
  %v2585 = vpop.f32.mrb[0].mxu0
  %2586 = vmatprep.mubr.f32.mxu0 0.0
  %2587 = vmatmul.mubr.f32.gmra.mrb[0].mxu0 %v2462
  %v2588 = vpop.f32.mrb[0].mxu0
  %v2589 = vadd.f32 0.0, %v2588
  %v2590 = vpop.f32.mrb[0].mxu0
  %2591 = vmatprep.mubr.f32.mxu0 0.0
  %2592 = vmatmul.mubr.f32.gmra.mrb[0].mxu0 %v2463
  %v2593 = vpop.f32.mrb[0].mxu0
  %v2594 = vadd.f32 0.0, %v2593
  %v2595 = vpop.f32.mrb[0].mxu0
  %2596 = vmatprep.mubr.f32.mxu0 0.0
  %2597 = vmatmul.mubr.f32.gmra.mrb[0].mxu0 %v2464
  %v2598 = vpop.f32.mrb[0].mxu0
  %v2599 = vadd.f32 0.0, %v2598
  %v2600 = vpop.f32.mrb[0].mxu0
  %2601 = vmatprep.mubr.f32.mxu0 0.0
  %2602 = vmatmul.mubr.f32.gmra.mrb[0].mxu0 %v2465
  %v2603 = vpop.f32.mrb[0].mxu0
  %v2604 = vadd.f32 0.0, %v2603
  %v2605 = vpop.f32.mrb[0].mxu0
  %2606 = vmatprep.mubr.f32.mxu0 0.0
  %2607 = vmatmul.mubr.f32.gmra.mrb[0].mxu0 %v2466
  %v2608 = vpop.f32.mrb[0].mxu0
  %v2609 = vadd.f32 0.0, %v2608
  %v2610 = vpop.f32.mrb[0].mxu0
  %2611 = vmatprep.mubr.f32.mxu0 0.0
  %2612 = vmatmul.mubr.f32.gmra.mrb[0].mxu0 %v2467
  %v2613 = vpop.f32.mrb[0].mxu0
  %v2614 = vadd.f32 0.0, %v2613
  %v2615 = vpop.f32.mrb[0].mxu0
  %2616 = vmatprep.mubr.f32.mxu0 0.0
  %2617 = vmatmul.mubr.f32.gmra.mrb[0].mxu0 %v2468
  %v2618 = vpop.f32.mrb[0].mxu0
  %v2619 = vadd.f32 0.0, %v2618
  %v2620 = vpop.f32.mrb[0].mxu0
  %2621 = vmatprep.mubr.f32.mxu0 0.0
  %2622 = vmatmul.mubr.f32.gmra.mrb[0].mxu0 %v2469
  %v2623 = vpop.f32.mrb[0].mxu0
  %v2624 = vadd.f32 0.0, %v2623
  %v2625 = vpop.f32.mrb[0].mxu0
  %2626 = vmatprep.mubr.f32.mxu0 0.0
  %2627 = vmatmul.mubr.f32.gmra.mrb[0].mxu0 %v2470
  %v2628 = vpop.f32.mrb[0].mxu0
  %v2629 = vadd.f32 0.0, %v2628
  %v2630 = vpop.f32.mrb[0].mxu0
  %2631 = vdwg.mxu0
  %v2632 = vadd.f32 %v2439, %v2554
  %v2633 = vadd.f32 %v2440, %v2559
  %v2634 = vadd.f32 %v2441, %v2564
  %v2635 = vadd.f32 %v2442, %v2569
  %v2636 = vadd.f32 %v2443, %v2574
  %v2637 = vadd.f32 %v2444, %v2579
  %v2638 = vadd.f32 %v2445, %v2584
  %v2639 = vadd.f32 %v2446, %v2589
  %v2640 = vadd.f32 %v2447, %v2594
  %v2641 = vadd.f32 %v2448, %v2599
  %v2642 = vadd.f32 %v2449, %v2604
  %v2643 = vadd.f32 %v2450, %v2609
  %v2644 = vadd.f32 %v2451, %v2614
  %v2645 = vadd.f32 %v2452, %v2619
  %v2646 = vadd.f32 %v2453, %v2624
  %v2647 = vadd.f32 %v2454, %v2629
  %v2648 = vld [vmem:[%s1 + $0x148] sm:$0xff]
  %v2649 = vlaneseq
  %v2650 = vshrl.u32 %v2649, 7
  %v2651 = vsub.s32 0, %v2650
  %v2652 = vrot.slane %v2648, %v2651
  %v2653 = vadd.f32 %v2632, %v2652
  %v2654 = vadd.f32 %v2633, %v2652
  %v2655 = vadd.f32 %v2634, %v2652
  %v2656 = vadd.f32 %v2635, %v2652
  %v2657 = vadd.f32 %v2636, %v2652
  %v2658 = vadd.f32 %v2637, %v2652
  %v2659 = vadd.f32 %v2638, %v2652
  %v2660 = vadd.f32 %v2639, %v2652
  %v2661 = vadd.f32 %v2640, %v2652
  %v2662 = vadd.f32 %v2641, %v2652
  %v2663 = vadd.f32 %v2642, %v2652
  %v2664 = vadd.f32 %v2643, %v2652
  %v2665 = vadd.f32 %v2644, %v2652
  %v2666 = vadd.f32 %v2645, %v2652
  %v2667 = vadd.f32 %v2646, %v2652
  %v2668 = vadd.f32 %v2647, %v2652
  %v2669 = vmax.f32 %v2653, 0.0
  %v2670 = vmax.f32 %v2654, 0.0
  %v2671 = vmax.f32 %v2655, 0.0
  %v2672 = vmax.f32 %v2656, 0.0
  %v2673 = vmax.f32 %v2657, 0.0
  %v2674 = vmax.f32 %v2658, 0.0
  %v2675 = vmax.f32 %v2659, 0.0
  %v2676 = vmax.f32 %v2660, 0.0
  %v2677 = vmax.f32 %v2661, 0.0
  %v2678 = vmax.f32 %v2662, 0.0
  %v2679 = vmax.f32 %v2663, 0.0
  %v2680 = vmax.f32 %v2664, 0.0
  %v2681 = vmax.f32 %v2665, 0.0
  %v2682 = vmax.f32 %v2666, 0.0
  %v2683 = vmax.f32 %v2667, 0.0
  %v2684 = vmax.f32 %v2668, 0.0
  %v2685 = vadd.f32 %v2669, %v2670
  %v2686 = vadd.f32 %v2685, %v2671
  %v2687 = vadd.f32 %v2686, %v2672
  %v2688 = vadd.f32 %v2687, %v2673
  %v2689 = vadd.f32 %v2688, %v2674
  %v2690 = vadd.f32 %v2689, %v2675
  %v2691 = vadd.f32 %v2690, %v2676
  %v2692 = vrot.slane %v2691, 4
  %v2693 = vadd.f32 %v2691, %v2692
  %v2694 = vrot.slane %v2693, 2
  %v2695 = vadd.f32 %v2693, %v2694
  %v2696 = vrot.slane %v2695, 1
  %v2697 = vadd.f32 %v2695, %v2696
  %v2698 = vadd.f32 %v2677, %v2678
  %v2699 = vadd.f32 %v2698, %v2679
  %v2700 = vadd.f32 %v2699, %v2680
  %v2701 = vadd.f32 %v2700, %v2681
  %v2702 = vadd.f32 %v2701, %v2682
  %v2703 = vadd.f32 %v2702, %v2683
  %v2704 = vadd.f32 %v2703, %v2684
  %v2705 = vrot.slane %v2704, 4
  %v2706 = vadd.f32 %v2704, %v2705
  %v2707 = vrot.slane %v2706, 2
  %v2708 = vadd.f32 %v2706, %v2707
  %v2709 = vrot.slane %v2708, 1
  %v2710 = vadd.f32 %v2708, %v2709
  %v2711 = vmul.f32 %v2697, 0.015625
  %v2712 = vmul.f32 %v2710, 0.015625
  %v2713 = vld [vmem:[%s1 + $0x150] sm:$0xff]
  %v2714 = vld [vmem:[%s1 + $0x158] sm:$0xff]
  %v2715 = vld [vmem:[%s1 + $0x160] sm:$0xff]
  %v2716 = vlaneseq
  %v2717 = vshrl.u32 %v2716, 7
  %v2718 = vsub.s32 0, %v2717
  %v2719 = vrot.slane %v2715, %v2718
  %vm2722 = vcmask 1041409
  %v2723 = vsel %vm2722, %v2712, %v2711
  %vm2724 = vcmask 130048
  %v2725 = vsel %vm2724, %v2723, 0
  %2727 = vmatprep.subr.mxu0 0.0
  %2728 = vmatpush1.msra.mxu0 %v2713
  %2729 = vmatprep.subr.mxu0 0.0
  %2730 = vmatpush1.msra.mxu0 %v2714
  %2731 = vmatprep.subr.mxu0 0.0
  %2732 = vmatpush1.msra.mxu0 0.0
  %2733 = vmatprep.subr.mxu0 0.0
  %2734 = vmatpush1.msra.mxu0 0.0
  %2735 = vmatprep.subr.mxu0 0.0
  %2736 = vmatpush1.msra.mxu0 0.0
  %2737 = vmatprep.subr.mxu0 0.0
  %2738 = vmatpush1.msra.mxu0 0.0
  %2739 = vmatprep.subr.mxu0 0.0
  %2740 = vmatpush1.msra.mxu0 0.0
  %2741 = vmatprep.subr.mxu0 0.0
  %2742 = vmatpush1.msra.mxu0 0.0
  %2743 = vmatprep.subr.mxu0 0.0
  %2744 = vmatpush1.msra.mxu0 0.0
  %2745 = vmatprep.subr.mxu0 0.0
  %2746 = vmatpush1.msra.mxu0 0.0
  %2747 = vmatprep.subr.mxu0 0.0
  %2748 = vmatpush1.msra.mxu0 0.0
  %2749 = vmatprep.subr.mxu0 0.0
  %2750 = vmatpush1.msra.mxu0 0.0
  %2751 = vmatprep.subr.mxu0 0.0
  %2752 = vmatpush1.msra.mxu0 0.0
  %2753 = vmatprep.subr.mxu0 0.0
  %2754 = vmatpush1.msra.mxu0 0.0
  %2755 = vmatprep.subr.mxu0 0.0
  %2756 = vmatpush1.msra.mxu0 0.0
  %2757 = vmatprep.subr.mxu0 0.0
  %2758 = vmatpush1.msra.mxu0 0.0
  %2759 = vmatprep.subr.mxu0 0.0
  %2760 = vmatpush1.msra.mxu0 0.0
  %2761 = vmatprep.subr.mxu0 0.0
  %2762 = vmatpush1.msra.mxu0 0.0
  %2763 = vmatprep.subr.mxu0 0.0
  %2764 = vmatpush1.msra.mxu0 0.0
  %2765 = vmatprep.subr.mxu0 0.0
  %2766 = vmatpush1.msra.mxu0 0.0
  %2767 = vmatprep.subr.mxu0 0.0
  %2768 = vmatpush1.msra.mxu0 0.0
  %2769 = vmatprep.subr.mxu0 0.0
  %2770 = vmatpush1.msra.mxu0 0.0
  %2771 = vmatprep.subr.mxu0 0.0
  %2772 = vmatpush1.msra.mxu0 0.0
  %2773 = vmatprep.subr.mxu0 0.0
  %2774 = vmatpush1.msra.mxu0 0.0
  %2775 = vmatprep.subr.mxu0 0.0
  %2776 = vmatpush1.msra.mxu0 0.0
  %2777 = vmatprep.subr.mxu0 0.0
  %2778 = vmatpush1.msra.mxu0 0.0
  %2779 = vmatprep.subr.mxu0 0.0
  %2780 = vmatpush1.msra.mxu0 0.0
  %2781 = vmatprep.subr.mxu0 0.0
  %2782 = vmatpush1.msra.mxu0 0.0
  %2783 = vmatprep.subr.mxu0 0.0
  %2784 = vmatpush1.msra.mxu0 0.0
  %2785 = vmatprep.subr.mxu0 0.0
  %2786 = vmatpush1.msra.mxu0 0.0
  %2787 = vmatprep.subr.mxu0 0.0
  %2788 = vmatpush1.msra.mxu0 0.0
  %2789 = vmatprep.subr.mxu0 0.0
  %2790 = vmatpush1.msra.mxu0 0.0
  %2791 = vmatprep.mubr.f32.mxu0 0.0
  %2792 = vmatmul.mubr.f32.gmra.mrb[0].mxu0 %v2725
  %v2793 = vpop.f32.mrb[0].mxu0
  %v2794 = vadd.f32 %v2719, %v2793
  %v2795 = vpop.f32.mrb[0].mxu0
  %2796 = vdwg.mxu0
  %v2797 = vld [vmem:[%s2 + $0x40] sm:$0xff]
  %v2798 = vld [vmem:[%s1 + $0x168] sm:$0xff]
  %v2799 = vld [vmem:[%s1 + $0x170] sm:$0xff]
  %v2800 = vlaneseq
  %v2801 = vshrl.u32 %v2800, 7
  %v2802 = vsub.s32 0, %v2801
  %v2803 = vrot.slane %v2799, %v2802
  %vm2804 = vcmask 23552
  %v2806 = vsel %vm2804, %v2797, 0
  %vm2808 = vcmask 1042432
  %v2810 = vsel %vm2808, %v2798, 0
  %2812 = vmatprep.subr.mxu0 0.0
  %2813 = vmatpush1.msra.mxu0 %v2810
  %2814 = vmatprep.subr.mxu0 0.0
  %2815 = vmatpush1.msra.mxu0 0.0
  %2816 = vmatprep.subr.mxu0 0.0
  %2817 = vmatpush1.msra.mxu0 0.0
  %2818 = vmatprep.subr.mxu0 0.0
  %2819 = vmatpush1.msra.mxu0 0.0
  %2820 = vmatprep.subr.mxu0 0.0
  %2821 = vmatpush1.msra.mxu0 0.0
  %2822 = vmatprep.subr.mxu0 0.0
  %2823 = vmatpush1.msra.mxu0 0.0
  %2824 = vmatprep.subr.mxu0 0.0
  %2825 = vmatpush1.msra.mxu0 0.0
  %2826 = vmatprep.subr.mxu0 0.0
  %2827 = vmatpush1.msra.mxu0 0.0
  %2828 = vmatprep.subr.mxu0 0.0
  %2829 = vmatpush1.msra.mxu0 0.0
  %2830 = vmatprep.subr.mxu0 0.0
  %2831 = vmatpush1.msra.mxu0 0.0
  %2832 = vmatprep.subr.mxu0 0.0
  %2833 = vmatpush1.msra.mxu0 0.0
  %2834 = vmatprep.subr.mxu0 0.0
  %2835 = vmatpush1.msra.mxu0 0.0
  %2836 = vmatprep.subr.mxu0 0.0
  %2837 = vmatpush1.msra.mxu0 0.0
  %2838 = vmatprep.subr.mxu0 0.0
  %2839 = vmatpush1.msra.mxu0 0.0
  %2840 = vmatprep.subr.mxu0 0.0
  %2841 = vmatpush1.msra.mxu0 0.0
  %2842 = vmatprep.subr.mxu0 0.0
  %2843 = vmatpush1.msra.mxu0 0.0
  %2844 = vmatprep.subr.mxu0 0.0
  %2845 = vmatpush1.msra.mxu0 0.0
  %2846 = vmatprep.subr.mxu0 0.0
  %2847 = vmatpush1.msra.mxu0 0.0
  %2848 = vmatprep.subr.mxu0 0.0
  %2849 = vmatpush1.msra.mxu0 0.0
  %2850 = vmatprep.subr.mxu0 0.0
  %2851 = vmatpush1.msra.mxu0 0.0
  %2852 = vmatprep.subr.mxu0 0.0
  %2853 = vmatpush1.msra.mxu0 0.0
  %2854 = vmatprep.subr.mxu0 0.0
  %2855 = vmatpush1.msra.mxu0 0.0
  %2856 = vmatprep.subr.mxu0 0.0
  %2857 = vmatpush1.msra.mxu0 0.0
  %2858 = vmatprep.subr.mxu0 0.0
  %2859 = vmatpush1.msra.mxu0 0.0
  %2860 = vmatprep.subr.mxu0 0.0
  %2861 = vmatpush1.msra.mxu0 0.0
  %2862 = vmatprep.subr.mxu0 0.0
  %2863 = vmatpush1.msra.mxu0 0.0
  %2864 = vmatprep.subr.mxu0 0.0
  %2865 = vmatpush1.msra.mxu0 0.0
  %2866 = vmatprep.subr.mxu0 0.0
  %2867 = vmatpush1.msra.mxu0 0.0
  %2868 = vmatprep.subr.mxu0 0.0
  %2869 = vmatpush1.msra.mxu0 0.0
  %2870 = vmatprep.subr.mxu0 0.0
  %2871 = vmatpush1.msra.mxu0 0.0
  %2872 = vmatprep.subr.mxu0 0.0
  %2873 = vmatpush1.msra.mxu0 0.0
  %2874 = vmatprep.subr.mxu0 0.0
  %2875 = vmatpush1.msra.mxu0 0.0
  %2876 = vmatprep.mubr.f32.mxu0 0.0
  %2877 = vmatmul.mubr.f32.gmra.mrb[0].mxu0 %v2806
  %v2878 = vpop.f32.mrb[0].mxu0
  %v2879 = vadd.f32 %v2803, %v2878
  %v2880 = vpop.f32.mrb[0].mxu0
  %2881 = vdwg.mxu0
  %v2882 = vmax.f32 %v2879, 0.0
  %v2883 = vld [vmem:[%s1 + $0x178] sm:$0xff]
  %v2884 = vld [vmem:[%s1 + $0x180] sm:$0xff]
  %v2885 = vld [vmem:[%s1 + $0x188] sm:$0xff]
  %v2886 = vlaneseq
  %v2887 = vshrl.u32 %v2886, 7
  %v2888 = vsub.s32 0, %v2887
  %v2889 = vrot.slane %v2885, %v2888
  %v2891 = vsel %vm2724, %v2882, 0
  %2893 = vmatprep.subr.mxu0 0.0
  %2894 = vmatpush1.msra.mxu0 %v2883
  %2895 = vmatprep.subr.mxu0 0.0
  %2896 = vmatpush1.msra.mxu0 %v2884
  %2897 = vmatprep.subr.mxu0 0.0
  %2898 = vmatpush1.msra.mxu0 0.0
  %2899 = vmatprep.subr.mxu0 0.0
  %2900 = vmatpush1.msra.mxu0 0.0
  %2901 = vmatprep.subr.mxu0 0.0
  %2902 = vmatpush1.msra.mxu0 0.0
  %2903 = vmatprep.subr.mxu0 0.0
  %2904 = vmatpush1.msra.mxu0 0.0
  %2905 = vmatprep.subr.mxu0 0.0
  %2906 = vmatpush1.msra.mxu0 0.0
  %2907 = vmatprep.subr.mxu0 0.0
  %2908 = vmatpush1.msra.mxu0 0.0
  %2909 = vmatprep.subr.mxu0 0.0
  %2910 = vmatpush1.msra.mxu0 0.0
  %2911 = vmatprep.subr.mxu0 0.0
  %2912 = vmatpush1.msra.mxu0 0.0
  %2913 = vmatprep.subr.mxu0 0.0
  %2914 = vmatpush1.msra.mxu0 0.0
  %2915 = vmatprep.subr.mxu0 0.0
  %2916 = vmatpush1.msra.mxu0 0.0
  %2917 = vmatprep.subr.mxu0 0.0
  %2918 = vmatpush1.msra.mxu0 0.0
  %2919 = vmatprep.subr.mxu0 0.0
  %2920 = vmatpush1.msra.mxu0 0.0
  %2921 = vmatprep.subr.mxu0 0.0
  %2922 = vmatpush1.msra.mxu0 0.0
  %2923 = vmatprep.subr.mxu0 0.0
  %2924 = vmatpush1.msra.mxu0 0.0
  %2925 = vmatprep.subr.mxu0 0.0
  %2926 = vmatpush1.msra.mxu0 0.0
  %2927 = vmatprep.subr.mxu0 0.0
  %2928 = vmatpush1.msra.mxu0 0.0
  %2929 = vmatprep.subr.mxu0 0.0
  %2930 = vmatpush1.msra.mxu0 0.0
  %2931 = vmatprep.subr.mxu0 0.0
  %2932 = vmatpush1.msra.mxu0 0.0
  %2933 = vmatprep.subr.mxu0 0.0
  %2934 = vmatpush1.msra.mxu0 0.0
  %2935 = vmatprep.subr.mxu0 0.0
  %2936 = vmatpush1.msra.mxu0 0.0
  %2937 = vmatprep.subr.mxu0 0.0
  %2938 = vmatpush1.msra.mxu0 0.0
  %2939 = vmatprep.subr.mxu0 0.0
  %2940 = vmatpush1.msra.mxu0 0.0
  %2941 = vmatprep.subr.mxu0 0.0
  %2942 = vmatpush1.msra.mxu0 0.0
  %2943 = vmatprep.subr.mxu0 0.0
  %2944 = vmatpush1.msra.mxu0 0.0
  %2945 = vmatprep.subr.mxu0 0.0
  %2946 = vmatpush1.msra.mxu0 0.0
  %2947 = vmatprep.subr.mxu0 0.0
  %2948 = vmatpush1.msra.mxu0 0.0
  %2949 = vmatprep.subr.mxu0 0.0
  %2950 = vmatpush1.msra.mxu0 0.0
  %2951 = vmatprep.subr.mxu0 0.0
  %2952 = vmatpush1.msra.mxu0 0.0
  %2953 = vmatprep.subr.mxu0 0.0
  %2954 = vmatpush1.msra.mxu0 0.0
  %2955 = vmatprep.subr.mxu0 0.0
  %2956 = vmatpush1.msra.mxu0 0.0
  %2957 = vmatprep.mubr.f32.mxu0 0.0
  %2958 = vmatmul.mubr.f32.gmra.mrb[0].mxu0 %v2891
  %v2959 = vpop.f32.mrb[0].mxu0
  %v2960 = vadd.f32 %v2889, %v2959
  %v2961 = vpop.f32.mrb[0].mxu0
  %2962 = vdwg.mxu0
  %v2963 = vmax.f32 %v2960, 0.0
  %v2964 = vld [vmem:[%s1 + $0x190] sm:$0xff]
  %v2965 = vld [vmem:[%s1 + $0x198] sm:$0xff]
  %v2966 = vld [vmem:[%s1 + $0x1a0] sm:$0xff]
  %v2967 = vld [vmem:[%s1 + $0x1a8] sm:$0xff]
  %v2968 = vld [vmem:[%s1 + $0x1b0] sm:$0xff]
  %vm2969 = vcmask 64512
  %v2971 = vsel %vm2969, %v2963, 0
  %2973 = vmatprep.subr.mxu0 0.0
  %2974 = vmatpush1.msra.mxu0 %v2968
  %2975 = vmatprep.subr.mxu0 0.0
  %2976 = vmatpush1.msra.mxu0 0.0
  %2977 = vmatprep.subr.mxu0 0.0
  %2978 = vmatpush1.msra.mxu0 0.0
  %2979 = vmatprep.subr.mxu0 0.0
  %2980 = vmatpush1.msra.mxu0 0.0
  %2981 = vmatprep.subr.mxu0 0.0
  %2982 = vmatpush1.msra.mxu0 0.0
  %2983 = vmatprep.subr.mxu0 0.0
  %2984 = vmatpush1.msra.mxu0 0.0
  %2985 = vmatprep.subr.mxu0 0.0
  %2986 = vmatpush1.msra.mxu0 0.0
  %2987 = vmatprep.subr.mxu0 0.0
  %2988 = vmatpush1.msra.mxu0 0.0
  %2989 = vmatprep.subr.mxu0 0.0
  %2990 = vmatpush1.msra.mxu0 0.0
  %2991 = vmatprep.subr.mxu0 0.0
  %2992 = vmatpush1.msra.mxu0 0.0
  %2993 = vmatprep.subr.mxu0 0.0
  %2994 = vmatpush1.msra.mxu0 0.0
  %2995 = vmatprep.subr.mxu0 0.0
  %2996 = vmatpush1.msra.mxu0 0.0
  %2997 = vmatprep.subr.mxu0 0.0
  %2998 = vmatpush1.msra.mxu0 0.0
  %2999 = vmatprep.subr.mxu0 0.0
  %3000 = vmatpush1.msra.mxu0 0.0
  %3001 = vmatprep.subr.mxu0 0.0
  %3002 = vmatpush1.msra.mxu0 0.0
  %3003 = vmatprep.subr.mxu0 0.0
  %3004 = vmatpush1.msra.mxu0 0.0
  %3005 = vmatprep.subr.mxu0 0.0
  %3006 = vmatpush1.msra.mxu0 0.0
  %3007 = vmatprep.subr.mxu0 0.0
  %3008 = vmatpush1.msra.mxu0 0.0
  %3009 = vmatprep.subr.mxu0 0.0
  %3010 = vmatpush1.msra.mxu0 0.0
  %3011 = vmatprep.subr.mxu0 0.0
  %3012 = vmatpush1.msra.mxu0 0.0
  %3013 = vmatprep.subr.mxu0 0.0
  %3014 = vmatpush1.msra.mxu0 0.0
  %3015 = vmatprep.subr.mxu0 0.0
  %3016 = vmatpush1.msra.mxu0 0.0
  %3017 = vmatprep.subr.mxu0 0.0
  %3018 = vmatpush1.msra.mxu0 0.0
  %3019 = vmatprep.subr.mxu0 0.0
  %3020 = vmatpush1.msra.mxu0 0.0
  %3021 = vmatprep.subr.mxu0 0.0
  %3022 = vmatpush1.msra.mxu0 0.0
  %3023 = vmatprep.subr.mxu0 0.0
  %3024 = vmatpush1.msra.mxu0 0.0
  %3025 = vmatprep.subr.mxu0 0.0
  %3026 = vmatpush1.msra.mxu0 0.0
  %3027 = vmatprep.subr.mxu0 0.0
  %3028 = vmatpush1.msra.mxu0 0.0
  %3029 = vmatprep.subr.mxu0 0.0
  %3030 = vmatpush1.msra.mxu0 0.0
  %3031 = vmatprep.subr.mxu0 0.0
  %3032 = vmatpush1.msra.mxu0 0.0
  %3033 = vmatprep.subr.mxu0 0.0
  %3034 = vmatpush1.msra.mxu0 0.0
  %3035 = vmatprep.subr.mxu0 0.0
  %3036 = vmatpush1.msra.mxu0 0.0
  %3037 = vmatprep.mubr.f32.mxu0 0.0
  %3038 = vmatmul.mubr.f32.gmra.mrb[0].mxu0 %v2971
  %v3039 = vpop.f32.mrb[0].mxu0
  %v3040 = vadd.f32 0.0, %v3039
  %v3041 = vpop.f32.mrb[0].mxu0
  %3042 = vdwg.mxu0
  %vm3043 = vcmask 261120
  %v3045 = vsel %vm3043, %v2794, 0
  %3047 = vmatprep.subr.mxu0 0.0
  %3048 = vmatpush1.msra.mxu0 %v2964
  %3049 = vmatprep.subr.mxu0 0.0
  %3050 = vmatpush1.msra.mxu0 %v2965
  %3051 = vmatprep.subr.mxu0 0.0
  %3052 = vmatpush1.msra.mxu0 %v2966
  %3053 = vmatprep.subr.mxu0 0.0
  %3054 = vmatpush1.msra.mxu0 %v2967
  %3055 = vmatprep.subr.mxu0 0.0
  %3056 = vmatpush1.msra.mxu0 0.0
  %3057 = vmatprep.subr.mxu0 0.0
  %3058 = vmatpush1.msra.mxu0 0.0
  %3059 = vmatprep.subr.mxu0 0.0
  %3060 = vmatpush1.msra.mxu0 0.0
  %3061 = vmatprep.subr.mxu0 0.0
  %3062 = vmatpush1.msra.mxu0 0.0
  %3063 = vmatprep.subr.mxu0 0.0
  %3064 = vmatpush1.msra.mxu0 0.0
  %3065 = vmatprep.subr.mxu0 0.0
  %3066 = vmatpush1.msra.mxu0 0.0
  %3067 = vmatprep.subr.mxu0 0.0
  %3068 = vmatpush1.msra.mxu0 0.0
  %3069 = vmatprep.subr.mxu0 0.0
  %3070 = vmatpush1.msra.mxu0 0.0
  %3071 = vmatprep.subr.mxu0 0.0
  %3072 = vmatpush1.msra.mxu0 0.0
  %3073 = vmatprep.subr.mxu0 0.0
  %3074 = vmatpush1.msra.mxu0 0.0
  %3075 = vmatprep.subr.mxu0 0.0
  %3076 = vmatpush1.msra.mxu0 0.0
  %3077 = vmatprep.subr.mxu0 0.0
  %3078 = vmatpush1.msra.mxu0 0.0
  %3079 = vmatprep.subr.mxu0 0.0
  %3080 = vmatpush1.msra.mxu0 0.0
  %3081 = vmatprep.subr.mxu0 0.0
  %3082 = vmatpush1.msra.mxu0 0.0
  %3083 = vmatprep.subr.mxu0 0.0
  %3084 = vmatpush1.msra.mxu0 0.0
  %3085 = vmatprep.subr.mxu0 0.0
  %3086 = vmatpush1.msra.mxu0 0.0
  %3087 = vmatprep.subr.mxu0 0.0
  %3088 = vmatpush1.msra.mxu0 0.0
  %3089 = vmatprep.subr.mxu0 0.0
  %3090 = vmatpush1.msra.mxu0 0.0
  %3091 = vmatprep.subr.mxu0 0.0
  %3092 = vmatpush1.msra.mxu0 0.0
  %3093 = vmatprep.subr.mxu0 0.0
  %3094 = vmatpush1.msra.mxu0 0.0
  %3095 = vmatprep.subr.mxu0 0.0
  %3096 = vmatpush1.msra.mxu0 0.0
  %3097 = vmatprep.subr.mxu0 0.0
  %3098 = vmatpush1.msra.mxu0 0.0
  %3099 = vmatprep.subr.mxu0 0.0
  %3100 = vmatpush1.msra.mxu0 0.0
  %3101 = vmatprep.subr.mxu0 0.0
  %3102 = vmatpush1.msra.mxu0 0.0
  %3103 = vmatprep.subr.mxu0 0.0
  %3104 = vmatpush1.msra.mxu0 0.0
  %3105 = vmatprep.subr.mxu0 0.0
  %3106 = vmatpush1.msra.mxu0 0.0
  %3107 = vmatprep.subr.mxu0 0.0
  %3108 = vmatpush1.msra.mxu0 0.0
  %3109 = vmatprep.subr.mxu0 0.0
  %3110 = vmatpush1.msra.mxu0 0.0
  %3111 = vmatprep.mubr.f32.mxu0 0.0
  %3112 = vmatmul.mubr.f32.gmra.mrb[0].mxu0 %v3045
  %v3113 = vpop.f32.mrb[0].mxu0
  %v3114 = vadd.f32 %v3040, %v3113
  %v3115 = vpop.f32.mrb[0].mxu0
  %3116 = vdwg.mxu0
  %v3117 = vld [vmem:[%s1 + $0x1b8] sm:$0xff]
  %v3118 = vlaneseq
  %v3119 = vshrl.u32 %v3118, 7
  %v3120 = vsub.s32 0, %v3119
  %v3121 = vrot.slane %v3117, %v3120
  %v3122 = vadd.f32 %v3114, %v3121
  %v3123 = vmax.f32 %v3122, 0.0
  %v3124 = vld [vmem:[%s1 + $0x1c0] sm:$0xff]
  %v3125 = vld [vmem:[%s1 + $0x1c8] sm:$0xff]
  %v3126 = vld [vmem:[%s1 + $0x1d0] sm:$0xff]
  %v3127 = vld [vmem:[%s1 + $0x1d8] sm:$0xff]
  %v3128 = vld [vmem:[%s1 + $0x1e0] sm:$0xff]
  %v3129 = vlaneseq
  %v3130 = vshrl.u32 %v3129, 7
  %v3131 = vsub.s32 0, %v3130
  %v3132 = vrot.slane %v3128, %v3131
  %v3134 = vsel %vm3043, %v3123, 0
  %3136 = vmatprep.subr.mxu0 0.0
  %3137 = vmatpush1.msra.mxu0 %v3124
  %3138 = vmatprep.subr.mxu0 0.0
  %3139 = vmatpush1.msra.mxu0 %v3125
  %3140 = vmatprep.subr.mxu0 0.0
  %3141 = vmatpush1.msra.mxu0 %v3126
  %3142 = vmatprep.subr.mxu0 0.0
  %3143 = vmatpush1.msra.mxu0 %v3127
  %3144 = vmatprep.subr.mxu0 0.0
  %3145 = vmatpush1.msra.mxu0 0.0
  %3146 = vmatprep.subr.mxu0 0.0
  %3147 = vmatpush1.msra.mxu0 0.0
  %3148 = vmatprep.subr.mxu0 0.0
  %3149 = vmatpush1.msra.mxu0 0.0
  %3150 = vmatprep.subr.mxu0 0.0
  %3151 = vmatpush1.msra.mxu0 0.0
  %3152 = vmatprep.subr.mxu0 0.0
  %3153 = vmatpush1.msra.mxu0 0.0
  %3154 = vmatprep.subr.mxu0 0.0
  %3155 = vmatpush1.msra.mxu0 0.0
  %3156 = vmatprep.subr.mxu0 0.0
  %3157 = vmatpush1.msra.mxu0 0.0
  %3158 = vmatprep.subr.mxu0 0.0
  %3159 = vmatpush1.msra.mxu0 0.0
  %3160 = vmatprep.subr.mxu0 0.0
  %3161 = vmatpush1.msra.mxu0 0.0
  %3162 = vmatprep.subr.mxu0 0.0
  %3163 = vmatpush1.msra.mxu0 0.0
  %3164 = vmatprep.subr.mxu0 0.0
  %3165 = vmatpush1.msra.mxu0 0.0
  %3166 = vmatprep.subr.mxu0 0.0
  %3167 = vmatpush1.msra.mxu0 0.0
  %3168 = vmatprep.subr.mxu0 0.0
  %3169 = vmatpush1.msra.mxu0 0.0
  %3170 = vmatprep.subr.mxu0 0.0
  %3171 = vmatpush1.msra.mxu0 0.0
  %3172 = vmatprep.subr.mxu0 0.0
  %3173 = vmatpush1.msra.mxu0 0.0
  %3174 = vmatprep.subr.mxu0 0.0
  %3175 = vmatpush1.msra.mxu0 0.0
  %3176 = vmatprep.subr.mxu0 0.0
  %3177 = vmatpush1.msra.mxu0 0.0
  %3178 = vmatprep.subr.mxu0 0.0
  %3179 = vmatpush1.msra.mxu0 0.0
  %3180 = vmatprep.subr.mxu0 0.0
  %3181 = vmatpush1.msra.mxu0 0.0
  %3182 = vmatprep.subr.mxu0 0.0
  %3183 = vmatpush1.msra.mxu0 0.0
  %3184 = vmatprep.subr.mxu0 0.0
  %3185 = vmatpush1.msra.mxu0 0.0
  %3186 = vmatprep.subr.mxu0 0.0
  %3187 = vmatpush1.msra.mxu0 0.0
  %3188 = vmatprep.subr.mxu0 0.0
  %3189 = vmatpush1.msra.mxu0 0.0
  %3190 = vmatprep.subr.mxu0 0.0
  %3191 = vmatpush1.msra.mxu0 0.0
  %3192 = vmatprep.subr.mxu0 0.0
  %3193 = vmatpush1.msra.mxu0 0.0
  %3194 = vmatprep.subr.mxu0 0.0
  %3195 = vmatpush1.msra.mxu0 0.0
  %3196 = vmatprep.subr.mxu0 0.0
  %3197 = vmatpush1.msra.mxu0 0.0
  %3198 = vmatprep.subr.mxu0 0.0
  %3199 = vmatpush1.msra.mxu0 0.0
  %3200 = vmatprep.mubr.f32.mxu0 0.0
  %3201 = vmatmul.mubr.f32.gmra.mrb[0].mxu0 %v3134
  %v3202 = vpop.f32.mrb[0].mxu0
  %v3203 = vadd.f32 %v3132, %v3202
  %v3204 = vpop.f32.mrb[0].mxu0
  %3205 = vdwg.mxu0
  %v3206 = vmax.f32 %v3203, 0.0
  %v3207 = vld [vmem:[%s1 + $0x1e8] sm:$0xff]
  %v3208 = vld [vmem:[%s1 + $0x1f0] sm:$0xff]
  %v3209 = vld [vmem:[%s1 + $0x1f8] sm:$0xff]
  %v3210 = vld [vmem:[%s1 + $0x200] sm:$0xff]
  %v3211 = vld [vmem:[%s1 + $0x208] sm:$0xff]
  %v3212 = vlaneseq
  %v3213 = vshrl.u32 %v3212, 7
  %v3214 = vsub.s32 0, %v3213
  %v3215 = vrot.slane %v3211, %v3214
  %v3217 = vsel %vm3043, %v3206, 0
  %3219 = vmatprep.subr.mxu0 0.0
  %3220 = vmatpush1.msra.mxu0 %v3207
  %3221 = vmatprep.subr.mxu0 0.0
  %3222 = vmatpush1.msra.mxu0 %v3208
  %3223 = vmatprep.subr.mxu0 0.0
  %3224 = vmatpush1.msra.mxu0 %v3209
  %3225 = vmatprep.subr.mxu0 0.0
  %3226 = vmatpush1.msra.mxu0 %v3210
  %3227 = vmatprep.subr.mxu0 0.0
  %3228 = vmatpush1.msra.mxu0 0.0
  %3229 = vmatprep.subr.mxu0 0.0
  %3230 = vmatpush1.msra.mxu0 0.0
  %3231 = vmatprep.subr.mxu0 0.0
  %3232 = vmatpush1.msra.mxu0 0.0
  %3233 = vmatprep.subr.mxu0 0.0
  %3234 = vmatpush1.msra.mxu0 0.0
  %3235 = vmatprep.subr.mxu0 0.0
  %3236 = vmatpush1.msra.mxu0 0.0
  %3237 = vmatprep.subr.mxu0 0.0
  %3238 = vmatpush1.msra.mxu0 0.0
  %3239 = vmatprep.subr.mxu0 0.0
  %3240 = vmatpush1.msra.mxu0 0.0
  %3241 = vmatprep.subr.mxu0 0.0
  %3242 = vmatpush1.msra.mxu0 0.0
  %3243 = vmatprep.subr.mxu0 0.0
  %3244 = vmatpush1.msra.mxu0 0.0
  %3245 = vmatprep.subr.mxu0 0.0
  %3246 = vmatpush1.msra.mxu0 0.0
  %3247 = vmatprep.subr.mxu0 0.0
  %3248 = vmatpush1.msra.mxu0 0.0
  %3249 = vmatprep.subr.mxu0 0.0
  %3250 = vmatpush1.msra.mxu0 0.0
  %3251 = vmatprep.subr.mxu0 0.0
  %3252 = vmatpush1.msra.mxu0 0.0
  %3253 = vmatprep.subr.mxu0 0.0
  %3254 = vmatpush1.msra.mxu0 0.0
  %3255 = vmatprep.subr.mxu0 0.0
  %3256 = vmatpush1.msra.mxu0 0.0
  %3257 = vmatprep.subr.mxu0 0.0
  %3258 = vmatpush1.msra.mxu0 0.0
  %3259 = vmatprep.subr.mxu0 0.0
  %3260 = vmatpush1.msra.mxu0 0.0
  %3261 = vmatprep.subr.mxu0 0.0
  %3262 = vmatpush1.msra.mxu0 0.0
  %3263 = vmatprep.subr.mxu0 0.0
  %3264 = vmatpush1.msra.mxu0 0.0
  %3265 = vmatprep.subr.mxu0 0.0
  %3266 = vmatpush1.msra.mxu0 0.0
  %3267 = vmatprep.subr.mxu0 0.0
  %3268 = vmatpush1.msra.mxu0 0.0
  %3269 = vmatprep.subr.mxu0 0.0
  %3270 = vmatpush1.msra.mxu0 0.0
  %3271 = vmatprep.subr.mxu0 0.0
  %3272 = vmatpush1.msra.mxu0 0.0
  %3273 = vmatprep.subr.mxu0 0.0
  %3274 = vmatpush1.msra.mxu0 0.0
  %3275 = vmatprep.subr.mxu0 0.0
  %3276 = vmatpush1.msra.mxu0 0.0
  %3277 = vmatprep.subr.mxu0 0.0
  %3278 = vmatpush1.msra.mxu0 0.0
  %3279 = vmatprep.subr.mxu0 0.0
  %3280 = vmatpush1.msra.mxu0 0.0
  %3281 = vmatprep.subr.mxu0 0.0
  %3282 = vmatpush1.msra.mxu0 0.0
  %3283 = vmatprep.mubr.f32.mxu0 0.0
  %3284 = vmatmul.mubr.f32.gmra.mrb[0].mxu0 %v3217
  %v3285 = vpop.f32.mrb[0].mxu0
  %v3286 = vadd.f32 %v3215, %v3285
  %v3287 = vpop.f32.mrb[0].mxu0
  %3288 = vdwg.mxu0
  %v3289 = vld [vmem:[%s2] sm:$0xff]
  %v3290 = vld [vmem:[%s2 + $0x8] sm:$0xff]
  %v3291 = vld [vmem:[%s2 + $0x10] sm:$0xff]
  %v3292 = vld [vmem:[%s2 + $0x18] sm:$0xff]
  %v3293 = vld [vmem:[%s2 + $0x20] sm:$0xff]
  %v3294 = vld [vmem:[%s2 + $0x28] sm:$0xff]
  %v3295 = vld [vmem:[%s2 + $0x30] sm:$0xff]
  %v3296 = vld [vmem:[%s2 + $0x38] sm:$0xff]
  %v3297 = vld [vmem:[%s1 + $0x210] sm:$0xff]
  %v3298 = vld [vmem:[%s1 + $0x218] sm:$0xff]
  %v3299 = vlaneseq
  %v3300 = vshrl.u32 %v3299, 7
  %v3301 = vsub.s32 0, %v3300
  %v3302 = vrot.slane %v3298, %v3301
  %v3304 = vsel %vm2804, %v3289, 0
  %v3307 = vsel %vm2804, %v3290, 0
  %v3310 = vsel %vm2804, %v3291, 0
  %v3313 = vsel %vm2804, %v3292, 0
  %v3316 = vsel %vm2804, %v3293, 0
  %v3319 = vsel %vm2804, %v3294, 0
  %v3322 = vsel %vm2804, %v3295, 0
  %v3325 = vsel %vm2804, %v3296, 0
  %v3328 = vsel %vm2808, %v3297, 0
  %3330 = vmatprep.subr.mxu0 0.0
  %3331 = vmatpush1.msra.mxu0 %v3328
  %3332 = vmatprep.subr.mxu0 0.0
  %3333 = vmatpush1.msra.mxu0 0.0
  %3334 = vmatprep.subr.mxu0 0.0
  %3335 = vmatpush1.msra.mxu0 0.0
  %3336 = vmatprep.subr.mxu0 0.0
  %3337 = vmatpush1.msra.mxu0 0.0
  %3338 = vmatprep.subr.mxu0 0.0
  %3339 = vmatpush1.msra.mxu0 0.0
  %3340 = vmatprep.subr.mxu0 0.0
  %3341 = vmatpush1.msra.mxu0 0.0
  %3342 = vmatprep.subr.mxu0 0.0
  %3343 = vmatpush1.msra.mxu0 0.0
  %3344 = vmatprep.subr.mxu0 0.0
  %3345 = vmatpush1.msra.mxu0 0.0
  %3346 = vmatprep.subr.mxu0 0.0
  %3347 = vmatpush1.msra.mxu0 0.0
  %3348 = vmatprep.subr.mxu0 0.0
  %3349 = vmatpush1.msra.mxu0 0.0
  %3350 = vmatprep.subr.mxu0 0.0
  %3351 = vmatpush1.msra.mxu0 0.0
  %3352 = vmatprep.subr.mxu0 0.0
  %3353 = vmatpush1.msra.mxu0 0.0
  %3354 = vmatprep.subr.mxu0 0.0
  %3355 = vmatpush1.msra.mxu0 0.0
  %3356 = vmatprep.subr.mxu0 0.0
  %3357 = vmatpush1.msra.mxu0 0.0
  %3358 = vmatprep.subr.mxu0 0.0
  %3359 = vmatpush1.msra.mxu0 0.0
  %3360 = vmatprep.subr.mxu0 0.0
  %3361 = vmatpush1.msra.mxu0 0.0
  %3362 = vmatprep.subr.mxu0 0.0
  %3363 = vmatpush1.msra.mxu0 0.0
  %3364 = vmatprep.subr.mxu0 0.0
  %3365 = vmatpush1.msra.mxu0 0.0
  %3366 = vmatprep.subr.mxu0 0.0
  %3367 = vmatpush1.msra.mxu0 0.0
  %3368 = vmatprep.subr.mxu0 0.0
  %3369 = vmatpush1.msra.mxu0 0.0
  %3370 = vmatprep.subr.mxu0 0.0
  %3371 = vmatpush1.msra.mxu0 0.0
  %3372 = vmatprep.subr.mxu0 0.0
  %3373 = vmatpush1.msra.mxu0 0.0
  %3374 = vmatprep.subr.mxu0 0.0
  %3375 = vmatpush1.msra.mxu0 0.0
  %3376 = vmatprep.subr.mxu0 0.0
  %3377 = vmatpush1.msra.mxu0 0.0
  %3378 = vmatprep.subr.mxu0 0.0
  %3379 = vmatpush1.msra.mxu0 0.0
  %3380 = vmatprep.subr.mxu0 0.0
  %3381 = vmatpush1.msra.mxu0 0.0
  %3382 = vmatprep.subr.mxu0 0.0
  %3383 = vmatpush1.msra.mxu0 0.0
  %3384 = vmatprep.subr.mxu0 0.0
  %3385 = vmatpush1.msra.mxu0 0.0
  %3386 = vmatprep.subr.mxu0 0.0
  %3387 = vmatpush1.msra.mxu0 0.0
  %3388 = vmatprep.subr.mxu0 0.0
  %3389 = vmatpush1.msra.mxu0 0.0
  %3390 = vmatprep.subr.mxu0 0.0
  %3391 = vmatpush1.msra.mxu0 0.0
  %3392 = vmatprep.subr.mxu0 0.0
  %3393 = vmatpush1.msra.mxu0 0.0
  %3394 = vmatprep.mubr.f32.mxu0 0.0
  %3395 = vmatmul.mubr.f32.gmra.mrb[0].mxu0 %v3304
  %v3396 = vpop.f32.mrb[0].mxu0
  %v3397 = vadd.f32 %v3302, %v3396
  %v3398 = vpop.f32.mrb[0].mxu0
  %3399 = vmatprep.mubr.f32.mxu0 0.0
  %3400 = vmatmul.mubr.f32.gmra.mrb[0].mxu0 %v3307
  %v3401 = vpop.f32.mrb[0].mxu0
  %v3402 = vadd.f32 %v3302, %v3401
  %v3403 = vpop.f32.mrb[0].mxu0
  %3404 = vmatprep.mubr.f32.mxu0 0.0
  %3405 = vmatmul.mubr.f32.gmra.mrb[0].mxu0 %v3310
  %v3406 = vpop.f32.mrb[0].mxu0
  %v3407 = vadd.f32 %v3302, %v3406
  %v3408 = vpop.f32.mrb[0].mxu0
  %3409 = vmatprep.mubr.f32.mxu0 0.0
  %3410 = vmatmul.mubr.f32.gmra.mrb[0].mxu0 %v3313
  %v3411 = vpop.f32.mrb[0].mxu0
  %v3412 = vadd.f32 %v3302, %v3411
  %v3413 = vpop.f32.mrb[0].mxu0
  %3414 = vmatprep.mubr.f32.mxu0 0.0
  %3415 = vmatmul.mubr.f32.gmra.mrb[0].mxu0 %v3316
  %v3416 = vpop.f32.mrb[0].mxu0
  %v3417 = vadd.f32 %v3302, %v3416
  %v3418 = vpop.f32.mrb[0].mxu0
  %3419 = vmatprep.mubr.f32.mxu0 0.0
  %3420 = vmatmul.mubr.f32.gmra.mrb[0].mxu0 %v3319
  %v3421 = vpop.f32.mrb[0].mxu0
  %v3422 = vadd.f32 %v3302, %v3421
  %v3423 = vpop.f32.mrb[0].mxu0
  %3424 = vmatprep.mubr.f32.mxu0 0.0
  %3425 = vmatmul.mubr.f32.gmra.mrb[0].mxu0 %v3322
  %v3426 = vpop.f32.mrb[0].mxu0
  %v3427 = vadd.f32 %v3302, %v3426
  %v3428 = vpop.f32.mrb[0].mxu0
  %3429 = vmatprep.mubr.f32.mxu0 0.0
  %3430 = vmatmul.mubr.f32.gmra.mrb[0].mxu0 %v3325
  %v3431 = vpop.f32.mrb[0].mxu0
  %v3432 = vadd.f32 %v3302, %v3431
  %v3433 = vpop.f32.mrb[0].mxu0
  %3434 = vdwg.mxu0
  %v3435 = vld [vmem:[%s1 + $0x220] sm:$0xff]
  %v3436 = vld [vmem:[%s1 + $0x228] sm:$0xff]
  %v3437 = vld [vmem:[%s1 + $0x230] sm:$0xff]
  %v3439 = vsel %vm2724, 0.0, 0
  %3441 = vmatprep.subr.mxu0 0.0
  %3442 = vmatpush1.msra.mxu0 %v3435
  %3443 = vmatprep.subr.mxu0 0.0
  %3444 = vmatpush1.msra.mxu0 %v3436
  %3445 = vmatprep.subr.mxu0 0.0
  %3446 = vmatpush1.msra.mxu0 0.0
  %3447 = vmatprep.subr.mxu0 0.0
  %3448 = vmatpush1.msra.mxu0 0.0
  %3449 = vmatprep.subr.mxu0 0.0
  %3450 = vmatpush1.msra.mxu0 0.0
  %3451 = vmatprep.subr.mxu0 0.0
  %3452 = vmatpush1.msra.mxu0 0.0
  %3453 = vmatprep.subr.mxu0 0.0
  %3454 = vmatpush1.msra.mxu0 0.0
  %3455 = vmatprep.subr.mxu0 0.0
  %3456 = vmatpush1.msra.mxu0 0.0
  %3457 = vmatprep.subr.mxu0 0.0
  %3458 = vmatpush1.msra.mxu0 0.0
  %3459 = vmatprep.subr.mxu0 0.0
  %3460 = vmatpush1.msra.mxu0 0.0
  %3461 = vmatprep.subr.mxu0 0.0
  %3462 = vmatpush1.msra.mxu0 0.0
  %3463 = vmatprep.subr.mxu0 0.0
  %3464 = vmatpush1.msra.mxu0 0.0
  %3465 = vmatprep.subr.mxu0 0.0
  %3466 = vmatpush1.msra.mxu0 0.0
  %3467 = vmatprep.subr.mxu0 0.0
  %3468 = vmatpush1.msra.mxu0 0.0
  %3469 = vmatprep.subr.mxu0 0.0
  %3470 = vmatpush1.msra.mxu0 0.0
  %3471 = vmatprep.subr.mxu0 0.0
  %3472 = vmatpush1.msra.mxu0 0.0
  %3473 = vmatprep.subr.mxu0 0.0
  %3474 = vmatpush1.msra.mxu0 0.0
  %3475 = vmatprep.subr.mxu0 0.0
  %3476 = vmatpush1.msra.mxu0 0.0
  %3477 = vmatprep.subr.mxu0 0.0
  %3478 = vmatpush1.msra.mxu0 0.0
  %3479 = vmatprep.subr.mxu0 0.0
  %3480 = vmatpush1.msra.mxu0 0.0
  %3481 = vmatprep.subr.mxu0 0.0
  %3482 = vmatpush1.msra.mxu0 0.0
  %3483 = vmatprep.subr.mxu0 0.0
  %3484 = vmatpush1.msra.mxu0 0.0
  %3485 = vmatprep.subr.mxu0 0.0
  %3486 = vmatpush1.msra.mxu0 0.0
  %3487 = vmatprep.subr.mxu0 0.0
  %3488 = vmatpush1.msra.mxu0 0.0
  %3489 = vmatprep.subr.mxu0 0.0
  %3490 = vmatpush1.msra.mxu0 0.0
  %3491 = vmatprep.subr.mxu0 0.0
  %3492 = vmatpush1.msra.mxu0 0.0
  %3493 = vmatprep.subr.mxu0 0.0
  %3494 = vmatpush1.msra.mxu0 0.0
  %3495 = vmatprep.subr.mxu0 0.0
  %3496 = vmatpush1.msra.mxu0 0.0
  %3497 = vmatprep.subr.mxu0 0.0
  %3498 = vmatpush1.msra.mxu0 0.0
  %3499 = vmatprep.subr.mxu0 0.0
  %3500 = vmatpush1.msra.mxu0 0.0
  %3501 = vmatprep.subr.mxu0 0.0
  %3502 = vmatpush1.msra.mxu0 0.0
  %3503 = vmatprep.subr.mxu0 0.0
  %3504 = vmatpush1.msra.mxu0 0.0
  %3505 = vmatprep.mubr.f32.mxu0 0.0
  %3506 = vmatmul.mubr.f32.gmra.mrb[0].mxu0 %v3439
  %v3507 = vpop.f32.mrb[0].mxu0
  %v3508 = vadd.f32 0.0, %v3507
  %v3509 = vpop.f32.mrb[0].mxu0
  %3510 = vdwg.mxu0
  %v3511 = vadd.f32 %v3397, %v3508
  %v3512 = vxor.u32 %v3511, 2147483648
  %v3513 = vmul.f32 %v3512, 1.442695
  %v3514 = vpow.pop %v3513
  %v3515 = vadd.f32 %v3514, 1.0
  %v3516 = vrcp.pop %v3515
  %v3517 = vmul.f32 1.0, %v3516
  %v3518 = vlaneseq
  %v3519 = vshrl.u32 %v3518, 7
  %v3520 = vsub.s32 0, %v3519
  %v3521 = vrot.slane %v3437, %v3520
  %3523 = vrot.lane.b32.xlu0 %v3521, 32
  %v3524 = vpop.permute.xlu0 %3523
  %v3526 = vadd.f32 %v3508, %v3524
  %3528 = vrot.lane.b32.xlu0 %v3526, 96
  %v3529 = vpop.permute.xlu0 %3528
  %v3531 = vmul.f32 %v3517, %v3529
  %3533 = vrot.lane.b32.xlu0 %v3531, 32
  %v3534 = vpop.permute.xlu0 %3533
  %v3536 = vadd.f32 %v3397, %v3534
  %v3537 = vtanh.pop %v3536
  %v3538 = vsub.f32 1.0, %v3517
  %3540 = vrot.lane.b32.xlu0 %v3537, 112
  %v3541 = vpop.permute.xlu0 %3540
  %v3543 = vmul.f32 %v3538, %v3541
  %v3544 = vmul.f32 %v3517, 0.0
  %v3545 = vadd.f32 %v3543, %v3544
  %3547 = vrot.lane.b32.xlu0 %v3545, 112
  %v3548 = vpop.permute.xlu0 %3547
  %v3549 = vsel %vm2724, %v3548, 0
  %3551 = vmatprep.subr.mxu0 0.0
  %3552 = vmatpush1.msra.mxu0 %v3435
  %3553 = vmatprep.subr.mxu0 0.0
  %3554 = vmatpush1.msra.mxu0 %v3436
  %3555 = vmatprep.subr.mxu0 0.0
  %3556 = vmatpush1.msra.mxu0 0.0
  %3557 = vmatprep.subr.mxu0 0.0
  %3558 = vmatpush1.msra.mxu0 0.0
  %3559 = vmatprep.subr.mxu0 0.0
  %3560 = vmatpush1.msra.mxu0 0.0
  %3561 = vmatprep.subr.mxu0 0.0
  %3562 = vmatpush1.msra.mxu0 0.0
  %3563 = vmatprep.subr.mxu0 0.0
  %3564 = vmatpush1.msra.mxu0 0.0
  %3565 = vmatprep.subr.mxu0 0.0
  %3566 = vmatpush1.msra.mxu0 0.0
  %3567 = vmatprep.subr.mxu0 0.0
  %3568 = vmatpush1.msra.mxu0 0.0
  %3569 = vmatprep.subr.mxu0 0.0
  %3570 = vmatpush1.msra.mxu0 0.0
  %3571 = vmatprep.subr.mxu0 0.0
  %3572 = vmatpush1.msra.mxu0 0.0
  %3573 = vmatprep.subr.mxu0 0.0
  %3574 = vmatpush1.msra.mxu0 0.0
  %3575 = vmatprep.subr.mxu0 0.0
  %3576 = vmatpush1.msra.mxu0 0.0
  %3577 = vmatprep.subr.mxu0 0.0
  %3578 = vmatpush1.msra.mxu0 0.0
  %3579 = vmatprep.subr.mxu0 0.0
  %3580 = vmatpush1.msra.mxu0 0.0
  %3581 = vmatprep.subr.mxu0 0.0
  %3582 = vmatpush1.msra.mxu0 0.0
  %3583 = vmatprep.subr.mxu0 0.0
  %3584 = vmatpush1.msra.mxu0 0.0
  %3585 = vmatprep.subr.mxu0 0.0
  %3586 = vmatpush1.msra.mxu0 0.0
  %3587 = vmatprep.subr.mxu0 0.0
  %3588 = vmatpush1.msra.mxu0 0.0
  %3589 = vmatprep.subr.mxu0 0.0
  %3590 = vmatpush1.msra.mxu0 0.0
  %3591 = vmatprep.subr.mxu0 0.0
  %3592 = vmatpush1.msra.mxu0 0.0
  %3593 = vmatprep.subr.mxu0 0.0
  %3594 = vmatpush1.msra.mxu0 0.0
  %3595 = vmatprep.subr.mxu0 0.0
  %3596 = vmatpush1.msra.mxu0 0.0
  %3597 = vmatprep.subr.mxu0 0.0
  %3598 = vmatpush1.msra.mxu0 0.0
  %3599 = vmatprep.subr.mxu0 0.0
  %3600 = vmatpush1.msra.mxu0 0.0
  %3601 = vmatprep.subr.mxu0 0.0
  %3602 = vmatpush1.msra.mxu0 0.0
  %3603 = vmatprep.subr.mxu0 0.0
  %3604 = vmatpush1.msra.mxu0 0.0
  %3605 = vmatprep.subr.mxu0 0.0
  %3606 = vmatpush1.msra.mxu0 0.0
  %3607 = vmatprep.subr.mxu0 0.0
  %3608 = vmatpush1.msra.mxu0 0.0
  %3609 = vmatprep.subr.mxu0 0.0
  %3610 = vmatpush1.msra.mxu0 0.0
  %3611 = vmatprep.subr.mxu0 0.0
  %3612 = vmatpush1.msra.mxu0 0.0
  %3613 = vmatprep.subr.mxu0 0.0
  %3614 = vmatpush1.msra.mxu0 0.0
  %3615 = vmatprep.mubr.f32.mxu0 0.0
  %3616 = vmatmul.mubr.f32.gmra.mrb[0].mxu0 %v3549
  %v3617 = vpop.f32.mrb[0].mxu0
  %v3618 = vadd.f32 0.0, %v3617
  %v3619 = vpop.f32.mrb[0].mxu0
  %3620 = vdwg.mxu0
  %v3621 = vadd.f32 %v3402, %v3618
  %v3622 = vxor.u32 %v3621, 2147483648
  %v3623 = vmul.f32 %v3622, 1.442695
  %v3624 = vpow.pop %v3623
  %v3625 = vadd.f32 %v3624, 1.0
  %v3626 = vrcp.pop %v3625
  %v3627 = vmul.f32 1.0, %v3626
  %v3628 = vadd.f32 %v3618, %v3524
  %3630 = vrot.lane.b32.xlu0 %v3628, 96
  %v3631 = vpop.permute.xlu0 %3630
  %v3633 = vmul.f32 %v3627, %v3631
  %3635 = vrot.lane.b32.xlu0 %v3633, 32
  %v3636 = vpop.permute.xlu0 %3635
  %v3638 = vadd.f32 %v3402, %v3636
  %v3639 = vtanh.pop %v3638
  %v3640 = vsub.f32 1.0, %v3627
  %3642 = vrot.lane.b32.xlu0 %v3639, 112
  %v3643 = vpop.permute.xlu0 %3642
  %v3645 = vmul.f32 %v3640, %v3643
  %v3646 = vmul.f32 %v3627, %v3545
  %v3647 = vadd.f32 %v3645, %v3646
  %3649 = vrot.lane.b32.xlu0 %v3647, 112
  %v3650 = vpop.permute.xlu0 %3649
  %v3651 = vsel %vm2724, %v3650, 0
  %3653 = vmatprep.subr.mxu0 0.0
  %3654 = vmatpush1.msra.mxu0 %v3435
  %3655 = vmatprep.subr.mxu0 0.0
  %3656 = vmatpush1.msra.mxu0 %v3436
  %3657 = vmatprep.subr.mxu0 0.0
  %3658 = vmatpush1.msra.mxu0 0.0
  %3659 = vmatprep.subr.mxu0 0.0
  %3660 = vmatpush1.msra.mxu0 0.0
  %3661 = vmatprep.subr.mxu0 0.0
  %3662 = vmatpush1.msra.mxu0 0.0
  %3663 = vmatprep.subr.mxu0 0.0
  %3664 = vmatpush1.msra.mxu0 0.0
  %3665 = vmatprep.subr.mxu0 0.0
  %3666 = vmatpush1.msra.mxu0 0.0
  %3667 = vmatprep.subr.mxu0 0.0
  %3668 = vmatpush1.msra.mxu0 0.0
  %3669 = vmatprep.subr.mxu0 0.0
  %3670 = vmatpush1.msra.mxu0 0.0
  %3671 = vmatprep.subr.mxu0 0.0
  %3672 = vmatpush1.msra.mxu0 0.0
  %3673 = vmatprep.subr.mxu0 0.0
  %3674 = vmatpush1.msra.mxu0 0.0
  %3675 = vmatprep.subr.mxu0 0.0
  %3676 = vmatpush1.msra.mxu0 0.0
  %3677 = vmatprep.subr.mxu0 0.0
  %3678 = vmatpush1.msra.mxu0 0.0
  %3679 = vmatprep.subr.mxu0 0.0
  %3680 = vmatpush1.msra.mxu0 0.0
  %3681 = vmatprep.subr.mxu0 0.0
  %3682 = vmatpush1.msra.mxu0 0.0
  %3683 = vmatprep.subr.mxu0 0.0
  %3684 = vmatpush1.msra.mxu0 0.0
  %3685 = vmatprep.subr.mxu0 0.0
  %3686 = vmatpush1.msra.mxu0 0.0
  %3687 = vmatprep.subr.mxu0 0.0
  %3688 = vmatpush1.msra.mxu0 0.0
  %3689 = vmatprep.subr.mxu0 0.0
  %3690 = vmatpush1.msra.mxu0 0.0
  %3691 = vmatprep.subr.mxu0 0.0
  %3692 = vmatpush1.msra.mxu0 0.0
  %3693 = vmatprep.subr.mxu0 0.0
  %3694 = vmatpush1.msra.mxu0 0.0
  %3695 = vmatprep.subr.mxu0 0.0
  %3696 = vmatpush1.msra.mxu0 0.0
  %3697 = vmatprep.subr.mxu0 0.0
  %3698 = vmatpush1.msra.mxu0 0.0
  %3699 = vmatprep.subr.mxu0 0.0
  %3700 = vmatpush1.msra.mxu0 0.0
  %3701 = vmatprep.subr.mxu0 0.0
  %3702 = vmatpush1.msra.mxu0 0.0
  %3703 = vmatprep.subr.mxu0 0.0
  %3704 = vmatpush1.msra.mxu0 0.0
  %3705 = vmatprep.subr.mxu0 0.0
  %3706 = vmatpush1.msra.mxu0 0.0
  %3707 = vmatprep.subr.mxu0 0.0
  %3708 = vmatpush1.msra.mxu0 0.0
  %3709 = vmatprep.subr.mxu0 0.0
  %3710 = vmatpush1.msra.mxu0 0.0
  %3711 = vmatprep.subr.mxu0 0.0
  %3712 = vmatpush1.msra.mxu0 0.0
  %3713 = vmatprep.subr.mxu0 0.0
  %3714 = vmatpush1.msra.mxu0 0.0
  %3715 = vmatprep.subr.mxu0 0.0
  %3716 = vmatpush1.msra.mxu0 0.0
  %3717 = vmatprep.mubr.f32.mxu0 0.0
  %3718 = vmatmul.mubr.f32.gmra.mrb[0].mxu0 %v3651
  %v3719 = vpop.f32.mrb[0].mxu0
  %v3720 = vadd.f32 0.0, %v3719
  %v3721 = vpop.f32.mrb[0].mxu0
  %3722 = vdwg.mxu0
  %v3723 = vadd.f32 %v3407, %v3720
  %v3724 = vxor.u32 %v3723, 2147483648
  %v3725 = vmul.f32 %v3724, 1.442695
  %v3726 = vpow.pop %v3725
  %v3727 = vadd.f32 %v3726, 1.0
  %v3728 = vrcp.pop %v3727
  %v3729 = vmul.f32 1.0, %v3728
  %v3730 = vadd.f32 %v3720, %v3524
  %3732 = vrot.lane.b32.xlu0 %v3730, 96
  %v3733 = vpop.permute.xlu0 %3732
  %v3735 = vmul.f32 %v3729, %v3733
  %3737 = vrot.lane.b32.xlu0 %v3735, 32
  %v3738 = vpop.permute.xlu0 %3737
  %v3740 = vadd.f32 %v3407, %v3738
  %v3741 = vtanh.pop %v3740
  %v3742 = vsub.f32 1.0, %v3729
  %3744 = vrot.lane.b32.xlu0 %v3741, 112
  %v3745 = vpop.permute.xlu0 %3744
  %v3747 = vmul.f32 %v3742, %v3745
  %v3748 = vmul.f32 %v3729, %v3647
  %v3749 = vadd.f32 %v3747, %v3748
  %3751 = vrot.lane.b32.xlu0 %v3749, 112
  %v3752 = vpop.permute.xlu0 %3751
  %v3753 = vsel %vm2724, %v3752, 0
  %3755 = vmatprep.subr.mxu0 0.0
  %3756 = vmatpush1.msra.mxu0 %v3435
  %3757 = vmatprep.subr.mxu0 0.0
  %3758 = vmatpush1.msra.mxu0 %v3436
  %3759 = vmatprep.subr.mxu0 0.0
  %3760 = vmatpush1.msra.mxu0 0.0
  %3761 = vmatprep.subr.mxu0 0.0
  %3762 = vmatpush1.msra.mxu0 0.0
  %3763 = vmatprep.subr.mxu0 0.0
  %3764 = vmatpush1.msra.mxu0 0.0
  %3765 = vmatprep.subr.mxu0 0.0
  %3766 = vmatpush1.msra.mxu0 0.0
  %3767 = vmatprep.subr.mxu0 0.0
  %3768 = vmatpush1.msra.mxu0 0.0
  %3769 = vmatprep.subr.mxu0 0.0
  %3770 = vmatpush1.msra.mxu0 0.0
  %3771 = vmatprep.subr.mxu0 0.0
  %3772 = vmatpush1.msra.mxu0 0.0
  %3773 = vmatprep.subr.mxu0 0.0
  %3774 = vmatpush1.msra.mxu0 0.0
  %3775 = vmatprep.subr.mxu0 0.0
  %3776 = vmatpush1.msra.mxu0 0.0
  %3777 = vmatprep.subr.mxu0 0.0
  %3778 = vmatpush1.msra.mxu0 0.0
  %3779 = vmatprep.subr.mxu0 0.0
  %3780 = vmatpush1.msra.mxu0 0.0
  %3781 = vmatprep.subr.mxu0 0.0
  %3782 = vmatpush1.msra.mxu0 0.0
  %3783 = vmatprep.subr.mxu0 0.0
  %3784 = vmatpush1.msra.mxu0 0.0
  %3785 = vmatprep.subr.mxu0 0.0
  %3786 = vmatpush1.msra.mxu0 0.0
  %3787 = vmatprep.subr.mxu0 0.0
  %3788 = vmatpush1.msra.mxu0 0.0
  %3789 = vmatprep.subr.mxu0 0.0
  %3790 = vmatpush1.msra.mxu0 0.0
  %3791 = vmatprep.subr.mxu0 0.0
  %3792 = vmatpush1.msra.mxu0 0.0
  %3793 = vmatprep.subr.mxu0 0.0
  %3794 = vmatpush1.msra.mxu0 0.0
  %3795 = vmatprep.subr.mxu0 0.0
  %3796 = vmatpush1.msra.mxu0 0.0
  %3797 = vmatprep.subr.mxu0 0.0
  %3798 = vmatpush1.msra.mxu0 0.0
  %3799 = vmatprep.subr.mxu0 0.0
  %3800 = vmatpush1.msra.mxu0 0.0
  %3801 = vmatprep.subr.mxu0 0.0
  %3802 = vmatpush1.msra.mxu0 0.0
  %3803 = vmatprep.subr.mxu0 0.0
  %3804 = vmatpush1.msra.mxu0 0.0
  %3805 = vmatprep.subr.mxu0 0.0
  %3806 = vmatpush1.msra.mxu0 0.0
  %3807 = vmatprep.subr.mxu0 0.0
  %3808 = vmatpush1.msra.mxu0 0.0
  %3809 = vmatprep.subr.mxu0 0.0
  %3810 = vmatpush1.msra.mxu0 0.0
  %3811 = vmatprep.subr.mxu0 0.0
  %3812 = vmatpush1.msra.mxu0 0.0
  %3813 = vmatprep.subr.mxu0 0.0
  %3814 = vmatpush1.msra.mxu0 0.0
  %3815 = vmatprep.subr.mxu0 0.0
  %3816 = vmatpush1.msra.mxu0 0.0
  %3817 = vmatprep.subr.mxu0 0.0
  %3818 = vmatpush1.msra.mxu0 0.0
  %3819 = vmatprep.mubr.f32.mxu0 0.0
  %3820 = vmatmul.mubr.f32.gmra.mrb[0].mxu0 %v3753
  %v3821 = vpop.f32.mrb[0].mxu0
  %v3822 = vadd.f32 0.0, %v3821
  %v3823 = vpop.f32.mrb[0].mxu0
  %3824 = vdwg.mxu0
  %v3825 = vadd.f32 %v3412, %v3822
  %v3826 = vxor.u32 %v3825, 2147483648
  %v3827 = vmul.f32 %v3826, 1.442695
  %v3828 = vpow.pop %v3827
  %v3829 = vadd.f32 %v3828, 1.0
  %v3830 = vrcp.pop %v3829
  %v3831 = vmul.f32 1.0, %v3830
  %v3832 = vadd.f32 %v3822, %v3524
  %3834 = vrot.lane.b32.xlu0 %v3832, 96
  %v3835 = vpop.permute.xlu0 %3834
  %v3837 = vmul.f32 %v3831, %v3835
  %3839 = vrot.lane.b32.xlu0 %v3837, 32
  %v3840 = vpop.permute.xlu0 %3839
  %v3842 = vadd.f32 %v3412, %v3840
  %v3843 = vtanh.pop %v3842
  %v3844 = vsub.f32 1.0, %v3831
  %3846 = vrot.lane.b32.xlu0 %v3843, 112
  %v3847 = vpop.permute.xlu0 %3846
  %v3849 = vmul.f32 %v3844, %v3847
  %v3850 = vmul.f32 %v3831, %v3749
  %v3851 = vadd.f32 %v3849, %v3850
  %3853 = vrot.lane.b32.xlu0 %v3851, 112
  %v3854 = vpop.permute.xlu0 %3853
  %v3855 = vsel %vm2724, %v3854, 0
  %3857 = vmatprep.subr.mxu0 0.0
  %3858 = vmatpush1.msra.mxu0 %v3435
  %3859 = vmatprep.subr.mxu0 0.0
  %3860 = vmatpush1.msra.mxu0 %v3436
  %3861 = vmatprep.subr.mxu0 0.0
  %3862 = vmatpush1.msra.mxu0 0.0
  %3863 = vmatprep.subr.mxu0 0.0
  %3864 = vmatpush1.msra.mxu0 0.0
  %3865 = vmatprep.subr.mxu0 0.0
  %3866 = vmatpush1.msra.mxu0 0.0
  %3867 = vmatprep.subr.mxu0 0.0
  %3868 = vmatpush1.msra.mxu0 0.0
  %3869 = vmatprep.subr.mxu0 0.0
  %3870 = vmatpush1.msra.mxu0 0.0
  %3871 = vmatprep.subr.mxu0 0.0
  %3872 = vmatpush1.msra.mxu0 0.0
  %3873 = vmatprep.subr.mxu0 0.0
  %3874 = vmatpush1.msra.mxu0 0.0
  %3875 = vmatprep.subr.mxu0 0.0
  %3876 = vmatpush1.msra.mxu0 0.0
  %3877 = vmatprep.subr.mxu0 0.0
  %3878 = vmatpush1.msra.mxu0 0.0
  %3879 = vmatprep.subr.mxu0 0.0
  %3880 = vmatpush1.msra.mxu0 0.0
  %3881 = vmatprep.subr.mxu0 0.0
  %3882 = vmatpush1.msra.mxu0 0.0
  %3883 = vmatprep.subr.mxu0 0.0
  %3884 = vmatpush1.msra.mxu0 0.0
  %3885 = vmatprep.subr.mxu0 0.0
  %3886 = vmatpush1.msra.mxu0 0.0
  %3887 = vmatprep.subr.mxu0 0.0
  %3888 = vmatpush1.msra.mxu0 0.0
  %3889 = vmatprep.subr.mxu0 0.0
  %3890 = vmatpush1.msra.mxu0 0.0
  %3891 = vmatprep.subr.mxu0 0.0
  %3892 = vmatpush1.msra.mxu0 0.0
  %3893 = vmatprep.subr.mxu0 0.0
  %3894 = vmatpush1.msra.mxu0 0.0
  %3895 = vmatprep.subr.mxu0 0.0
  %3896 = vmatpush1.msra.mxu0 0.0
  %3897 = vmatprep.subr.mxu0 0.0
  %3898 = vmatpush1.msra.mxu0 0.0
  %3899 = vmatprep.subr.mxu0 0.0
  %3900 = vmatpush1.msra.mxu0 0.0
  %3901 = vmatprep.subr.mxu0 0.0
  %3902 = vmatpush1.msra.mxu0 0.0
  %3903 = vmatprep.subr.mxu0 0.0
  %3904 = vmatpush1.msra.mxu0 0.0
  %3905 = vmatprep.subr.mxu0 0.0
  %3906 = vmatpush1.msra.mxu0 0.0
  %3907 = vmatprep.subr.mxu0 0.0
  %3908 = vmatpush1.msra.mxu0 0.0
  %3909 = vmatprep.subr.mxu0 0.0
  %3910 = vmatpush1.msra.mxu0 0.0
  %3911 = vmatprep.subr.mxu0 0.0
  %3912 = vmatpush1.msra.mxu0 0.0
  %3913 = vmatprep.subr.mxu0 0.0
  %3914 = vmatpush1.msra.mxu0 0.0
  %3915 = vmatprep.subr.mxu0 0.0
  %3916 = vmatpush1.msra.mxu0 0.0
  %3917 = vmatprep.subr.mxu0 0.0
  %3918 = vmatpush1.msra.mxu0 0.0
  %3919 = vmatprep.subr.mxu0 0.0
  %3920 = vmatpush1.msra.mxu0 0.0
  %3921 = vmatprep.mubr.f32.mxu0 0.0
  %3922 = vmatmul.mubr.f32.gmra.mrb[0].mxu0 %v3855
  %v3923 = vpop.f32.mrb[0].mxu0
  %v3924 = vadd.f32 0.0, %v3923
  %v3925 = vpop.f32.mrb[0].mxu0
  %3926 = vdwg.mxu0
  %v3927 = vadd.f32 %v3417, %v3924
  %v3928 = vxor.u32 %v3927, 2147483648
  %v3929 = vmul.f32 %v3928, 1.442695
  %v3930 = vpow.pop %v3929
  %v3931 = vadd.f32 %v3930, 1.0
  %v3932 = vrcp.pop %v3931
  %v3933 = vmul.f32 1.0, %v3932
  %v3934 = vadd.f32 %v3924, %v3524
  %3936 = vrot.lane.b32.xlu0 %v3934, 96
  %v3937 = vpop.permute.xlu0 %3936
  %v3939 = vmul.f32 %v3933, %v3937
  %3941 = vrot.lane.b32.xlu0 %v3939, 32
  %v3942 = vpop.permute.xlu0 %3941
  %v3944 = vadd.f32 %v3417, %v3942
  %v3945 = vtanh.pop %v3944
  %v3946 = vsub.f32 1.0, %v3933
  %3948 = vrot.lane.b32.xlu0 %v3945, 112
  %v3949 = vpop.permute.xlu0 %3948
  %v3951 = vmul.f32 %v3946, %v3949
  %v3952 = vmul.f32 %v3933, %v3851
  %v3953 = vadd.f32 %v3951, %v3952
  %3955 = vrot.lane.b32.xlu0 %v3953, 112
  %v3956 = vpop.permute.xlu0 %3955
  %v3957 = vsel %vm2724, %v3956, 0
  %3959 = vmatprep.subr.mxu0 0.0
  %3960 = vmatpush1.msra.mxu0 %v3435
  %3961 = vmatprep.subr.mxu0 0.0
  %3962 = vmatpush1.msra.mxu0 %v3436
  %3963 = vmatprep.subr.mxu0 0.0
  %3964 = vmatpush1.msra.mxu0 0.0
  %3965 = vmatprep.subr.mxu0 0.0
  %3966 = vmatpush1.msra.mxu0 0.0
  %3967 = vmatprep.subr.mxu0 0.0
  %3968 = vmatpush1.msra.mxu0 0.0
  %3969 = vmatprep.subr.mxu0 0.0
  %3970 = vmatpush1.msra.mxu0 0.0
  %3971 = vmatprep.subr.mxu0 0.0
  %3972 = vmatpush1.msra.mxu0 0.0
  %3973 = vmatprep.subr.mxu0 0.0
  %3974 = vmatpush1.msra.mxu0 0.0
  %3975 = vmatprep.subr.mxu0 0.0
  %3976 = vmatpush1.msra.mxu0 0.0
  %3977 = vmatprep.subr.mxu0 0.0
  %3978 = vmatpush1.msra.mxu0 0.0
  %3979 = vmatprep.subr.mxu0 0.0
  %3980 = vmatpush1.msra.mxu0 0.0
  %3981 = vmatprep.subr.mxu0 0.0
  %3982 = vmatpush1.msra.mxu0 0.0
  %3983 = vmatprep.subr.mxu0 0.0
  %3984 = vmatpush1.msra.mxu0 0.0
  %3985 = vmatprep.subr.mxu0 0.0
  %3986 = vmatpush1.msra.mxu0 0.0
  %3987 = vmatprep.subr.mxu0 0.0
  %3988 = vmatpush1.msra.mxu0 0.0
  %3989 = vmatprep.subr.mxu0 0.0
  %3990 = vmatpush1.msra.mxu0 0.0
  %3991 = vmatprep.subr.mxu0 0.0
  %3992 = vmatpush1.msra.mxu0 0.0
  %3993 = vmatprep.subr.mxu0 0.0
  %3994 = vmatpush1.msra.mxu0 0.0
  %3995 = vmatprep.subr.mxu0 0.0
  %3996 = vmatpush1.msra.mxu0 0.0
  %3997 = vmatprep.subr.mxu0 0.0
  %3998 = vmatpush1.msra.mxu0 0.0
  %3999 = vmatprep.subr.mxu0 0.0
  %4000 = vmatpush1.msra.mxu0 0.0
  %4001 = vmatprep.subr.mxu0 0.0
  %4002 = vmatpush1.msra.mxu0 0.0
  %4003 = vmatprep.subr.mxu0 0.0
  %4004 = vmatpush1.msra.mxu0 0.0
  %4005 = vmatprep.subr.mxu0 0.0
  %4006 = vmatpush1.msra.mxu0 0.0
  %4007 = vmatprep.subr.mxu0 0.0
  %4008 = vmatpush1.msra.mxu0 0.0
  %4009 = vmatprep.subr.mxu0 0.0
  %4010 = vmatpush1.msra.mxu0 0.0
  %4011 = vmatprep.subr.mxu0 0.0
  %4012 = vmatpush1.msra.mxu0 0.0
  %4013 = vmatprep.subr.mxu0 0.0
  %4014 = vmatpush1.msra.mxu0 0.0
  %4015 = vmatprep.subr.mxu0 0.0
  %4016 = vmatpush1.msra.mxu0 0.0
  %4017 = vmatprep.subr.mxu0 0.0
  %4018 = vmatpush1.msra.mxu0 0.0
  %4019 = vmatprep.subr.mxu0 0.0
  %4020 = vmatpush1.msra.mxu0 0.0
  %4021 = vmatprep.subr.mxu0 0.0
  %4022 = vmatpush1.msra.mxu0 0.0
  %4023 = vmatprep.mubr.f32.mxu0 0.0
  %4024 = vmatmul.mubr.f32.gmra.mrb[0].mxu0 %v3957
  %v4025 = vpop.f32.mrb[0].mxu0
  %v4026 = vadd.f32 0.0, %v4025
  %v4027 = vpop.f32.mrb[0].mxu0
  %4028 = vdwg.mxu0
  %v4029 = vadd.f32 %v3422, %v4026
  %v4030 = vxor.u32 %v4029, 2147483648
  %v4031 = vmul.f32 %v4030, 1.442695
  %v4032 = vpow.pop %v4031
  %v4033 = vadd.f32 %v4032, 1.0
  %v4034 = vrcp.pop %v4033
  %v4035 = vmul.f32 1.0, %v4034
  %v4036 = vadd.f32 %v4026, %v3524
  %4038 = vrot.lane.b32.xlu0 %v4036, 96
  %v4039 = vpop.permute.xlu0 %4038
  %v4041 = vmul.f32 %v4035, %v4039
  %4043 = vrot.lane.b32.xlu0 %v4041, 32
  %v4044 = vpop.permute.xlu0 %4043
  %v4046 = vadd.f32 %v3422, %v4044
  %v4047 = vtanh.pop %v4046
  %v4048 = vsub.f32 1.0, %v4035
  %4050 = vrot.lane.b32.xlu0 %v4047, 112
  %v4051 = vpop.permute.xlu0 %4050
  %v4053 = vmul.f32 %v4048, %v4051
  %v4054 = vmul.f32 %v4035, %v3953
  %v4055 = vadd.f32 %v4053, %v4054
  %4057 = vrot.lane.b32.xlu0 %v4055, 112
  %v4058 = vpop.permute.xlu0 %4057
  %v4059 = vsel %vm2724, %v4058, 0
  %4061 = vmatprep.subr.mxu0 0.0
  %4062 = vmatpush1.msra.mxu0 %v3435
  %4063 = vmatprep.subr.mxu0 0.0
  %4064 = vmatpush1.msra.mxu0 %v3436
  %4065 = vmatprep.subr.mxu0 0.0
  %4066 = vmatpush1.msra.mxu0 0.0
  %4067 = vmatprep.subr.mxu0 0.0
  %4068 = vmatpush1.msra.mxu0 0.0
  %4069 = vmatprep.subr.mxu0 0.0
  %4070 = vmatpush1.msra.mxu0 0.0
  %4071 = vmatprep.subr.mxu0 0.0
  %4072 = vmatpush1.msra.mxu0 0.0
  %4073 = vmatprep.subr.mxu0 0.0
  %4074 = vmatpush1.msra.mxu0 0.0
  %4075 = vmatprep.subr.mxu0 0.0
  %4076 = vmatpush1.msra.mxu0 0.0
  %4077 = vmatprep.subr.mxu0 0.0
  %4078 = vmatpush1.msra.mxu0 0.0
  %4079 = vmatprep.subr.mxu0 0.0
  %4080 = vmatpush1.msra.mxu0 0.0
  %4081 = vmatprep.subr.mxu0 0.0
  %4082 = vmatpush1.msra.mxu0 0.0
  %4083 = vmatprep.subr.mxu0 0.0
  %4084 = vmatpush1.msra.mxu0 0.0
  %4085 = vmatprep.subr.mxu0 0.0
  %4086 = vmatpush1.msra.mxu0 0.0
  %4087 = vmatprep.subr.mxu0 0.0
  %4088 = vmatpush1.msra.mxu0 0.0
  %4089 = vmatprep.subr.mxu0 0.0
  %4090 = vmatpush1.msra.mxu0 0.0
  %4091 = vmatprep.subr.mxu0 0.0
  %4092 = vmatpush1.msra.mxu0 0.0
  %4093 = vmatprep.subr.mxu0 0.0
  %4094 = vmatpush1.msra.mxu0 0.0
  %4095 = vmatprep.subr.mxu0 0.0
  %4096 = vmatpush1.msra.mxu0 0.0
  %4097 = vmatprep.subr.mxu0 0.0
  %4098 = vmatpush1.msra.mxu0 0.0
  %4099 = vmatprep.subr.mxu0 0.0
  %4100 = vmatpush1.msra.mxu0 0.0
  %4101 = vmatprep.subr.mxu0 0.0
  %4102 = vmatpush1.msra.mxu0 0.0
  %4103 = vmatprep.subr.mxu0 0.0
  %4104 = vmatpush1.msra.mxu0 0.0
  %4105 = vmatprep.subr.mxu0 0.0
  %4106 = vmatpush1.msra.mxu0 0.0
  %4107 = vmatprep.subr.mxu0 0.0
  %4108 = vmatpush1.msra.mxu0 0.0
  %4109 = vmatprep.subr.mxu0 0.0
  %4110 = vmatpush1.msra.mxu0 0.0
  %4111 = vmatprep.subr.mxu0 0.0
  %4112 = vmatpush1.msra.mxu0 0.0
  %4113 = vmatprep.subr.mxu0 0.0
  %4114 = vmatpush1.msra.mxu0 0.0
  %4115 = vmatprep.subr.mxu0 0.0
  %4116 = vmatpush1.msra.mxu0 0.0
  %4117 = vmatprep.subr.mxu0 0.0
  %4118 = vmatpush1.msra.mxu0 0.0
  %4119 = vmatprep.subr.mxu0 0.0
  %4120 = vmatpush1.msra.mxu0 0.0
  %4121 = vmatprep.subr.mxu0 0.0
  %4122 = vmatpush1.msra.mxu0 0.0
  %4123 = vmatprep.subr.mxu0 0.0
  %4124 = vmatpush1.msra.mxu0 0.0
  %4125 = vmatprep.mubr.f32.mxu0 0.0
  %4126 = vmatmul.mubr.f32.gmra.mrb[0].mxu0 %v4059
  %v4127 = vpop.f32.mrb[0].mxu0
  %v4128 = vadd.f32 0.0, %v4127
  %v4129 = vpop.f32.mrb[0].mxu0
  %4130 = vdwg.mxu0
  %v4131 = vadd.f32 %v3427, %v4128
  %v4132 = vxor.u32 %v4131, 2147483648
  %v4133 = vmul.f32 %v4132, 1.442695
  %v4134 = vpow.pop %v4133
  %v4135 = vadd.f32 %v4134, 1.0
  %v4136 = vrcp.pop %v4135
  %v4137 = vmul.f32 1.0, %v4136
  %v4138 = vadd.f32 %v4128, %v3524
  %4140 = vrot.lane.b32.xlu0 %v4138, 96
  %v4141 = vpop.permute.xlu0 %4140
  %v4143 = vmul.f32 %v4137, %v4141
  %4145 = vrot.lane.b32.xlu0 %v4143, 32
  %v4146 = vpop.permute.xlu0 %4145
  %v4148 = vadd.f32 %v3427, %v4146
  %v4149 = vtanh.pop %v4148
  %v4150 = vsub.f32 1.0, %v4137
  %4152 = vrot.lane.b32.xlu0 %v4149, 112
  %v4153 = vpop.permute.xlu0 %4152
  %v4155 = vmul.f32 %v4150, %v4153
  %v4156 = vmul.f32 %v4137, %v4055
  %v4157 = vadd.f32 %v4155, %v4156
  %4159 = vrot.lane.b32.xlu0 %v4157, 112
  %v4160 = vpop.permute.xlu0 %4159
  %v4161 = vsel %vm2724, %v4160, 0
  %4163 = vmatprep.subr.mxu0 0.0
  %4164 = vmatpush1.msra.mxu0 %v3435
  %4165 = vmatprep.subr.mxu0 0.0
  %4166 = vmatpush1.msra.mxu0 %v3436
  %4167 = vmatprep.subr.mxu0 0.0
  %4168 = vmatpush1.msra.mxu0 0.0
  %4169 = vmatprep.subr.mxu0 0.0
  %4170 = vmatpush1.msra.mxu0 0.0
  %4171 = vmatprep.subr.mxu0 0.0
  %4172 = vmatpush1.msra.mxu0 0.0
  %4173 = vmatprep.subr.mxu0 0.0
  %4174 = vmatpush1.msra.mxu0 0.0
  %4175 = vmatprep.subr.mxu0 0.0
  %4176 = vmatpush1.msra.mxu0 0.0
  %4177 = vmatprep.subr.mxu0 0.0
  %4178 = vmatpush1.msra.mxu0 0.0
  %4179 = vmatprep.subr.mxu0 0.0
  %4180 = vmatpush1.msra.mxu0 0.0
  %4181 = vmatprep.subr.mxu0 0.0
  %4182 = vmatpush1.msra.mxu0 0.0
  %4183 = vmatprep.subr.mxu0 0.0
  %4184 = vmatpush1.msra.mxu0 0.0
  %4185 = vmatprep.subr.mxu0 0.0
  %4186 = vmatpush1.msra.mxu0 0.0
  %4187 = vmatprep.subr.mxu0 0.0
  %4188 = vmatpush1.msra.mxu0 0.0
  %4189 = vmatprep.subr.mxu0 0.0
  %4190 = vmatpush1.msra.mxu0 0.0
  %4191 = vmatprep.subr.mxu0 0.0
  %4192 = vmatpush1.msra.mxu0 0.0
  %4193 = vmatprep.subr.mxu0 0.0
  %4194 = vmatpush1.msra.mxu0 0.0
  %4195 = vmatprep.subr.mxu0 0.0
  %4196 = vmatpush1.msra.mxu0 0.0
  %4197 = vmatprep.subr.mxu0 0.0
  %4198 = vmatpush1.msra.mxu0 0.0
  %4199 = vmatprep.subr.mxu0 0.0
  %4200 = vmatpush1.msra.mxu0 0.0
  %4201 = vmatprep.subr.mxu0 0.0
  %4202 = vmatpush1.msra.mxu0 0.0
  %4203 = vmatprep.subr.mxu0 0.0
  %4204 = vmatpush1.msra.mxu0 0.0
  %4205 = vmatprep.subr.mxu0 0.0
  %4206 = vmatpush1.msra.mxu0 0.0
  %4207 = vmatprep.subr.mxu0 0.0
  %4208 = vmatpush1.msra.mxu0 0.0
  %4209 = vmatprep.subr.mxu0 0.0
  %4210 = vmatpush1.msra.mxu0 0.0
  %4211 = vmatprep.subr.mxu0 0.0
  %4212 = vmatpush1.msra.mxu0 0.0
  %4213 = vmatprep.subr.mxu0 0.0
  %4214 = vmatpush1.msra.mxu0 0.0
  %4215 = vmatprep.subr.mxu0 0.0
  %4216 = vmatpush1.msra.mxu0 0.0
  %4217 = vmatprep.subr.mxu0 0.0
  %4218 = vmatpush1.msra.mxu0 0.0
  %4219 = vmatprep.subr.mxu0 0.0
  %4220 = vmatpush1.msra.mxu0 0.0
  %4221 = vmatprep.subr.mxu0 0.0
  %4222 = vmatpush1.msra.mxu0 0.0
  %4223 = vmatprep.subr.mxu0 0.0
  %4224 = vmatpush1.msra.mxu0 0.0
  %4225 = vmatprep.subr.mxu0 0.0
  %4226 = vmatpush1.msra.mxu0 0.0
  %4227 = vmatprep.mubr.f32.mxu0 0.0
  %4228 = vmatmul.mubr.f32.gmra.mrb[0].mxu0 %v4161
  %v4229 = vpop.f32.mrb[0].mxu0
  %v4230 = vadd.f32 0.0, %v4229
  %v4231 = vpop.f32.mrb[0].mxu0
  %4232 = vdwg.mxu0
  %v4233 = vadd.f32 %v3432, %v4230
  %v4234 = vxor.u32 %v4233, 2147483648
  %v4235 = vmul.f32 %v4234, 1.442695
  %v4236 = vpow.pop %v4235
  %v4237 = vadd.f32 %v4236, 1.0
  %v4238 = vrcp.pop %v4237
  %v4239 = vmul.f32 1.0, %v4238
  %v4240 = vadd.f32 %v4230, %v3524
  %4242 = vrot.lane.b32.xlu0 %v4240, 96
  %v4243 = vpop.permute.xlu0 %4242
  %v4245 = vmul.f32 %v4239, %v4243
  %4247 = vrot.lane.b32.xlu0 %v4245, 32
  %v4248 = vpop.permute.xlu0 %4247
  %v4250 = vadd.f32 %v3432, %v4248
  %v4251 = vtanh.pop %v4250
  %v4252 = vsub.f32 1.0, %v4239
  %4254 = vrot.lane.b32.xlu0 %v4251, 112
  %v4255 = vpop.permute.xlu0 %4254
  %v4257 = vmul.f32 %v4252, %v4255
  %v4258 = vmul.f32 %v4239, %v4157
  %v4259 = vadd.f32 %v4257, %v4258
  %v4260 = vld [vmem:[%s1 + $0x238] sm:$0xff]
  %v4261 = vld [vmem:[%s1 + $0x240] sm:$0xff]
  %v4262 = vld [vmem:[%s1 + $0x248] sm:$0xff]
  %v4263 = vlaneseq
  %v4264 = vshrl.u32 %v4263, 7
  %v4265 = vsub.s32 0, %v4264
  %v4266 = vrot.slane %v4262, %v4265
  %4268 = vrot.lane.b32.xlu0 %v4259, 112
  %v4269 = vpop.permute.xlu0 %4268
  %v4270 = vsel %vm2724, %v4269, 0
  %4272 = vmatprep.subr.mxu0 0.0
  %4273 = vmatpush1.msra.mxu0 %v4260
  %4274 = vmatprep.subr.mxu0 0.0
  %4275 = vmatpush1.msra.mxu0 %v4261
  %4276 = vmatprep.subr.mxu0 0.0
  %4277 = vmatpush1.msra.mxu0 0.0
  %4278 = vmatprep.subr.mxu0 0.0
  %4279 = vmatpush1.msra.mxu0 0.0
  %4280 = vmatprep.subr.mxu0 0.0
  %4281 = vmatpush1.msra.mxu0 0.0
  %4282 = vmatprep.subr.mxu0 0.0
  %4283 = vmatpush1.msra.mxu0 0.0
  %4284 = vmatprep.subr.mxu0 0.0
  %4285 = vmatpush1.msra.mxu0 0.0
  %4286 = vmatprep.subr.mxu0 0.0
  %4287 = vmatpush1.msra.mxu0 0.0
  %4288 = vmatprep.subr.mxu0 0.0
  %4289 = vmatpush1.msra.mxu0 0.0
  %4290 = vmatprep.subr.mxu0 0.0
  %4291 = vmatpush1.msra.mxu0 0.0
  %4292 = vmatprep.subr.mxu0 0.0
  %4293 = vmatpush1.msra.mxu0 0.0
  %4294 = vmatprep.subr.mxu0 0.0
  %4295 = vmatpush1.msra.mxu0 0.0
  %4296 = vmatprep.subr.mxu0 0.0
  %4297 = vmatpush1.msra.mxu0 0.0
  %4298 = vmatprep.subr.mxu0 0.0
  %4299 = vmatpush1.msra.mxu0 0.0
  %4300 = vmatprep.subr.mxu0 0.0
  %4301 = vmatpush1.msra.mxu0 0.0
  %4302 = vmatprep.subr.mxu0 0.0
  %4303 = vmatpush1.msra.mxu0 0.0
  %4304 = vmatprep.subr.mxu0 0.0
  %4305 = vmatpush1.msra.mxu0 0.0
  %4306 = vmatprep.subr.mxu0 0.0
  %4307 = vmatpush1.msra.mxu0 0.0
  %4308 = vmatprep.subr.mxu0 0.0
  %4309 = vmatpush1.msra.mxu0 0.0
  %4310 = vmatprep.subr.mxu0 0.0
  %4311 = vmatpush1.msra.mxu0 0.0
  %4312 = vmatprep.subr.mxu0 0.0
  %4313 = vmatpush1.msra.mxu0 0.0
  %4314 = vmatprep.subr.mxu0 0.0
  %4315 = vmatpush1.msra.mxu0 0.0
  %4316 = vmatprep.subr.mxu0 0.0
  %4317 = vmatpush1.msra.mxu0 0.0
  %4318 = vmatprep.subr.mxu0 0.0
  %4319 = vmatpush1.msra.mxu0 0.0
  %4320 = vmatprep.subr.mxu0 0.0
  %4321 = vmatpush1.msra.mxu0 0.0
  %4322 = vmatprep.subr.mxu0 0.0
  %4323 = vmatpush1.msra.mxu0 0.0
  %4324 = vmatprep.subr.mxu0 0.0
  %4325 = vmatpush1.msra.mxu0 0.0
  %4326 = vmatprep.subr.mxu0 0.0
  %4327 = vmatpush1.msra.mxu0 0.0
  %4328 = vmatprep.subr.mxu0 0.0
  %4329 = vmatpush1.msra.mxu0 0.0
  %4330 = vmatprep.subr.mxu0 0.0
  %4331 = vmatpush1.msra.mxu0 0.0
  %4332 = vmatprep.subr.mxu0 0.0
  %4333 = vmatpush1.msra.mxu0 0.0
  %4334 = vmatprep.subr.mxu0 0.0
  %4335 = vmatpush1.msra.mxu0 0.0
  %4336 = vmatprep.mubr.f32.mxu0 0.0
  %4337 = vmatmul.mubr.f32.gmra.mrb[0].mxu0 %v4270
  %v4338 = vpop.f32.mrb[0].mxu0
  %v4339 = vadd.f32 %v4266, %v4338
  %v4340 = vpop.f32.mrb[0].mxu0
  %4341 = vdwg.mxu0
  %v4342 = vmax.f32 %v4339, 0.0
  %v4343 = vld [vmem:[%s1 + $0x290] sm:$0xff]
  %v4344 = vld [vmem:[%s1 + $0x250] sm:$0xff]
  %v4345 = vld [vmem:[%s1 + $0x258] sm:$0xff]
  %v4347 = vsel %vm2724, %v4342, 0
  %4349 = vmatprep.subr.mxu0 0.0
  %4350 = vmatpush1.msra.mxu0 %v4344
  %4351 = vmatprep.subr.mxu0 0.0
  %4352 = vmatpush1.msra.mxu0 %v4345
  %4353 = vmatprep.subr.mxu0 0.0
  %4354 = vmatpush1.msra.mxu0 0.0
  %4355 = vmatprep.subr.mxu0 0.0
  %4356 = vmatpush1.msra.mxu0 0.0
  %4357 = vmatprep.subr.mxu0 0.0
  %4358 = vmatpush1.msra.mxu0 0.0
  %4359 = vmatprep.subr.mxu0 0.0
  %4360 = vmatpush1.msra.mxu0 0.0
  %4361 = vmatprep.subr.mxu0 0.0
  %4362 = vmatpush1.msra.mxu0 0.0
  %4363 = vmatprep.subr.mxu0 0.0
  %4364 = vmatpush1.msra.mxu0 0.0
  %4365 = vmatprep.subr.mxu0 0.0
  %4366 = vmatpush1.msra.mxu0 0.0
  %4367 = vmatprep.subr.mxu0 0.0
  %4368 = vmatpush1.msra.mxu0 0.0
  %4369 = vmatprep.subr.mxu0 0.0
  %4370 = vmatpush1.msra.mxu0 0.0
  %4371 = vmatprep.subr.mxu0 0.0
  %4372 = vmatpush1.msra.mxu0 0.0
  %4373 = vmatprep.subr.mxu0 0.0
  %4374 = vmatpush1.msra.mxu0 0.0
  %4375 = vmatprep.subr.mxu0 0.0
  %4376 = vmatpush1.msra.mxu0 0.0
  %4377 = vmatprep.subr.mxu0 0.0
  %4378 = vmatpush1.msra.mxu0 0.0
  %4379 = vmatprep.subr.mxu0 0.0
  %4380 = vmatpush1.msra.mxu0 0.0
  %4381 = vmatprep.subr.mxu0 0.0
  %4382 = vmatpush1.msra.mxu0 0.0
  %4383 = vmatprep.subr.mxu0 0.0
  %4384 = vmatpush1.msra.mxu0 0.0
  %4385 = vmatprep.subr.mxu0 0.0
  %4386 = vmatpush1.msra.mxu0 0.0
  %4387 = vmatprep.subr.mxu0 0.0
  %4388 = vmatpush1.msra.mxu0 0.0
  %4389 = vmatprep.subr.mxu0 0.0
  %4390 = vmatpush1.msra.mxu0 0.0
  %4391 = vmatprep.subr.mxu0 0.0
  %4392 = vmatpush1.msra.mxu0 0.0
  %4393 = vmatprep.subr.mxu0 0.0
  %4394 = vmatpush1.msra.mxu0 0.0
  %4395 = vmatprep.subr.mxu0 0.0
  %4396 = vmatpush1.msra.mxu0 0.0
  %4397 = vmatprep.subr.mxu0 0.0
  %4398 = vmatpush1.msra.mxu0 0.0
  %4399 = vmatprep.subr.mxu0 0.0
  %4400 = vmatpush1.msra.mxu0 0.0
  %4401 = vmatprep.subr.mxu0 0.0
  %4402 = vmatpush1.msra.mxu0 0.0
  %4403 = vmatprep.subr.mxu0 0.0
  %4404 = vmatpush1.msra.mxu0 0.0
  %4405 = vmatprep.subr.mxu0 0.0
  %4406 = vmatpush1.msra.mxu0 0.0
  %4407 = vmatprep.subr.mxu0 0.0
  %4408 = vmatpush1.msra.mxu0 0.0
  %4409 = vmatprep.subr.mxu0 0.0
  %4410 = vmatpush1.msra.mxu0 0.0
  %4411 = vmatprep.subr.mxu0 0.0
  %4412 = vmatpush1.msra.mxu0 0.0
  %4413 = vmatprep.mubr.f32.mxu0 0.0
  %4414 = vmatmul.mubr.f32.gmra.mrb[0].mxu0 %v4347
  %v4415 = vpop.f32.mrb[0].mxu0
  %v4416 = vadd.f32 0.0, %v4415
  %v4417 = vpop.f32.mrb[0].mxu0
  %4418 = vdwg.mxu0
  %4420 = vrot.lane.b32.xlu0 %v3114, 96
  %v4421 = vpop.permute.xlu0 %4420
  %vm4422 = vcmask 15360
  %v4424 = vsel %vm4422, %v4343, 0
  %vm4426 = vcmask 1041408
  %v4427 = vsel %vm4426, %v4421, 0
  %4429 = vmatprep.subr.mxu0 0.0
  %4430 = vmatpush1.msra.mxu0 %v4427
  %4431 = vmatprep.subr.mxu0 0.0
  %4432 = vmatpush1.msra.mxu0 0.0
  %4433 = vmatprep.subr.mxu0 0.0
  %4434 = vmatpush1.msra.mxu0 0.0
  %4435 = vmatprep.subr.mxu0 0.0
  %4436 = vmatpush1.msra.mxu0 0.0
  %4437 = vmatprep.subr.mxu0 0.0
  %4438 = vmatpush1.msra.mxu0 0.0
  %4439 = vmatprep.subr.mxu0 0.0
  %4440 = vmatpush1.msra.mxu0 0.0
  %4441 = vmatprep.subr.mxu0 0.0
  %4442 = vmatpush1.msra.mxu0 0.0
  %4443 = vmatprep.subr.mxu0 0.0
  %4444 = vmatpush1.msra.mxu0 0.0
  %4445 = vmatprep.subr.mxu0 0.0
  %4446 = vmatpush1.msra.mxu0 0.0
  %4447 = vmatprep.subr.mxu0 0.0
  %4448 = vmatpush1.msra.mxu0 0.0
  %4449 = vmatprep.subr.mxu0 0.0
  %4450 = vmatpush1.msra.mxu0 0.0
  %4451 = vmatprep.subr.mxu0 0.0
  %4452 = vmatpush1.msra.mxu0 0.0
  %4453 = vmatprep.subr.mxu0 0.0
  %4454 = vmatpush1.msra.mxu0 0.0
  %4455 = vmatprep.subr.mxu0 0.0
  %4456 = vmatpush1.msra.mxu0 0.0
  %4457 = vmatprep.subr.mxu0 0.0
  %4458 = vmatpush1.msra.mxu0 0.0
  %4459 = vmatprep.subr.mxu0 0.0
  %4460 = vmatpush1.msra.mxu0 0.0
  %4461 = vmatprep.subr.mxu0 0.0
  %4462 = vmatpush1.msra.mxu0 0.0
  %4463 = vmatprep.subr.mxu0 0.0
  %4464 = vmatpush1.msra.mxu0 0.0
  %4465 = vmatprep.subr.mxu0 0.0
  %4466 = vmatpush1.msra.mxu0 0.0
  %4467 = vmatprep.subr.mxu0 0.0
  %4468 = vmatpush1.msra.mxu0 0.0
  %4469 = vmatprep.subr.mxu0 0.0
  %4470 = vmatpush1.msra.mxu0 0.0
  %4471 = vmatprep.subr.mxu0 0.0
  %4472 = vmatpush1.msra.mxu0 0.0
  %4473 = vmatprep.subr.mxu0 0.0
  %4474 = vmatpush1.msra.mxu0 0.0
  %4475 = vmatprep.subr.mxu0 0.0
  %4476 = vmatpush1.msra.mxu0 0.0
  %4477 = vmatprep.subr.mxu0 0.0
  %4478 = vmatpush1.msra.mxu0 0.0
  %4479 = vmatprep.subr.mxu0 0.0
  %4480 = vmatpush1.msra.mxu0 0.0
  %4481 = vmatprep.subr.mxu0 0.0
  %4482 = vmatpush1.msra.mxu0 0.0
  %4483 = vmatprep.subr.mxu0 0.0
  %4484 = vmatpush1.msra.mxu0 0.0
  %4485 = vmatprep.subr.mxu0 0.0
  %4486 = vmatpush1.msra.mxu0 0.0
  %4487 = vmatprep.subr.mxu0 0.0
  %4488 = vmatpush1.msra.mxu0 0.0
  %4489 = vmatprep.subr.mxu0 0.0
  %4490 = vmatpush1.msra.mxu0 0.0
  %4491 = vmatprep.subr.mxu0 0.0
  %4492 = vmatpush1.msra.mxu0 0.0
  %4493 = vmatprep.mubr.f32.mxu0 0.0
  %4494 = vmatmul.mubr.f32.gmra.mrb[0].mxu0 %v4424
  %v4495 = vpop.f32.mrb[0].mxu0
  %v4496 = vadd.f32 %v4416, %v4495
  %v4497 = vpop.f32.mrb[0].mxu0
  %4498 = vdwg.mxu0
  %v4499 = vld [vmem:[%s1 + $0x260] sm:$0xff]
  %v4500 = vlaneseq
  %v4501 = vshrl.u32 %v4500, 7
  %v4502 = vsub.s32 0, %v4501
  %v4503 = vrot.slane %v4499, %v4502
  %v4504 = vadd.f32 %v4496, %v4503
  %v4505 = vmax.f32 %v4504, 0.0
  %v4506 = vld [vmem:[%s1 + $0x268] sm:$0xff]
  %v4507 = vld [vmem:[%s1 + $0x270] sm:$0xff]
  %v4508 = vld [vmem:[%s1 + $0x278] sm:$0xff]
  %v4509 = vld [vmem:[%s1 + $0x280] sm:$0xff]
  %v4510 = vld [vmem:[%s1 + $0x288] sm:$0xff]
  %v4511 = vlaneseq
  %v4512 = vshrl.u32 %v4511, 7
  %v4513 = vsub.s32 0, %v4512
  %v4514 = vrot.slane %v4510, %v4513
  %v4516 = vsel %vm3043, %v4505, 0
  %4518 = vmatprep.subr.mxu0 0.0
  %4519 = vmatpush1.msra.mxu0 %v4506
  %4520 = vmatprep.subr.mxu0 0.0
  %4521 = vmatpush1.msra.mxu0 %v4507
  %4522 = vmatprep.subr.mxu0 0.0
  %4523 = vmatpush1.msra.mxu0 %v4508
  %4524 = vmatprep.subr.mxu0 0.0
  %4525 = vmatpush1.msra.mxu0 %v4509
  %4526 = vmatprep.subr.mxu0 0.0
  %4527 = vmatpush1.msra.mxu0 0.0
  %4528 = vmatprep.subr.mxu0 0.0
  %4529 = vmatpush1.msra.mxu0 0.0
  %4530 = vmatprep.subr.mxu0 0.0
  %4531 = vmatpush1.msra.mxu0 0.0
  %4532 = vmatprep.subr.mxu0 0.0
  %4533 = vmatpush1.msra.mxu0 0.0
  %4534 = vmatprep.subr.mxu0 0.0
  %4535 = vmatpush1.msra.mxu0 0.0
  %4536 = vmatprep.subr.mxu0 0.0
  %4537 = vmatpush1.msra.mxu0 0.0
  %4538 = vmatprep.subr.mxu0 0.0
  %4539 = vmatpush1.msra.mxu0 0.0
  %4540 = vmatprep.subr.mxu0 0.0
  %4541 = vmatpush1.msra.mxu0 0.0
  %4542 = vmatprep.subr.mxu0 0.0
  %4543 = vmatpush1.msra.mxu0 0.0
  %4544 = vmatprep.subr.mxu0 0.0
  %4545 = vmatpush1.msra.mxu0 0.0
  %4546 = vmatprep.subr.mxu0 0.0
  %4547 = vmatpush1.msra.mxu0 0.0
  %4548 = vmatprep.subr.mxu0 0.0
  %4549 = vmatpush1.msra.mxu0 0.0
  %4550 = vmatprep.subr.mxu0 0.0
  %4551 = vmatpush1.msra.mxu0 0.0
  %4552 = vmatprep.subr.mxu0 0.0
  %4553 = vmatpush1.msra.mxu0 0.0
  %4554 = vmatprep.subr.mxu0 0.0
  %4555 = vmatpush1.msra.mxu0 0.0
  %4556 = vmatprep.subr.mxu0 0.0
  %4557 = vmatpush1.msra.mxu0 0.0
  %4558 = vmatprep.subr.mxu0 0.0
  %4559 = vmatpush1.msra.mxu0 0.0
  %4560 = vmatprep.subr.mxu0 0.0
  %4561 = vmatpush1.msra.mxu0 0.0
  %4562 = vmatprep.subr.mxu0 0.0
  %4563 = vmatpush1.msra.mxu0 0.0
  %4564 = vmatprep.subr.mxu0 0.0
  %4565 = vmatpush1.msra.mxu0 0.0
  %4566 = vmatprep.subr.mxu0 0.0
  %4567 = vmatpush1.msra.mxu0 0.0
  %4568 = vmatprep.subr.mxu0 0.0
  %4569 = vmatpush1.msra.mxu0 0.0
  %4570 = vmatprep.subr.mxu0 0.0
  %4571 = vmatpush1.msra.mxu0 0.0
  %4572 = vmatprep.subr.mxu0 0.0
  %4573 = vmatpush1.msra.mxu0 0.0
  %4574 = vmatprep.subr.mxu0 0.0
  %4575 = vmatpush1.msra.mxu0 0.0
  %4576 = vmatprep.subr.mxu0 0.0
  %4577 = vmatpush1.msra.mxu0 0.0
  %4578 = vmatprep.subr.mxu0 0.0
  %4579 = vmatpush1.msra.mxu0 0.0
  %4580 = vmatprep.subr.mxu0 0.0
  %4581 = vmatpush1.msra.mxu0 0.0
  %4582 = vmatprep.mubr.f32.mxu0 0.0
  %4583 = vmatmul.mubr.f32.gmra.mrb[0].mxu0 %v4516
  %v4584 = vpop.f32.mrb[0].mxu0
  %v4585 = vadd.f32 %v4514, %v4584
  %v4586 = vpop.f32.mrb[0].mxu0
  %4587 = vdwg.mxu0
  %4588 = vst [vmem:[%s3] sm:$0xff] 0.0
  %4589 = vst [vmem:[%s3 + $0x8] sm:$0xff] 0.0
  %4590 = vst [vmem:[%s3] sm:$0x3] %v3286
  %4591 = vst [vmem:[%s3 + $0x8] sm:$0xff] %v4585
  // Predicated region
  $region14: #{rasterized_ec_forward.1} parent=0 // pred_check
    _
  $region15: #{rasterized_ec_forward.1} parent=0 // pred_check_branch
    %4593 = sbr.rel (0) target = $region17
  $region16: #{rasterized_ec_forward.1} parent=0 // pred_region
    _
  $region17: #{rasterized_ec_forward.1} parent=0 // pred_fallthru
    _
  // Predicated region
  $region18: #{rasterized_ec_forward.1} parent=0 // pred_check
    _
  $region19: #{rasterized_ec_forward.1} parent=0 // pred_check_branch
    %4595 = sbr.rel (0) target = $region21
  $region20: #{rasterized_ec_forward.1} parent=0 // pred_region
    _
  $region21: #{rasterized_ec_forward.1} parent=0 // pred_fallthru
    _

</llo_original>
